<compile_context>
chip_gen: v7x
topology: tpu7x:2x2x1
jax: 0.10.0
libtpu: 0.0.40
codegen_flags: <defaults>
</compile_context>

<pallas_src>
import jax
import jax.numpy as jnp
from jax.experimental import pallas as pl
from jax.experimental.pallas import tpu as pltpu


_INTERIOR_COL = 8  # 8-aligned scratch column where the image interior starts


# ----------------------------- kernel ----------------------------------------
def _residual_block_kernel(x_ref, w1_ref, b1_ref, w2_ref, b2_ref,
                           out_ref, pad_ref):
    """Fused Conv3x3+BN+ReLU -> Conv3x3+BN -> +residual -> ReLU for one image."""
    _, H, W, C = out_ref.shape
    Hp, Ws, _ = pad_ref.shape              # (H+2, W_s, C) with W_s % 8 == 0
    X0 = _INTERIOR_COL
    P = Hp * Ws

    # Zero the halo scratch every step (cheap; keeps correctness when the
    # "parallel" batch axis is split across TensorCores, each with its own
    # scratch instance).  Interior is overwritten below; borders stay zero.
    pad_ref[...] = jnp.zeros_like(pad_ref)

    def conv3x3(w_packed, bias):
        # w_packed: (C, 9*C) with BN scale folded in, taps packed along lanes.
        flat = pad_ref[...].reshape(P, C)                     # layout-preserving
        full = jnp.dot(flat, w_packed,
                       preferred_element_type=jnp.float32)    # (P, 9*C), 1 matmul
        full = full.reshape(Hp, Ws, 9 * C)
        acc = None
        for ky in range(3):
            for kx in range(3):
                t = ky * 3 + kx
                tap = full[ky:ky + H,
                           X0 - 1 + kx:X0 - 1 + kx + W,
                           t * C:(t + 1) * C]                 # (H, W, C) view
                acc = tap if acc is None else acc + tap
        return acc + bias.reshape(1, 1, C)

    x = x_ref[0].astype(jnp.float32)                          # (H, W, C)

    # conv1 + BN1 + ReLU  (intermediate stays in VMEM)
    pad_ref[1:H + 1, X0:X0 + W, :] = x
    y = jnp.maximum(conv3x3(w1_ref[...], b1_ref[...]), 0.0)

    # conv2 + BN2 + residual + ReLU
    pad_ref[1:H + 1, X0:X0 + W, :] = y
    y = conv3x3(w2_ref[...], b2_ref[...]) + x
    out_ref[...] = jnp.maximum(y, 0.0).reshape(out_ref.shape).astype(out_ref.dtype)


# ----------------------------- wrapper ----------------------------------------
def _round_up(v, m):
    return (v + m - 1) // m * m


def _pack_weights(w, scale):
    """(3,3,Cin,Cout) HWIO conv weights -> (Cin, 9*Cout).

    BN scale is folded into the weights; the 9 taps are packed tap-major along
    the output (lane) axis so the kernel needs a single matmul per conv."""
    kh, kw, cin, cout = w.shape
    w = w * scale.reshape(1, 1, 1, cout)
    return jnp.transpose(w, (2, 0, 1, 3)).reshape(cin, kh * kw * cout)


def residual_block_forward_nhwc(x, params):
    """x: (N, H, W, C) NHWC.  Returns (N, H, W, C)."""
    w1, s1, b1, w2, s2, b2 = params
    N, H, W, C = x.shape
    assert w1.shape[2] == C and w1.shape[3] == C, "stride=1, no-downsample block"

    wp1 = _pack_weights(w1, s1)
    wp2 = _pack_weights(w2, s2)
    b1 = b1.reshape(1, C).astype(jnp.float32)
    b2 = b2.reshape(1, C).astype(jnp.float32)

    # Scratch width: interior at [X0, X0+W), halo columns X0-1 and X0+W, and a
    # multiple of 8 so scratch stores / reshapes stay tile-aligned.
    W_s = _round_up(W + _INTERIOR_COL + 1, 8)

    flops = 2 * (2 * N * H * W * 9 * C * C)                 # two 3x3 convs
    bytes_accessed = (2 * N * H * W * C + 2 * 9 * C * C + 2 * C) * 4

    return pl.pallas_call(
        _residual_block_kernel,
        out_shape=jax.ShapeDtypeStruct((N, H, W, C), x.dtype),
        grid_spec=pltpu.PrefetchScalarGridSpec(
            num_scalar_prefetch=0,
            grid=(N,),
            in_specs=[
                pl.BlockSpec((1, H, W, C), lambda n: (n, 0, 0, 0)),
                pl.BlockSpec((C, 9 * C), lambda n: (0, 0)),
                pl.BlockSpec((1, C), lambda n: (0, 0)),
                pl.BlockSpec((C, 9 * C), lambda n: (0, 0)),
                pl.BlockSpec((1, C), lambda n: (0, 0)),
            ],
            out_specs=pl.BlockSpec((1, H, W, C), lambda n: (n, 0, 0, 0)),
            scratch_shapes=[pltpu.VMEM((H + 2, W_s, C), jnp.float32)],
        ),
        compiler_params=pltpu.CompilerParams(
            dimension_semantics=("parallel",)),
        cost_estimate=pl.CostEstimate(
            flops=flops, transcendentals=0, bytes_accessed=bytes_accessed),
    )(x, wp1, b1, wp2, b2)


def residual_block_forward(x_nchw, params):
    """PyTorch-layout (NCHW) entry point."""
    x = jnp.transpose(x_nchw, (0, 2, 3, 1))                 # -> NHWC
    out = residual_block_forward_nhwc(x, params)
    return jnp.transpose(out, (0, 3, 1, 2))                 # -> NCHW


# ----------------------------- reference --------------------------------------
def _ref_forward(x_nchw, params):
    w1, s1, b1, w2, s2, b2 = params
    x = jnp.transpose(x_nchw, (0, 2, 3, 1))
    conv = lambda a, w: jax.lax.conv_general_dilated(
        a, w, (1, 1), 'SAME', dimension_numbers=('NHWC', 'HWIO', 'NHWC'))
    y = jnp.maximum(conv(x, w1) * s1 + b1, 0.0)
    y = conv(y, w2) * s2 + b2 + x
    y = jnp.maximum(y, 0.0)
    return jnp.transpose(y, (0, 3, 1, 2))


# ----------------------------- params / main ----------------------------------
def _make_params(key, cin, cout, eps=1e-5):
    ks = jax.random.split(key, 10)
    w1 = jax.random.normal(ks[0], (3, 3, cin, cout), jnp.float32) * 0.1
    g1 = jax.random.uniform(ks[1], (cout,), jnp.float32, 0.5, 1.5)
    be1 = jax.random.normal(ks[2], (cout,), jnp.float32) * 0.1
    m1 = jax.random.normal(ks[3], (cout,), jnp.float32) * 0.1
    v1 = jax.random.uniform(ks[4], (cout,), jnp.float32, 0.5, 1.5)
    w2 = jax.random.normal(ks[5], (3, 3, cout, cout), jnp.float32) * 0.1
    g2 = jax.random.uniform(ks[6], (cout,), jnp.float32, 0.5, 1.5)
    be2 = jax.random.normal(ks[7], (cout,), jnp.float32) * 0.1
    m2 = jax.random.normal(ks[8], (cout,), jnp.float32) * 0.1
    v2 = jax.random.uniform(ks[9], (cout,), jnp.float32, 0.5, 1.5)
    s1 = g1 / jnp.sqrt(v1 + eps)
    b1 = be1 - m1 * s1
    s2 = g2 / jnp.sqrt(v2 + eps)
    b2 = be2 - m2 * s2
    return (w1, s1, b1, w2, s2, b2)


if __name__ == "__main__":
    key = jax.random.PRNGKey(0)
    kx, kp = jax.random.split(key)

    N, C, H, W = 2, 4, 16, 16            # in_channels == out_channels, stride=1
    x = jax.random.normal(kx, (N, C, H, W), jnp.float32)
    params = _make_params(kp, C, C)

    out = jax.block_until_ready(residual_block_forward(x, params))
    ref = jax.block_until_ready(_ref_forward(x, params))

    assert out.shape == (N, C, H, W)
    assert jnp.allclose(out, ref, atol=1e-4, rtol=1e-4), "mismatch vs JAX reference"

    print("KERNEL_OK")
</pallas_src>

<mosaic_0001>
module attributes {stable_mosaic.version = 11 : i64} {
  func.func @_residual_block_kernel(%arg0: i32, %arg1: memref<1x16x16x4xf32, #tpu.memory_space<vmem>>, %arg2: memref<4x36xf32, #tpu.memory_space<vmem>>, %arg3: memref<1x4xf32, #tpu.memory_space<vmem>>, %arg4: memref<4x36xf32, #tpu.memory_space<vmem>>, %arg5: memref<1x4xf32, #tpu.memory_space<vmem>>, %arg6: memref<1x16x16x4xf32, #tpu.memory_space<vmem>>, %arg7: memref<18x32x4xf32, #tpu.memory_space<vmem>>) attributes {dimension_semantics = [#tpu.dimension_semantics<parallel>], iteration_bounds = array<i64: 2>, scalar_prefetch = 0 : i64, scratch_operands = 1 : i64, tpu.core_type = #tpu.core_type<tc>, window_params = [{transform_indices = @transform_0, window_bounds = array<i64: 1, 16, 16, 4>}, {pipeline_mode = #tpu.pipeline_mode<synchronous>, transform_indices = @transform_1, window_bounds = array<i64: 4, 36>}, {pipeline_mode = #tpu.pipeline_mode<synchronous>, transform_indices = @transform_2, window_bounds = array<i64: 1, 4>}, {pipeline_mode = #tpu.pipeline_mode<synchronous>, transform_indices = @transform_3, window_bounds = array<i64: 4, 36>}, {pipeline_mode = #tpu.pipeline_mode<synchronous>, transform_indices = @transform_4, window_bounds = array<i64: 1, 4>}, {transform_indices = @transform_5, window_bounds = array<i64: 1, 16, 16, 4>}]} {
    %cst = arith.constant 0.000000e+00 : f32
    %0 = vector.broadcast %cst : f32 to vector<18x32x4xf32>
    %c0 = arith.constant 0 : index
    %c0_0 = arith.constant 0 : index
    %c0_1 = arith.constant 0 : index
    %1 = vector.load %arg7[%c0, %c0_0, %c0_1] : memref<18x32x4xf32, #tpu.memory_space<vmem>>, vector<18x32x4xf32>
    tpu.vector_store %arg7[%c0, %c0_0, %c0_1], %0 {strides = array<i32>} : memref<18x32x4xf32, #tpu.memory_space<vmem>>, vector<18x32x4xf32>,
    %c0_2 = arith.constant 0 : index
    %c0_3 = arith.constant 0 : index
    %c0_4 = arith.constant 0 : index
    %c0_5 = arith.constant 0 : index
    %2 = vector.load %arg1[%c0_2, %c0_3, %c0_4, %c0_5] : memref<1x16x16x4xf32, #tpu.memory_space<vmem>>, vector<1x16x16x4xf32>
    %3 = vector.shape_cast %2 : vector<1x16x16x4xf32> to vector<16x16x4xf32>
    %c1 = arith.constant 1 : index
    %c8 = arith.constant 8 : index
    %c0_6 = arith.constant 0 : index
    %4 = vector.load %arg7[%c1, %c8, %c0_6] : memref<18x32x4xf32, #tpu.memory_space<vmem>>, vector<16x16x4xf32>
    tpu.vector_store %arg7[%c1, %c8, %c0_6], %3 {strides = array<i32>} : memref<18x32x4xf32, #tpu.memory_space<vmem>>, vector<16x16x4xf32>,
    %c0_7 = arith.constant 0 : index
    %c0_8 = arith.constant 0 : index
    %5 = vector.load %arg2[%c0_7, %c0_8] : memref<4x36xf32, #tpu.memory_space<vmem>>, vector<4x36xf32>
    %c0_9 = arith.constant 0 : index
    %c0_10 = arith.constant 0 : index
    %6 = vector.load %arg3[%c0_9, %c0_10] : memref<1x4xf32, #tpu.memory_space<vmem>>, vector<1x4xf32>
    %c0_11 = arith.constant 0 : index
    %c0_12 = arith.constant 0 : index
    %c0_13 = arith.constant 0 : index
    %7 = vector.load %arg7[%c0_11, %c0_12, %c0_13] : memref<18x32x4xf32, #tpu.memory_space<vmem>>, vector<18x32x4xf32>
    %8 = vector.shape_cast %7 : vector<18x32x4xf32> to vector<576x4xf32>
    %cst_14 = arith.constant dense<0.000000e+00> : vector<576x36xf32>
    %9 = tpu.matmul %8, %5, %cst_14 {dimension_numbers = #tpu.dot_dimension_numbers<[1], [0], [0], [1], [0, 0, 1, 1], [], []>} : vector<576x4xf32>, vector<4x36xf32>, vector<576x36xf32> -> vector<576x36xf32>
    %10 = vector.shape_cast %9 : vector<576x36xf32> to vector<18x32x36xf32>
    %11 = vector.extract_strided_slice %10 {offsets = [0, 7, 0], sizes = [16, 16, 4], strides = [1, 1, 1]} : vector<18x32x36xf32> to vector<16x16x4xf32>
    %12 = vector.extract_strided_slice %10 {offsets = [0, 8, 4], sizes = [16, 16, 4], strides = [1, 1, 1]} : vector<18x32x36xf32> to vector<16x16x4xf32>
    %13 = arith.addf %11, %12 : vector<16x16x4xf32>
    %14 = vector.extract_strided_slice %10 {offsets = [0, 9, 8], sizes = [16, 16, 4], strides = [1, 1, 1]} : vector<18x32x36xf32> to vector<16x16x4xf32>
    %15 = arith.addf %13, %14 : vector<16x16x4xf32>
    %16 = vector.extract_strided_slice %10 {offsets = [1, 7, 12], sizes = [16, 16, 4], strides = [1, 1, 1]} : vector<18x32x36xf32> to vector<16x16x4xf32>
    %17 = arith.addf %15, %16 : vector<16x16x4xf32>
    %18 = vector.extract_strided_slice %10 {offsets = [1, 8, 16], sizes = [16, 16, 4], strides = [1, 1, 1]} : vector<18x32x36xf32> to vector<16x16x4xf32>
    %19 = arith.addf %17, %18 : vector<16x16x4xf32>
    %20 = vector.extract_strided_slice %10 {offsets = [1, 9, 20], sizes = [16, 16, 4], strides = [1, 1, 1]} : vector<18x32x36xf32> to vector<16x16x4xf32>
    %21 = arith.addf %19, %20 : vector<16x16x4xf32>
    %22 = vector.extract_strided_slice %10 {offsets = [2, 7, 24], sizes = [16, 16, 4], strides = [1, 1, 1]} : vector<18x32x36xf32> to vector<16x16x4xf32>
    %23 = arith.addf %21, %22 : vector<16x16x4xf32>
    %24 = vector.extract_strided_slice %10 {offsets = [2, 8, 28], sizes = [16, 16, 4], strides = [1, 1, 1]} : vector<18x32x36xf32> to vector<16x16x4xf32>
    %25 = arith.addf %23, %24 : vector<16x16x4xf32>
    %26 = vector.extract_strided_slice %10 {offsets = [2, 9, 32], sizes = [16, 16, 4], strides = [1, 1, 1]} : vector<18x32x36xf32> to vector<16x16x4xf32>
    %27 = arith.addf %25, %26 : vector<16x16x4xf32>
    %28 = vector.shape_cast %6 : vector<1x4xf32> to vector<1x1x4xf32>
    %29 = vector.broadcast %28 : vector<1x1x4xf32> to vector<16x16x4xf32>
    %30 = arith.addf %27, %29 : vector<16x16x4xf32>
    %cst_15 = arith.constant 0.000000e+00 : f32
    %31 = vector.broadcast %cst_15 : f32 to vector<16x16x4xf32>
    %32 = arith.maximumf %30, %31 : vector<16x16x4xf32>
    %c1_16 = arith.constant 1 : index
    %c8_17 = arith.constant 8 : index
    %c0_18 = arith.constant 0 : index
    %33 = vector.load %arg7[%c1_16, %c8_17, %c0_18] : memref<18x32x4xf32, #tpu.memory_space<vmem>>, vector<16x16x4xf32>
    tpu.vector_store %arg7[%c1_16, %c8_17, %c0_18], %32 {strides = array<i32>} : memref<18x32x4xf32, #tpu.memory_space<vmem>>, vector<16x16x4xf32>,
    %c0_19 = arith.constant 0 : index
    %c0_20 = arith.constant 0 : index
    %34 = vector.load %arg4[%c0_19, %c0_20] : memref<4x36xf32, #tpu.memory_space<vmem>>, vector<4x36xf32>
    %c0_21 = arith.constant 0 : index
    %c0_22 = arith.constant 0 : index
    %35 = vector.load %arg5[%c0_21, %c0_22] : memref<1x4xf32, #tpu.memory_space<vmem>>, vector<1x4xf32>
    %c0_23 = arith.constant 0 : index
    %c0_24 = arith.constant 0 : index
    %c0_25 = arith.constant 0 : index
    %36 = vector.load %arg7[%c0_23, %c0_24, %c0_25] : memref<18x32x4xf32, #tpu.memory_space<vmem>>, vector<18x32x4xf32>
    %37 = vector.shape_cast %36 : vector<18x32x4xf32> to vector<576x4xf32>
    %cst_26 = arith.constant dense<0.000000e+00> : vector<576x36xf32>
    %38 = tpu.matmul %37, %34, %cst_26 {dimension_numbers = #tpu.dot_dimension_numbers<[1], [0], [0], [1], [0, 0, 1, 1], [], []>} : vector<576x4xf32>, vector<4x36xf32>, vector<576x36xf32> -> vector<576x36xf32>
    %39 = vector.shape_cast %38 : vector<576x36xf32> to vector<18x32x36xf32>
    %40 = vector.extract_strided_slice %39 {offsets = [0, 7, 0], sizes = [16, 16, 4], strides = [1, 1, 1]} : vector<18x32x36xf32> to vector<16x16x4xf32>
    %41 = vector.extract_strided_slice %39 {offsets = [0, 8, 4], sizes = [16, 16, 4], strides = [1, 1, 1]} : vector<18x32x36xf32> to vector<16x16x4xf32>
    %42 = arith.addf %40, %41 : vector<16x16x4xf32>
    %43 = vector.extract_strided_slice %39 {offsets = [0, 9, 8], sizes = [16, 16, 4], strides = [1, 1, 1]} : vector<18x32x36xf32> to vector<16x16x4xf32>
    %44 = arith.addf %42, %43 : vector<16x16x4xf32>
    %45 = vector.extract_strided_slice %39 {offsets = [1, 7, 12], sizes = [16, 16, 4], strides = [1, 1, 1]} : vector<18x32x36xf32> to vector<16x16x4xf32>
    %46 = arith.addf %44, %45 : vector<16x16x4xf32>
    %47 = vector.extract_strided_slice %39 {offsets = [1, 8, 16], sizes = [16, 16, 4], strides = [1, 1, 1]} : vector<18x32x36xf32> to vector<16x16x4xf32>
    %48 = arith.addf %46, %47 : vector<16x16x4xf32>
    %49 = vector.extract_strided_slice %39 {offsets = [1, 9, 20], sizes = [16, 16, 4], strides = [1, 1, 1]} : vector<18x32x36xf32> to vector<16x16x4xf32>
    %50 = arith.addf %48, %49 : vector<16x16x4xf32>
    %51 = vector.extract_strided_slice %39 {offsets = [2, 7, 24], sizes = [16, 16, 4], strides = [1, 1, 1]} : vector<18x32x36xf32> to vector<16x16x4xf32>
    %52 = arith.addf %50, %51 : vector<16x16x4xf32>
    %53 = vector.extract_strided_slice %39 {offsets = [2, 8, 28], sizes = [16, 16, 4], strides = [1, 1, 1]} : vector<18x32x36xf32> to vector<16x16x4xf32>
    %54 = arith.addf %52, %53 : vector<16x16x4xf32>
    %55 = vector.extract_strided_slice %39 {offsets = [2, 9, 32], sizes = [16, 16, 4], strides = [1, 1, 1]} : vector<18x32x36xf32> to vector<16x16x4xf32>
    %56 = arith.addf %54, %55 : vector<16x16x4xf32>
    %57 = vector.shape_cast %35 : vector<1x4xf32> to vector<1x1x4xf32>
    %58 = vector.broadcast %57 : vector<1x1x4xf32> to vector<16x16x4xf32>
    %59 = arith.addf %56, %58 : vector<16x16x4xf32>
    %60 = arith.addf %59, %3 : vector<16x16x4xf32>
    %cst_27 = arith.constant 0.000000e+00 : f32
    %61 = vector.broadcast %cst_27 : f32 to vector<16x16x4xf32>
    %62 = arith.maximumf %60, %61 : vector<16x16x4xf32>
    %63 = vector.shape_cast %62 : vector<16x16x4xf32> to vector<1x16x16x4xf32>
    %c0_28 = arith.constant 0 : index
    %c0_29 = arith.constant 0 : index
    %c0_30 = arith.constant 0 : index
    %c0_31 = arith.constant 0 : index
    %64 = vector.load %arg6[%c0_28, %c0_29, %c0_30, %c0_31] : memref<1x16x16x4xf32, #tpu.memory_space<vmem>>, vector<1x16x16x4xf32>
    tpu.vector_store %arg6[%c0_28, %c0_29, %c0_30, %c0_31], %63 {strides = array<i32>} : memref<1x16x16x4xf32, #tpu.memory_space<vmem>>, vector<1x16x16x4xf32>,
    return
  }
  func.func @transform_0(%arg0: i32) -> (i32, i32, i32, i32) {
    %c0_i32 = arith.constant 0 : i32
    %c0_i32_0 = arith.constant 0 : i32
    %c0_i32_1 = arith.constant 0 : i32
    %c0_i32_2 = arith.constant 0 : i32
    return %arg0, %c0_i32, %c0_i32_0, %c0_i32_1 : i32, i32, i32, i32
  }
  func.func @transform_1(%arg0: i32) -> (i32, i32) {
    %c0_i32 = arith.constant 0 : i32
    %c0_i32_0 = arith.constant 0 : i32
    %c0_i32_1 = arith.constant 0 : i32
    return %c0_i32, %c0_i32_0 : i32, i32
  }
  func.func @transform_2(%arg0: i32) -> (i32, i32) {
    %c0_i32 = arith.constant 0 : i32
    %c0_i32_0 = arith.constant 0 : i32
    %c0_i32_1 = arith.constant 0 : i32
    return %c0_i32, %c0_i32_0 : i32, i32
  }
  func.func @transform_3(%arg0: i32) -> (i32, i32) {
    %c0_i32 = arith.constant 0 : i32
    %c0_i32_0 = arith.constant 0 : i32
    %c0_i32_1 = arith.constant 0 : i32
    return %c0_i32, %c0_i32_0 : i32, i32
  }
  func.func @transform_4(%arg0: i32) -> (i32, i32) {
    %c0_i32 = arith.constant 0 : i32
    %c0_i32_0 = arith.constant 0 : i32
    %c0_i32_1 = arith.constant 0 : i32
    return %c0_i32, %c0_i32_0 : i32, i32
  }
  func.func @transform_5(%arg0: i32) -> (i32, i32, i32, i32) {
    %c0_i32 = arith.constant 0 : i32
    %c0_i32_0 = arith.constant 0 : i32
    %c0_i32_1 = arith.constant 0 : i32
    %c0_i32_2 = arith.constant 0 : i32
    return %arg0, %c0_i32, %c0_i32_0, %c0_i32_1 : i32, i32, i32, i32
  }
}

</mosaic_0001>

<llo_original>
// kernel: tpu_custom_call.1
$region0: #{tpu_custom_call.1}
  #allocation0 [shape = 'u32[]', space=smem, size = 0x4, offset = 0x4, fixed_abs, tag = 'smem constant byte address 0x4 - core index']
  #allocation1 [shape = 'u32[144,128]{1,0:T(1,128)}', space=vmem, size = 0x12000, scoped, tag = 'internal scratch']
  #allocation2 [shape = 'f32[18,32,4]{2,1,0:T(8,128)}', space=vmem, size = 0x48000, scoped, tag = 'scratch operand']
  %s0 = inlined_call_operand.vmem [shape: f32[2,16,16,4], index: 0, kind: input, shape index: {}]
  %s1 = inlined_call_operand.vmem [shape: f32[4,36], index: 1, kind: input, shape index: {}]
  %s2 = inlined_call_operand.vmem [shape: f32[1,4], index: 2, kind: input, shape index: {}]
  %s3 = inlined_call_operand.vmem [shape: f32[4,36], index: 3, kind: input, shape index: {}]
  %s4 = inlined_call_operand.vmem [shape: f32[1,4], index: 4, kind: input, shape index: {}]
  %s5 = inlined_call_operand.vmem [shape: f32[2,16,16,4], index: 5, kind: output, shape index: {}]
  %s6 = sld [smem:[#allocation0]]
  $region53: #{tpu_custom_call.1} parent=0
    _
  %s8 = ssub.s32 1, %s6
  %s9 = scalar_select 0, %s8, %s6
  loop: start=0, step=1, limit=4
  $region2: #{tpu_custom_call.1} parent=0 // loop_pre_header
    _
  $region3: #{tpu_custom_call.1} parent=0 // loop_header
    %s11 = sphi 0, %s15
    %p12 = scmp.ge.s32.totalorder %s11, 4
    %s21 = sphi 0, %s23
    %s24 = sphi 0, %s21
    %s25 = sphi 0, %s24
    %s41 = sphi 0, %s25
    %s45 = sphi 0, %s45
    %s47 = sphi 0, %s45
    %s48 = sphi 0, %s47
    %s62 = sphi 0, %s48
    %s66 = sphi 0, %s66
    %s68 = sphi 0, %s66
    %s69 = sphi 0, %s68
    %s83 = sphi 0, %s69
    %s87 = sphi 0, %s87
    %s89 = sphi 0, %s87
    %s90 = sphi 0, %s89
    %s104 = sphi 0, %s90
    %s108 = sphi 0, %s108
    %s110 = sphi 0, %s108
    %s111 = sphi 0, %s110
    %s125 = sphi 0, %s111
    %s131 = sphi 0, %s133
    %s134 = sphi 0, %s131
    %s135 = sphi 0, %s134
    %s151 = sphi 0, %s135
  $region4: #{tpu_custom_call.1} parent=0 // loop_header_branch
    %14 = sbr.rel (%p12) target = $region8
  $region5: #{tpu_custom_call.1} parent=0 // loop_body
    %s16 = ssub.s32 %s11, 1
    %s17 = ssub.s32 %s11, 2
    %s18 = sadd.s32 %s11, 1
    %s19 = ssub.s32 %s11, %s18
    %p20 = scmp.eq.s32.totalorder %s19, 0
    %s22 = sadd.s32 %s21, 1
    %s23 = scalar_select %p20, %s21, %s22
    %p26 = pneg %p20
    %p27 = scmp.eq.s32.totalorder %s11, 1
    %p28 = por %p26, %p27
    %p29 = scmp.ne.s32.totalorder %s21, %s24
    %p30 = scmp.eq.s32.totalorder %s11, 0
    %p31 = por %p29, %p30
    %p32 = scmp.ne.s32.totalorder %s21, %s24
    %p33 = scmp.eq.s32.totalorder %s16, 1
    %p34 = por %p32, %p33
    %p35 = scmp.ne.s32.totalorder %s24, %s25
    %p36 = scmp.eq.s32.totalorder %s16, 0
    %p37 = por %p35, %p36
    %p38 = scmp.ne.s32.totalorder %s24, %s25
    %p39 = scmp.eq.s32.totalorder %s17, 1
    %p40 = por %p38, %p39
    %p42 = scmp.ne.s32.totalorder %s25, %s41
    %p43 = scmp.eq.s32.totalorder %s17, 0
    %p44 = por %p42, %p43
    %s46 = sadd.s32 %s45, 1
    %p49 = scmp.eq.s32.totalorder %s11, 1
    %p50 = scmp.ne.s32.totalorder %s45, %s47
    %p51 = scmp.eq.s32.totalorder %s11, 0
    %p52 = por %p50, %p51
    %p53 = scmp.ne.s32.totalorder %s45, %s47
    %p54 = scmp.eq.s32.totalorder %s16, 1
    %p55 = por %p53, %p54
    %p56 = scmp.ne.s32.totalorder %s47, %s48
    %p57 = scmp.eq.s32.totalorder %s16, 0
    %p58 = por %p56, %p57
    %p59 = scmp.ne.s32.totalorder %s47, %s48
    %p60 = scmp.eq.s32.totalorder %s17, 1
    %p61 = por %p59, %p60
    %p63 = scmp.ne.s32.totalorder %s48, %s62
    %p64 = scmp.eq.s32.totalorder %s17, 0
    %p65 = por %p63, %p64
    %s67 = sadd.s32 %s66, 1
    %p70 = scmp.eq.s32.totalorder %s11, 1
    %p71 = scmp.ne.s32.totalorder %s66, %s68
    %p72 = scmp.eq.s32.totalorder %s11, 0
    %p73 = por %p71, %p72
    %p74 = scmp.ne.s32.totalorder %s66, %s68
    %p75 = scmp.eq.s32.totalorder %s16, 1
    %p76 = por %p74, %p75
    %p77 = scmp.ne.s32.totalorder %s68, %s69
    %p78 = scmp.eq.s32.totalorder %s16, 0
    %p79 = por %p77, %p78
    %p80 = scmp.ne.s32.totalorder %s68, %s69
    %p81 = scmp.eq.s32.totalorder %s17, 1
    %p82 = por %p80, %p81
    %p84 = scmp.ne.s32.totalorder %s69, %s83
    %p85 = scmp.eq.s32.totalorder %s17, 0
    %p86 = por %p84, %p85
    %s88 = sadd.s32 %s87, 1
    %p91 = scmp.eq.s32.totalorder %s11, 1
    %p92 = scmp.ne.s32.totalorder %s87, %s89
    %p93 = scmp.eq.s32.totalorder %s11, 0
    %p94 = por %p92, %p93
    %p95 = scmp.ne.s32.totalorder %s87, %s89
    %p96 = scmp.eq.s32.totalorder %s16, 1
    %p97 = por %p95, %p96
    %p98 = scmp.ne.s32.totalorder %s89, %s90
    %p99 = scmp.eq.s32.totalorder %s16, 0
    %p100 = por %p98, %p99
    %p101 = scmp.ne.s32.totalorder %s89, %s90
    %p102 = scmp.eq.s32.totalorder %s17, 1
    %p103 = por %p101, %p102
    %p105 = scmp.ne.s32.totalorder %s90, %s104
    %p106 = scmp.eq.s32.totalorder %s17, 0
    %p107 = por %p105, %p106
    %s109 = sadd.s32 %s108, 1
    %p112 = scmp.eq.s32.totalorder %s11, 1
    %p113 = scmp.ne.s32.totalorder %s108, %s110
    %p114 = scmp.eq.s32.totalorder %s11, 0
    %p115 = por %p113, %p114
    %p116 = scmp.ne.s32.totalorder %s108, %s110
    %p117 = scmp.eq.s32.totalorder %s16, 1
    %p118 = por %p116, %p117
    %p119 = scmp.ne.s32.totalorder %s110, %s111
    %p120 = scmp.eq.s32.totalorder %s16, 0
    %p121 = por %p119, %p120
    %p122 = scmp.ne.s32.totalorder %s110, %s111
    %p123 = scmp.eq.s32.totalorder %s17, 1
    %p124 = por %p122, %p123
    %p126 = scmp.ne.s32.totalorder %s111, %s125
    %p127 = scmp.eq.s32.totalorder %s17, 0
    %p128 = por %p126, %p127
    %s129 = ssub.s32 %s11, %s18
    %p130 = scmp.eq.s32.totalorder %s129, 0
    %s132 = sadd.s32 %s131, 1
    %s133 = scalar_select %p130, %s131, %s132
    %p136 = pneg %p130
    %p137 = scmp.eq.s32.totalorder %s11, 1
    %p138 = por %p136, %p137
    %p139 = scmp.ne.s32.totalorder %s131, %s134
    %p140 = scmp.eq.s32.totalorder %s11, 0
    %p141 = por %p139, %p140
    %p142 = scmp.ne.s32.totalorder %s131, %s134
    %p143 = scmp.eq.s32.totalorder %s16, 1
    %p144 = por %p142, %p143
    %p145 = scmp.ne.s32.totalorder %s134, %s135
    %p146 = scmp.eq.s32.totalorder %s16, 0
    %p147 = por %p145, %p146
    %p148 = scmp.ne.s32.totalorder %s134, %s135
    %p149 = scmp.eq.s32.totalorder %s17, 1
    %p150 = por %p148, %p149
    %p152 = scmp.ne.s32.totalorder %s135, %s151
    %p153 = scmp.eq.s32.totalorder %s17, 0
    %p154 = por %p152, %p153
    %p155 = scmp.le.s32.totalorder 1, %s11
    %p156 = scmp.lt.s32.totalorder %s11, 3
    %p157 = pnand %p155, %p156
    %p158 = pneg %p157
    // Predicated region
    $region9: #{tpu_custom_call.1} parent=5 // pred_check
      _
    $region10: #{tpu_custom_call.1} parent=5 // pred_check_branch
      %160 = sbr.rel (%p157) target = $region12
    $region11: #{tpu_custom_call.1} parent=5 // pred_region
      %s161 = ssub.s32 %s11, 1
      // Predicated region
      $region13: #{tpu_custom_call.1} parent=11 // pred_check
        %p162 = pneg %p58
      $region14: #{tpu_custom_call.1} parent=11 // pred_check_branch
        %164 = sbr.rel (%p162) target = $region16
      $region15: #{tpu_custom_call.1} parent=11 // pred_region
        _
      $region16: #{tpu_custom_call.1} parent=11 // pred_fallthru
        _
      // Predicated region
      $region17: #{tpu_custom_call.1} parent=11 // pred_check
        %p165 = pneg %p79
      $region18: #{tpu_custom_call.1} parent=11 // pred_check_branch
        %167 = sbr.rel (%p165) target = $region20
      $region19: #{tpu_custom_call.1} parent=11 // pred_region
        _
      $region20: #{tpu_custom_call.1} parent=11 // pred_fallthru
        _
      // Predicated region
      $region21: #{tpu_custom_call.1} parent=11 // pred_check
        %p168 = pneg %p100
      $region22: #{tpu_custom_call.1} parent=11 // pred_check_branch
        %170 = sbr.rel (%p168) target = $region24
      $region23: #{tpu_custom_call.1} parent=11 // pred_region
        _
      $region24: #{tpu_custom_call.1} parent=11 // pred_fallthru
        _
      // Predicated region
      $region25: #{tpu_custom_call.1} parent=11 // pred_check
        %p171 = pneg %p121
      $region26: #{tpu_custom_call.1} parent=11 // pred_check_branch
        %173 = sbr.rel (%p171) target = $region28
      $region27: #{tpu_custom_call.1} parent=11 // pred_region
        _
      $region28: #{tpu_custom_call.1} parent=11 // pred_fallthru
        _
    $region12: #{tpu_custom_call.1} parent=5 // pred_fallthru
      _
    %p174 = scmp.lt.s32.totalorder %s11, 2
    // Predicated region
    $region29: #{tpu_custom_call.1} parent=5 // pred_check
      %p175 = pneg %p174
    $region30: #{tpu_custom_call.1} parent=5 // pred_check_branch
      %177 = sbr.rel (%p175) target = $region32
    $region31: #{tpu_custom_call.1} parent=5 // pred_region
      // Predicated region
      $region33: #{tpu_custom_call.1} parent=31 // pred_check
        %p178 = pneg %p31
      $region34: #{tpu_custom_call.1} parent=31 // pred_check_branch
        %180 = sbr.rel (%p178) target = $region36
      $region35: #{tpu_custom_call.1} parent=31 // pred_region
        %p181 = scmp.lt.s32.totalorder %s11, 1
        %s182 = scalar_select %p181, %s11, 1
        %s183 = smul.addr %s182, 32
        %s184 = smul.addr %s183, 8
        %s185 = scalar_lea.vmem %s0, %s184
      $region36: #{tpu_custom_call.1} parent=31 // pred_fallthru
        _
    $region32: #{tpu_custom_call.1} parent=5 // pred_fallthru
      _
    %p186 = scmp.le.s32.totalorder 1, %s11
    %p187 = scmp.lt.s32.totalorder %s11, 3
    %p188 = pnand %p186, %p187
    %p189 = pneg %p188
    // Predicated region
    $region37: #{tpu_custom_call.1} parent=5 // pred_check
      _
    $region38: #{tpu_custom_call.1} parent=5 // pred_check_branch
      %191 = sbr.rel (%p188) target = $region40
    $region39: #{tpu_custom_call.1} parent=5 // pred_region
      %s192 = ssub.s32 %s11, 1
      %p193 = scmp.lt.s32.totalorder %s16, 1
      %s194 = scalar_select %p193, %s16, 1
      %s195 = smul.addr %s194, 32
      %s196 = smul.addr %s195, 8
      %s197 = scalar_lea.vmem %s0, %s196
      %p198 = pneg %p37
      %p199 = pneg %p34
      %p200 = pneg %p58
      %p201 = pneg %p55
      %p202 = pneg %p79
      %p203 = pneg %p76
      %p204 = pneg %p100
      %p205 = pneg %p97
      %p206 = pneg %p121
      %p207 = pneg %p118
      %p208 = pneg %p147
      %p209 = pneg %p144
      %p210 = scmp.lt.s32.totalorder %s16, 1
      %s211 = scalar_select %p210, %s16, 1
      %s212 = smul.addr %s211, 32
      %s213 = smul.addr %s212, 8
      %s214 = scalar_lea.vmem %s5, %s213
      %p215 = scmp.lt.s32.totalorder %s16, 1
      %s216 = scalar_select %p215, %s16, 1
      %s217 = smul.addr %s216, 32
      %s218 = smul.addr %s217, 8
      %s219 = scalar_lea.vmem %s0, %s218
      %p220 = scmp.lt.s32.totalorder %s16, 1
      %s221 = scalar_select %p220, %s16, 1
      %s222 = smul.addr %s221, 32
      %s223 = smul.addr %s222, 8
      %s224 = scalar_lea.vmem %s5, %s223
      %vm225 = vcmask 31744
      %226 = vst.msk [vmem:[#allocation2] sm:$0xff] %vm225, 0.0
      %227 = vst.msk [vmem:[#allocation2 + $0x8] sm:$0xff] %vm225, 0.0
      %228 = vst.msk [vmem:[#allocation2 + $0x10] sm:$0xff] %vm225, 0.0
      %229 = vst.msk [vmem:[#allocation2 + $0x18] sm:$0xff] %vm225, 0.0
      %230 = vst.msk [vmem:[#allocation2 + $0x20] sm:$0xff] %vm225, 0.0
      %231 = vst.msk [vmem:[#allocation2 + $0x28] sm:$0xff] %vm225, 0.0
      %232 = vst.msk [vmem:[#allocation2 + $0x30] sm:$0xff] %vm225, 0.0
      %233 = vst.msk [vmem:[#allocation2 + $0x38] sm:$0xff] %vm225, 0.0
      %234 = vst.msk [vmem:[#allocation2 + $0x40] sm:$0xff] %vm225, 0.0
      %235 = vst.msk [vmem:[#allocation2 + $0x48] sm:$0xff] %vm225, 0.0
      %236 = vst.msk [vmem:[#allocation2 + $0x50] sm:$0xff] %vm225, 0.0
      %237 = vst.msk [vmem:[#allocation2 + $0x58] sm:$0xff] %vm225, 0.0
      %238 = vst.msk [vmem:[#allocation2 + $0x60] sm:$0xff] %vm225, 0.0
      %239 = vst.msk [vmem:[#allocation2 + $0x68] sm:$0xff] %vm225, 0.0
      %240 = vst.msk [vmem:[#allocation2 + $0x70] sm:$0xff] %vm225, 0.0
      %241 = vst.msk [vmem:[#allocation2 + $0x78] sm:$0xff] %vm225, 0.0
      %242 = vst.msk [vmem:[#allocation2 + $0x80] sm:$0xff] %vm225, 0.0
      %243 = vst.msk [vmem:[#allocation2 + $0x88] sm:$0xff] %vm225, 0.0
      %244 = vst.msk [vmem:[#allocation2 + $0x90] sm:$0xff] %vm225, 0.0
      %245 = vst.msk [vmem:[#allocation2 + $0x98] sm:$0xff] %vm225, 0.0
      %246 = vst.msk [vmem:[#allocation2 + $0xa0] sm:$0xff] %vm225, 0.0
      %247 = vst.msk [vmem:[#allocation2 + $0xa8] sm:$0xff] %vm225, 0.0
      %248 = vst.msk [vmem:[#allocation2 + $0xb0] sm:$0xff] %vm225, 0.0
      %249 = vst.msk [vmem:[#allocation2 + $0xb8] sm:$0xff] %vm225, 0.0
      %250 = vst.msk [vmem:[#allocation2 + $0xc0] sm:$0xff] %vm225, 0.0
      %251 = vst.msk [vmem:[#allocation2 + $0xc8] sm:$0xff] %vm225, 0.0
      %252 = vst.msk [vmem:[#allocation2 + $0xd0] sm:$0xff] %vm225, 0.0
      %253 = vst.msk [vmem:[#allocation2 + $0xd8] sm:$0xff] %vm225, 0.0
      %254 = vst.msk [vmem:[#allocation2 + $0xe0] sm:$0xff] %vm225, 0.0
      %255 = vst.msk [vmem:[#allocation2 + $0xe8] sm:$0xff] %vm225, 0.0
      %256 = vst.msk [vmem:[#allocation2 + $0xf0] sm:$0xff] %vm225, 0.0
      %257 = vst.msk [vmem:[#allocation2 + $0xf8] sm:$0xff] %vm225, 0.0
      %258 = vst.msk [vmem:[#allocation2 + $0x100] sm:$0xff] %vm225, 0.0
      %259 = vst.msk [vmem:[#allocation2 + $0x108] sm:$0xff] %vm225, 0.0
      %260 = vst.msk [vmem:[#allocation2 + $0x110] sm:$0xff] %vm225, 0.0
      %261 = vst.msk [vmem:[#allocation2 + $0x118] sm:$0xff] %vm225, 0.0
      %262 = vst.msk [vmem:[#allocation2 + $0x120] sm:$0xff] %vm225, 0.0
      %263 = vst.msk [vmem:[#allocation2 + $0x128] sm:$0xff] %vm225, 0.0
      %264 = vst.msk [vmem:[#allocation2 + $0x130] sm:$0xff] %vm225, 0.0
      %265 = vst.msk [vmem:[#allocation2 + $0x138] sm:$0xff] %vm225, 0.0
      %266 = vst.msk [vmem:[#allocation2 + $0x140] sm:$0xff] %vm225, 0.0
      %267 = vst.msk [vmem:[#allocation2 + $0x148] sm:$0xff] %vm225, 0.0
      %268 = vst.msk [vmem:[#allocation2 + $0x150] sm:$0xff] %vm225, 0.0
      %269 = vst.msk [vmem:[#allocation2 + $0x158] sm:$0xff] %vm225, 0.0
      %270 = vst.msk [vmem:[#allocation2 + $0x160] sm:$0xff] %vm225, 0.0
      %271 = vst.msk [vmem:[#allocation2 + $0x168] sm:$0xff] %vm225, 0.0
      %272 = vst.msk [vmem:[#allocation2 + $0x170] sm:$0xff] %vm225, 0.0
      %273 = vst.msk [vmem:[#allocation2 + $0x178] sm:$0xff] %vm225, 0.0
      %274 = vst.msk [vmem:[#allocation2 + $0x180] sm:$0xff] %vm225, 0.0
      %275 = vst.msk [vmem:[#allocation2 + $0x188] sm:$0xff] %vm225, 0.0
      %276 = vst.msk [vmem:[#allocation2 + $0x190] sm:$0xff] %vm225, 0.0
      %277 = vst.msk [vmem:[#allocation2 + $0x198] sm:$0xff] %vm225, 0.0
      %278 = vst.msk [vmem:[#allocation2 + $0x1a0] sm:$0xff] %vm225, 0.0
      %279 = vst.msk [vmem:[#allocation2 + $0x1a8] sm:$0xff] %vm225, 0.0
      %280 = vst.msk [vmem:[#allocation2 + $0x1b0] sm:$0xff] %vm225, 0.0
      %281 = vst.msk [vmem:[#allocation2 + $0x1b8] sm:$0xff] %vm225, 0.0
      %282 = vst.msk [vmem:[#allocation2 + $0x1c0] sm:$0xff] %vm225, 0.0
      %283 = vst.msk [vmem:[#allocation2 + $0x1c8] sm:$0xff] %vm225, 0.0
      %284 = vst.msk [vmem:[#allocation2 + $0x1d0] sm:$0xff] %vm225, 0.0
      %285 = vst.msk [vmem:[#allocation2 + $0x1d8] sm:$0xff] %vm225, 0.0
      %286 = vst.msk [vmem:[#allocation2 + $0x1e0] sm:$0xff] %vm225, 0.0
      %287 = vst.msk [vmem:[#allocation2 + $0x1e8] sm:$0xff] %vm225, 0.0
      %288 = vst.msk [vmem:[#allocation2 + $0x1f0] sm:$0xff] %vm225, 0.0
      %289 = vst.msk [vmem:[#allocation2 + $0x1f8] sm:$0xff] %vm225, 0.0
      %290 = vst.msk [vmem:[#allocation2 + $0x200] sm:$0xff] %vm225, 0.0
      %291 = vst.msk [vmem:[#allocation2 + $0x208] sm:$0xff] %vm225, 0.0
      %292 = vst.msk [vmem:[#allocation2 + $0x210] sm:$0xff] %vm225, 0.0
      %293 = vst.msk [vmem:[#allocation2 + $0x218] sm:$0xff] %vm225, 0.0
      %294 = vst.msk [vmem:[#allocation2 + $0x220] sm:$0xff] %vm225, 0.0
      %295 = vst.msk [vmem:[#allocation2 + $0x228] sm:$0xff] %vm225, 0.0
      %296 = vst.msk [vmem:[#allocation2 + $0x230] sm:$0xff] %vm225, 0.0
      %297 = vst.msk [vmem:[#allocation2 + $0x238] sm:$0xff] %vm225, 0.0
      %v298 = vld [vmem:[%s219] sm:$0xff]
      %v299 = vld [vmem:[%s219 + $0x8] sm:$0xff]
      %v300 = vld [vmem:[%s219 + $0x10] sm:$0xff]
      %v301 = vld [vmem:[%s219 + $0x18] sm:$0xff]
      %v302 = vld [vmem:[%s219 + $0x20] sm:$0xff]
      %v303 = vld [vmem:[%s219 + $0x28] sm:$0xff]
      %v304 = vld [vmem:[%s219 + $0x30] sm:$0xff]
      %v305 = vld [vmem:[%s219 + $0x38] sm:$0xff]
      %v306 = vld [vmem:[%s219 + $0x40] sm:$0xff]
      %v307 = vld [vmem:[%s219 + $0x48] sm:$0xff]
      %v308 = vld [vmem:[%s219 + $0x50] sm:$0xff]
      %v309 = vld [vmem:[%s219 + $0x58] sm:$0xff]
      %v310 = vld [vmem:[%s219 + $0x60] sm:$0xff]
      %v311 = vld [vmem:[%s219 + $0x68] sm:$0xff]
      %v312 = vld [vmem:[%s219 + $0x70] sm:$0xff]
      %v313 = vld [vmem:[%s219 + $0x78] sm:$0xff]
      %v314 = vld [vmem:[%s219 + $0x80] sm:$0xff]
      %v315 = vld [vmem:[%s219 + $0x88] sm:$0xff]
      %v316 = vld [vmem:[%s219 + $0x90] sm:$0xff]
      %v317 = vld [vmem:[%s219 + $0x98] sm:$0xff]
      %v318 = vld [vmem:[%s219 + $0xa0] sm:$0xff]
      %v319 = vld [vmem:[%s219 + $0xa8] sm:$0xff]
      %v320 = vld [vmem:[%s219 + $0xb0] sm:$0xff]
      %v321 = vld [vmem:[%s219 + $0xb8] sm:$0xff]
      %v322 = vld [vmem:[%s219 + $0xc0] sm:$0xff]
      %v323 = vld [vmem:[%s219 + $0xc8] sm:$0xff]
      %v324 = vld [vmem:[%s219 + $0xd0] sm:$0xff]
      %v325 = vld [vmem:[%s219 + $0xd8] sm:$0xff]
      %v326 = vld [vmem:[%s219 + $0xe0] sm:$0xff]
      %v327 = vld [vmem:[%s219 + $0xe8] sm:$0xff]
      %v328 = vld [vmem:[%s219 + $0xf0] sm:$0xff]
      %v329 = vld [vmem:[%s219 + $0xf8] sm:$0xff]
      %s330 = scalar_lea.vmem [#allocation2], 32
      %331 = vst.msk [vmem:[%s330 + $0x8] sm:$0xff] %vm225, %v298
      %332 = vst.msk [vmem:[%s330 + $0x10] sm:$0xff] %vm225, %v299
      %333 = vst.msk [vmem:[%s330 + $0x28] sm:$0xff] %vm225, %v300
      %334 = vst.msk [vmem:[%s330 + $0x30] sm:$0xff] %vm225, %v301
      %335 = vst.msk [vmem:[%s330 + $0x48] sm:$0xff] %vm225, %v302
      %336 = vst.msk [vmem:[%s330 + $0x50] sm:$0xff] %vm225, %v303
      %337 = vst.msk [vmem:[%s330 + $0x68] sm:$0xff] %vm225, %v304
      %338 = vst.msk [vmem:[%s330 + $0x70] sm:$0xff] %vm225, %v305
      %339 = vst.msk [vmem:[%s330 + $0x88] sm:$0xff] %vm225, %v306
      %340 = vst.msk [vmem:[%s330 + $0x90] sm:$0xff] %vm225, %v307
      %341 = vst.msk [vmem:[%s330 + $0xa8] sm:$0xff] %vm225, %v308
      %342 = vst.msk [vmem:[%s330 + $0xb0] sm:$0xff] %vm225, %v309
      %343 = vst.msk [vmem:[%s330 + $0xc8] sm:$0xff] %vm225, %v310
      %344 = vst.msk [vmem:[%s330 + $0xd0] sm:$0xff] %vm225, %v311
      %345 = vst.msk [vmem:[%s330 + $0xe8] sm:$0xff] %vm225, %v312
      %346 = vst.msk [vmem:[%s330 + $0xf0] sm:$0xff] %vm225, %v313
      %347 = vst.msk [vmem:[%s330 + $0x108] sm:$0xff] %vm225, %v314
      %348 = vst.msk [vmem:[%s330 + $0x110] sm:$0xff] %vm225, %v315
      %349 = vst.msk [vmem:[%s330 + $0x128] sm:$0xff] %vm225, %v316
      %350 = vst.msk [vmem:[%s330 + $0x130] sm:$0xff] %vm225, %v317
      %351 = vst.msk [vmem:[%s330 + $0x148] sm:$0xff] %vm225, %v318
      %352 = vst.msk [vmem:[%s330 + $0x150] sm:$0xff] %vm225, %v319
      %353 = vst.msk [vmem:[%s330 + $0x168] sm:$0xff] %vm225, %v320
      %354 = vst.msk [vmem:[%s330 + $0x170] sm:$0xff] %vm225, %v321
      %355 = vst.msk [vmem:[%s330 + $0x188] sm:$0xff] %vm225, %v322
      %356 = vst.msk [vmem:[%s330 + $0x190] sm:$0xff] %vm225, %v323
      %357 = vst.msk [vmem:[%s330 + $0x1a8] sm:$0xff] %vm225, %v324
      %358 = vst.msk [vmem:[%s330 + $0x1b0] sm:$0xff] %vm225, %v325
      %359 = vst.msk [vmem:[%s330 + $0x1c8] sm:$0xff] %vm225, %v326
      %360 = vst.msk [vmem:[%s330 + $0x1d0] sm:$0xff] %vm225, %v327
      %361 = vst.msk [vmem:[%s330 + $0x1e8] sm:$0xff] %vm225, %v328
      %362 = vst.msk [vmem:[%s330 + $0x1f0] sm:$0xff] %vm225, %v329
      %v363 = vld [vmem:[%s1] sm:$0xf]
      %v364 = vld [vmem:[%s2] sm:$0x1]
      %v365 = vld [vmem:[#allocation2] sm:$0xff]
      %v366 = vld [vmem:[#allocation2 + $0x8] sm:$0xff]
      %v367 = vld [vmem:[#allocation2 + $0x10] sm:$0xff]
      %v368 = vld [vmem:[#allocation2 + $0x18] sm:$0xff]
      %v369 = vld [vmem:[#allocation2 + $0x20] sm:$0xff]
      %v370 = vld [vmem:[#allocation2 + $0x28] sm:$0xff]
      %v371 = vld [vmem:[#allocation2 + $0x30] sm:$0xff]
      %v372 = vld [vmem:[#allocation2 + $0x38] sm:$0xff]
      %v373 = vld [vmem:[#allocation2 + $0x40] sm:$0xff]
      %v374 = vld [vmem:[#allocation2 + $0x48] sm:$0xff]
      %v375 = vld [vmem:[#allocation2 + $0x50] sm:$0xff]
      %v376 = vld [vmem:[#allocation2 + $0x58] sm:$0xff]
      %v377 = vld [vmem:[#allocation2 + $0x60] sm:$0xff]
      %v378 = vld [vmem:[#allocation2 + $0x68] sm:$0xff]
      %v379 = vld [vmem:[#allocation2 + $0x70] sm:$0xff]
      %v380 = vld [vmem:[#allocation2 + $0x78] sm:$0xff]
      %v381 = vld [vmem:[#allocation2 + $0x80] sm:$0xff]
      %v382 = vld [vmem:[#allocation2 + $0x88] sm:$0xff]
      %v383 = vld [vmem:[#allocation2 + $0x90] sm:$0xff]
      %v384 = vld [vmem:[#allocation2 + $0x98] sm:$0xff]
      %v385 = vld [vmem:[#allocation2 + $0xa0] sm:$0xff]
      %v386 = vld [vmem:[#allocation2 + $0xa8] sm:$0xff]
      %v387 = vld [vmem:[#allocation2 + $0xb0] sm:$0xff]
      %v388 = vld [vmem:[#allocation2 + $0xb8] sm:$0xff]
      %v389 = vld [vmem:[#allocation2 + $0xc0] sm:$0xff]
      %v390 = vld [vmem:[#allocation2 + $0xc8] sm:$0xff]
      %v391 = vld [vmem:[#allocation2 + $0xd0] sm:$0xff]
      %v392 = vld [vmem:[#allocation2 + $0xd8] sm:$0xff]
      %v393 = vld [vmem:[#allocation2 + $0xe0] sm:$0xff]
      %v394 = vld [vmem:[#allocation2 + $0xe8] sm:$0xff]
      %v395 = vld [vmem:[#allocation2 + $0xf0] sm:$0xff]
      %v396 = vld [vmem:[#allocation2 + $0xf8] sm:$0xff]
      %v397 = vld [vmem:[#allocation2 + $0x100] sm:$0xff]
      %v398 = vld [vmem:[#allocation2 + $0x108] sm:$0xff]
      %v399 = vld [vmem:[#allocation2 + $0x110] sm:$0xff]
      %v400 = vld [vmem:[#allocation2 + $0x118] sm:$0xff]
      %v401 = vld [vmem:[#allocation2 + $0x120] sm:$0xff]
      %v402 = vld [vmem:[#allocation2 + $0x128] sm:$0xff]
      %v403 = vld [vmem:[#allocation2 + $0x130] sm:$0xff]
      %v404 = vld [vmem:[#allocation2 + $0x138] sm:$0xff]
      %v405 = vld [vmem:[#allocation2 + $0x140] sm:$0xff]
      %v406 = vld [vmem:[#allocation2 + $0x148] sm:$0xff]
      %v407 = vld [vmem:[#allocation2 + $0x150] sm:$0xff]
      %v408 = vld [vmem:[#allocation2 + $0x158] sm:$0xff]
      %v409 = vld [vmem:[#allocation2 + $0x160] sm:$0xff]
      %v410 = vld [vmem:[#allocation2 + $0x168] sm:$0xff]
      %v411 = vld [vmem:[#allocation2 + $0x170] sm:$0xff]
      %v412 = vld [vmem:[#allocation2 + $0x178] sm:$0xff]
      %v413 = vld [vmem:[#allocation2 + $0x180] sm:$0xff]
      %v414 = vld [vmem:[#allocation2 + $0x188] sm:$0xff]
      %v415 = vld [vmem:[#allocation2 + $0x190] sm:$0xff]
      %v416 = vld [vmem:[#allocation2 + $0x198] sm:$0xff]
      %v417 = vld [vmem:[#allocation2 + $0x1a0] sm:$0xff]
      %v418 = vld [vmem:[#allocation2 + $0x1a8] sm:$0xff]
      %v419 = vld [vmem:[#allocation2 + $0x1b0] sm:$0xff]
      %v420 = vld [vmem:[#allocation2 + $0x1b8] sm:$0xff]
      %v421 = vld [vmem:[#allocation2 + $0x1c0] sm:$0xff]
      %v422 = vld [vmem:[#allocation2 + $0x1c8] sm:$0xff]
      %v423 = vld [vmem:[#allocation2 + $0x1d0] sm:$0xff]
      %v424 = vld [vmem:[#allocation2 + $0x1d8] sm:$0xff]
      %v425 = vld [vmem:[#allocation2 + $0x1e0] sm:$0xff]
      %v426 = vld [vmem:[#allocation2 + $0x1e8] sm:$0xff]
      %v427 = vld [vmem:[#allocation2 + $0x1f0] sm:$0xff]
      %v428 = vld [vmem:[#allocation2 + $0x1f8] sm:$0xff]
      %v429 = vld [vmem:[#allocation2 + $0x200] sm:$0xff]
      %v430 = vld [vmem:[#allocation2 + $0x208] sm:$0xff]
      %v431 = vld [vmem:[#allocation2 + $0x210] sm:$0xff]
      %v432 = vld [vmem:[#allocation2 + $0x218] sm:$0xff]
      %v433 = vld [vmem:[#allocation2 + $0x220] sm:$0xff]
      %v434 = vld [vmem:[#allocation2 + $0x228] sm:$0xff]
      %v435 = vld [vmem:[#allocation2 + $0x230] sm:$0xff]
      %v436 = vld [vmem:[#allocation2 + $0x238] sm:$0xff]
      %v438 = vsel %vm225, %v365, 0
      %v441 = vsel %vm225, %v366, 0
      %v444 = vsel %vm225, %v367, 0
      %v447 = vsel %vm225, %v368, 0
      %v450 = vsel %vm225, %v369, 0
      %v453 = vsel %vm225, %v370, 0
      %v456 = vsel %vm225, %v371, 0
      %v459 = vsel %vm225, %v372, 0
      %v462 = vsel %vm225, %v373, 0
      %v465 = vsel %vm225, %v374, 0
      %v468 = vsel %vm225, %v375, 0
      %v471 = vsel %vm225, %v376, 0
      %v474 = vsel %vm225, %v377, 0
      %v477 = vsel %vm225, %v378, 0
      %v480 = vsel %vm225, %v379, 0
      %v483 = vsel %vm225, %v380, 0
      %v486 = vsel %vm225, %v381, 0
      %v489 = vsel %vm225, %v382, 0
      %v492 = vsel %vm225, %v383, 0
      %v495 = vsel %vm225, %v384, 0
      %v498 = vsel %vm225, %v385, 0
      %v501 = vsel %vm225, %v386, 0
      %v504 = vsel %vm225, %v387, 0
      %v507 = vsel %vm225, %v388, 0
      %v510 = vsel %vm225, %v389, 0
      %v513 = vsel %vm225, %v390, 0
      %v516 = vsel %vm225, %v391, 0
      %v519 = vsel %vm225, %v392, 0
      %v522 = vsel %vm225, %v393, 0
      %v525 = vsel %vm225, %v394, 0
      %v528 = vsel %vm225, %v395, 0
      %v531 = vsel %vm225, %v396, 0
      %v534 = vsel %vm225, %v397, 0
      %v537 = vsel %vm225, %v398, 0
      %v540 = vsel %vm225, %v399, 0
      %v543 = vsel %vm225, %v400, 0
      %v546 = vsel %vm225, %v401, 0
      %v549 = vsel %vm225, %v402, 0
      %v552 = vsel %vm225, %v403, 0
      %v555 = vsel %vm225, %v404, 0
      %v558 = vsel %vm225, %v405, 0
      %v561 = vsel %vm225, %v406, 0
      %v564 = vsel %vm225, %v407, 0
      %v567 = vsel %vm225, %v408, 0
      %v570 = vsel %vm225, %v409, 0
      %v573 = vsel %vm225, %v410, 0
      %v576 = vsel %vm225, %v411, 0
      %v579 = vsel %vm225, %v412, 0
      %v582 = vsel %vm225, %v413, 0
      %v585 = vsel %vm225, %v414, 0
      %v588 = vsel %vm225, %v415, 0
      %v591 = vsel %vm225, %v416, 0
      %v594 = vsel %vm225, %v417, 0
      %v597 = vsel %vm225, %v418, 0
      %v600 = vsel %vm225, %v419, 0
      %v603 = vsel %vm225, %v420, 0
      %v606 = vsel %vm225, %v421, 0
      %v609 = vsel %vm225, %v422, 0
      %v612 = vsel %vm225, %v423, 0
      %v615 = vsel %vm225, %v424, 0
      %v618 = vsel %vm225, %v425, 0
      %v621 = vsel %vm225, %v426, 0
      %v624 = vsel %vm225, %v427, 0
      %v627 = vsel %vm225, %v428, 0
      %v630 = vsel %vm225, %v429, 0
      %v633 = vsel %vm225, %v430, 0
      %v636 = vsel %vm225, %v431, 0
      %v639 = vsel %vm225, %v432, 0
      %v642 = vsel %vm225, %v433, 0
      %v645 = vsel %vm225, %v434, 0
      %v648 = vsel %vm225, %v435, 0
      %v651 = vsel %vm225, %v436, 0
      %vm653 = vcmask 1043456
      %v655 = vsel %vm653, %v363, 0
      %657 = vmatprep.subr.mxu0 0.0
      %658 = vmatpush1.msra.mxu0 %v655
      %659 = vmatprep.subr.mxu0 0.0
      %660 = vmatpush1.msra.mxu0 0.0
      %661 = vmatprep.subr.mxu0 0.0
      %662 = vmatpush1.msra.mxu0 0.0
      %663 = vmatprep.subr.mxu0 0.0
      %664 = vmatpush1.msra.mxu0 0.0
      %665 = vmatprep.subr.mxu0 0.0
      %666 = vmatpush1.msra.mxu0 0.0
      %667 = vmatprep.subr.mxu0 0.0
      %668 = vmatpush1.msra.mxu0 0.0
      %669 = vmatprep.subr.mxu0 0.0
      %670 = vmatpush1.msra.mxu0 0.0
      %671 = vmatprep.subr.mxu0 0.0
      %672 = vmatpush1.msra.mxu0 0.0
      %673 = vmatprep.subr.mxu0 0.0
      %674 = vmatpush1.msra.mxu0 0.0
      %675 = vmatprep.subr.mxu0 0.0
      %676 = vmatpush1.msra.mxu0 0.0
      %677 = vmatprep.subr.mxu0 0.0
      %678 = vmatpush1.msra.mxu0 0.0
      %679 = vmatprep.subr.mxu0 0.0
      %680 = vmatpush1.msra.mxu0 0.0
      %681 = vmatprep.subr.mxu0 0.0
      %682 = vmatpush1.msra.mxu0 0.0
      %683 = vmatprep.subr.mxu0 0.0
      %684 = vmatpush1.msra.mxu0 0.0
      %685 = vmatprep.subr.mxu0 0.0
      %686 = vmatpush1.msra.mxu0 0.0
      %687 = vmatprep.subr.mxu0 0.0
      %688 = vmatpush1.msra.mxu0 0.0
      %689 = vmatprep.subr.mxu0 0.0
      %690 = vmatpush1.msra.mxu0 0.0
      %691 = vmatprep.subr.mxu0 0.0
      %692 = vmatpush1.msra.mxu0 0.0
      %693 = vmatprep.subr.mxu0 0.0
      %694 = vmatpush1.msra.mxu0 0.0
      %695 = vmatprep.subr.mxu0 0.0
      %696 = vmatpush1.msra.mxu0 0.0
      %697 = vmatprep.subr.mxu0 0.0
      %698 = vmatpush1.msra.mxu0 0.0
      %699 = vmatprep.subr.mxu0 0.0
      %700 = vmatpush1.msra.mxu0 0.0
      %701 = vmatprep.subr.mxu0 0.0
      %702 = vmatpush1.msra.mxu0 0.0
      %703 = vmatprep.subr.mxu0 0.0
      %704 = vmatpush1.msra.mxu0 0.0
      %705 = vmatprep.subr.mxu0 0.0
      %706 = vmatpush1.msra.mxu0 0.0
      %707 = vmatprep.subr.mxu0 0.0
      %708 = vmatpush1.msra.mxu0 0.0
      %709 = vmatprep.subr.mxu0 0.0
      %710 = vmatpush1.msra.mxu0 0.0
      %711 = vmatprep.subr.mxu0 0.0
      %712 = vmatpush1.msra.mxu0 0.0
      %713 = vmatprep.subr.mxu0 0.0
      %714 = vmatpush1.msra.mxu0 0.0
      %715 = vmatprep.subr.mxu0 0.0
      %716 = vmatpush1.msra.mxu0 0.0
      %717 = vmatprep.subr.mxu0 0.0
      %718 = vmatpush1.msra.mxu0 0.0
      %719 = vmatprep.subr.mxu0 0.0
      %720 = vmatpush1.msra.mxu0 0.0
      %721 = vmatprep.mubr.f32.mxu0 0.0
      %722 = vmatmul.mubr.f32.gmra.mrb[0].mxu0 %v438
      %v723 = vpop.f32.mrb[0].mxu0
      %v724 = vadd.f32 0.0, %v723
      %v725 = vpop.f32.mrb[0].mxu0
      %726 = vmatprep.mubr.f32.mxu0 0.0
      %727 = vmatmul.mubr.f32.gmra.mrb[0].mxu0 %v441
      %v728 = vpop.f32.mrb[0].mxu0
      %v729 = vadd.f32 0.0, %v728
      %v730 = vpop.f32.mrb[0].mxu0
      %731 = vmatprep.mubr.f32.mxu0 0.0
      %732 = vmatmul.mubr.f32.gmra.mrb[0].mxu0 %v444
      %v733 = vpop.f32.mrb[0].mxu0
      %v734 = vadd.f32 0.0, %v733
      %v735 = vpop.f32.mrb[0].mxu0
      %736 = vmatprep.mubr.f32.mxu0 0.0
      %737 = vmatmul.mubr.f32.gmra.mrb[0].mxu0 %v447
      %v738 = vpop.f32.mrb[0].mxu0
      %v739 = vadd.f32 0.0, %v738
      %v740 = vpop.f32.mrb[0].mxu0
      %741 = vmatprep.mubr.f32.mxu0 0.0
      %742 = vmatmul.mubr.f32.gmra.mrb[0].mxu0 %v450
      %v743 = vpop.f32.mrb[0].mxu0
      %v744 = vadd.f32 0.0, %v743
      %v745 = vpop.f32.mrb[0].mxu0
      %746 = vmatprep.mubr.f32.mxu0 0.0
      %747 = vmatmul.mubr.f32.gmra.mrb[0].mxu0 %v453
      %v748 = vpop.f32.mrb[0].mxu0
      %v749 = vadd.f32 0.0, %v748
      %v750 = vpop.f32.mrb[0].mxu0
      %751 = vmatprep.mubr.f32.mxu0 0.0
      %752 = vmatmul.mubr.f32.gmra.mrb[0].mxu0 %v456
      %v753 = vpop.f32.mrb[0].mxu0
      %v754 = vadd.f32 0.0, %v753
      %v755 = vpop.f32.mrb[0].mxu0
      %756 = vmatprep.mubr.f32.mxu0 0.0
      %757 = vmatmul.mubr.f32.gmra.mrb[0].mxu0 %v459
      %v758 = vpop.f32.mrb[0].mxu0
      %v759 = vadd.f32 0.0, %v758
      %v760 = vpop.f32.mrb[0].mxu0
      %761 = vmatprep.mubr.f32.mxu0 0.0
      %762 = vmatmul.mubr.f32.gmra.mrb[0].mxu0 %v462
      %v763 = vpop.f32.mrb[0].mxu0
      %v764 = vadd.f32 0.0, %v763
      %v765 = vpop.f32.mrb[0].mxu0
      %766 = vmatprep.mubr.f32.mxu0 0.0
      %767 = vmatmul.mubr.f32.gmra.mrb[0].mxu0 %v465
      %v768 = vpop.f32.mrb[0].mxu0
      %v769 = vadd.f32 0.0, %v768
      %v770 = vpop.f32.mrb[0].mxu0
      %771 = vmatprep.mubr.f32.mxu0 0.0
      %772 = vmatmul.mubr.f32.gmra.mrb[0].mxu0 %v468
      %v773 = vpop.f32.mrb[0].mxu0
      %v774 = vadd.f32 0.0, %v773
      %v775 = vpop.f32.mrb[0].mxu0
      %776 = vmatprep.mubr.f32.mxu0 0.0
      %777 = vmatmul.mubr.f32.gmra.mrb[0].mxu0 %v471
      %v778 = vpop.f32.mrb[0].mxu0
      %v779 = vadd.f32 0.0, %v778
      %v780 = vpop.f32.mrb[0].mxu0
      %781 = vmatprep.mubr.f32.mxu0 0.0
      %782 = vmatmul.mubr.f32.gmra.mrb[0].mxu0 %v474
      %v783 = vpop.f32.mrb[0].mxu0
      %v784 = vadd.f32 0.0, %v783
      %v785 = vpop.f32.mrb[0].mxu0
      %786 = vmatprep.mubr.f32.mxu0 0.0
      %787 = vmatmul.mubr.f32.gmra.mrb[0].mxu0 %v477
      %v788 = vpop.f32.mrb[0].mxu0
      %v789 = vadd.f32 0.0, %v788
      %v790 = vpop.f32.mrb[0].mxu0
      %791 = vmatprep.mubr.f32.mxu0 0.0
      %792 = vmatmul.mubr.f32.gmra.mrb[0].mxu0 %v480
      %v793 = vpop.f32.mrb[0].mxu0
      %v794 = vadd.f32 0.0, %v793
      %v795 = vpop.f32.mrb[0].mxu0
      %796 = vmatprep.mubr.f32.mxu0 0.0
      %797 = vmatmul.mubr.f32.gmra.mrb[0].mxu0 %v483
      %v798 = vpop.f32.mrb[0].mxu0
      %v799 = vadd.f32 0.0, %v798
      %v800 = vpop.f32.mrb[0].mxu0
      %801 = vmatprep.mubr.f32.mxu0 0.0
      %802 = vmatmul.mubr.f32.gmra.mrb[0].mxu0 %v486
      %v803 = vpop.f32.mrb[0].mxu0
      %v804 = vadd.f32 0.0, %v803
      %v805 = vpop.f32.mrb[0].mxu0
      %806 = vmatprep.mubr.f32.mxu0 0.0
      %807 = vmatmul.mubr.f32.gmra.mrb[0].mxu0 %v489
      %v808 = vpop.f32.mrb[0].mxu0
      %v809 = vadd.f32 0.0, %v808
      %v810 = vpop.f32.mrb[0].mxu0
      %811 = vmatprep.mubr.f32.mxu0 0.0
      %812 = vmatmul.mubr.f32.gmra.mrb[0].mxu0 %v492
      %v813 = vpop.f32.mrb[0].mxu0
      %v814 = vadd.f32 0.0, %v813
      %v815 = vpop.f32.mrb[0].mxu0
      %816 = vmatprep.mubr.f32.mxu0 0.0
      %817 = vmatmul.mubr.f32.gmra.mrb[0].mxu0 %v495
      %v818 = vpop.f32.mrb[0].mxu0
      %v819 = vadd.f32 0.0, %v818
      %v820 = vpop.f32.mrb[0].mxu0
      %821 = vmatprep.mubr.f32.mxu0 0.0
      %822 = vmatmul.mubr.f32.gmra.mrb[0].mxu0 %v498
      %v823 = vpop.f32.mrb[0].mxu0
      %v824 = vadd.f32 0.0, %v823
      %v825 = vpop.f32.mrb[0].mxu0
      %826 = vmatprep.mubr.f32.mxu0 0.0
      %827 = vmatmul.mubr.f32.gmra.mrb[0].mxu0 %v501
      %v828 = vpop.f32.mrb[0].mxu0
      %v829 = vadd.f32 0.0, %v828
      %v830 = vpop.f32.mrb[0].mxu0
      %831 = vmatprep.mubr.f32.mxu0 0.0
      %832 = vmatmul.mubr.f32.gmra.mrb[0].mxu0 %v504
      %v833 = vpop.f32.mrb[0].mxu0
      %v834 = vadd.f32 0.0, %v833
      %v835 = vpop.f32.mrb[0].mxu0
      %836 = vmatprep.mubr.f32.mxu0 0.0
      %837 = vmatmul.mubr.f32.gmra.mrb[0].mxu0 %v507
      %v838 = vpop.f32.mrb[0].mxu0
      %v839 = vadd.f32 0.0, %v838
      %v840 = vpop.f32.mrb[0].mxu0
      %841 = vmatprep.mubr.f32.mxu0 0.0
      %842 = vmatmul.mubr.f32.gmra.mrb[0].mxu0 %v510
      %v843 = vpop.f32.mrb[0].mxu0
      %v844 = vadd.f32 0.0, %v843
      %v845 = vpop.f32.mrb[0].mxu0
      %846 = vmatprep.mubr.f32.mxu0 0.0
      %847 = vmatmul.mubr.f32.gmra.mrb[0].mxu0 %v513
      %v848 = vpop.f32.mrb[0].mxu0
      %v849 = vadd.f32 0.0, %v848
      %v850 = vpop.f32.mrb[0].mxu0
      %851 = vmatprep.mubr.f32.mxu0 0.0
      %852 = vmatmul.mubr.f32.gmra.mrb[0].mxu0 %v516
      %v853 = vpop.f32.mrb[0].mxu0
      %v854 = vadd.f32 0.0, %v853
      %v855 = vpop.f32.mrb[0].mxu0
      %856 = vmatprep.mubr.f32.mxu0 0.0
      %857 = vmatmul.mubr.f32.gmra.mrb[0].mxu0 %v519
      %v858 = vpop.f32.mrb[0].mxu0
      %v859 = vadd.f32 0.0, %v858
      %v860 = vpop.f32.mrb[0].mxu0
      %861 = vmatprep.mubr.f32.mxu0 0.0
      %862 = vmatmul.mubr.f32.gmra.mrb[0].mxu0 %v522
      %v863 = vpop.f32.mrb[0].mxu0
      %v864 = vadd.f32 0.0, %v863
      %v865 = vpop.f32.mrb[0].mxu0
      %866 = vmatprep.mubr.f32.mxu0 0.0
      %867 = vmatmul.mubr.f32.gmra.mrb[0].mxu0 %v525
      %v868 = vpop.f32.mrb[0].mxu0
      %v869 = vadd.f32 0.0, %v868
      %v870 = vpop.f32.mrb[0].mxu0
      %871 = vmatprep.mubr.f32.mxu0 0.0
      %872 = vmatmul.mubr.f32.gmra.mrb[0].mxu0 %v528
      %v873 = vpop.f32.mrb[0].mxu0
      %v874 = vadd.f32 0.0, %v873
      %v875 = vpop.f32.mrb[0].mxu0
      %876 = vmatprep.mubr.f32.mxu0 0.0
      %877 = vmatmul.mubr.f32.gmra.mrb[0].mxu0 %v531
      %v878 = vpop.f32.mrb[0].mxu0
      %v879 = vadd.f32 0.0, %v878
      %v880 = vpop.f32.mrb[0].mxu0
      %881 = vmatprep.mubr.f32.mxu0 0.0
      %882 = vmatmul.mubr.f32.gmra.mrb[0].mxu0 %v534
      %v883 = vpop.f32.mrb[0].mxu0
      %v884 = vadd.f32 0.0, %v883
      %v885 = vpop.f32.mrb[0].mxu0
      %886 = vmatprep.mubr.f32.mxu0 0.0
      %887 = vmatmul.mubr.f32.gmra.mrb[0].mxu0 %v537
      %v888 = vpop.f32.mrb[0].mxu0
      %v889 = vadd.f32 0.0, %v888
      %v890 = vpop.f32.mrb[0].mxu0
      %891 = vmatprep.mubr.f32.mxu0 0.0
      %892 = vmatmul.mubr.f32.gmra.mrb[0].mxu0 %v540
      %v893 = vpop.f32.mrb[0].mxu0
      %v894 = vadd.f32 0.0, %v893
      %v895 = vpop.f32.mrb[0].mxu0
      %896 = vmatprep.mubr.f32.mxu0 0.0
      %897 = vmatmul.mubr.f32.gmra.mrb[0].mxu0 %v543
      %v898 = vpop.f32.mrb[0].mxu0
      %v899 = vadd.f32 0.0, %v898
      %v900 = vpop.f32.mrb[0].mxu0
      %901 = vmatprep.mubr.f32.mxu0 0.0
      %902 = vmatmul.mubr.f32.gmra.mrb[0].mxu0 %v546
      %v903 = vpop.f32.mrb[0].mxu0
      %v904 = vadd.f32 0.0, %v903
      %v905 = vpop.f32.mrb[0].mxu0
      %906 = vmatprep.mubr.f32.mxu0 0.0
      %907 = vmatmul.mubr.f32.gmra.mrb[0].mxu0 %v549
      %v908 = vpop.f32.mrb[0].mxu0
      %v909 = vadd.f32 0.0, %v908
      %v910 = vpop.f32.mrb[0].mxu0
      %911 = vmatprep.mubr.f32.mxu0 0.0
      %912 = vmatmul.mubr.f32.gmra.mrb[0].mxu0 %v552
      %v913 = vpop.f32.mrb[0].mxu0
      %v914 = vadd.f32 0.0, %v913
      %v915 = vpop.f32.mrb[0].mxu0
      %916 = vmatprep.mubr.f32.mxu0 0.0
      %917 = vmatmul.mubr.f32.gmra.mrb[0].mxu0 %v555
      %v918 = vpop.f32.mrb[0].mxu0
      %v919 = vadd.f32 0.0, %v918
      %v920 = vpop.f32.mrb[0].mxu0
      %921 = vmatprep.mubr.f32.mxu0 0.0
      %922 = vmatmul.mubr.f32.gmra.mrb[0].mxu0 %v558
      %v923 = vpop.f32.mrb[0].mxu0
      %v924 = vadd.f32 0.0, %v923
      %v925 = vpop.f32.mrb[0].mxu0
      %926 = vmatprep.mubr.f32.mxu0 0.0
      %927 = vmatmul.mubr.f32.gmra.mrb[0].mxu0 %v561
      %v928 = vpop.f32.mrb[0].mxu0
      %v929 = vadd.f32 0.0, %v928
      %v930 = vpop.f32.mrb[0].mxu0
      %931 = vmatprep.mubr.f32.mxu0 0.0
      %932 = vmatmul.mubr.f32.gmra.mrb[0].mxu0 %v564
      %v933 = vpop.f32.mrb[0].mxu0
      %v934 = vadd.f32 0.0, %v933
      %v935 = vpop.f32.mrb[0].mxu0
      %936 = vmatprep.mubr.f32.mxu0 0.0
      %937 = vmatmul.mubr.f32.gmra.mrb[0].mxu0 %v567
      %v938 = vpop.f32.mrb[0].mxu0
      %v939 = vadd.f32 0.0, %v938
      %v940 = vpop.f32.mrb[0].mxu0
      %941 = vmatprep.mubr.f32.mxu0 0.0
      %942 = vmatmul.mubr.f32.gmra.mrb[0].mxu0 %v570
      %v943 = vpop.f32.mrb[0].mxu0
      %v944 = vadd.f32 0.0, %v943
      %v945 = vpop.f32.mrb[0].mxu0
      %946 = vmatprep.mubr.f32.mxu0 0.0
      %947 = vmatmul.mubr.f32.gmra.mrb[0].mxu0 %v573
      %v948 = vpop.f32.mrb[0].mxu0
      %v949 = vadd.f32 0.0, %v948
      %v950 = vpop.f32.mrb[0].mxu0
      %951 = vmatprep.mubr.f32.mxu0 0.0
      %952 = vmatmul.mubr.f32.gmra.mrb[0].mxu0 %v576
      %v953 = vpop.f32.mrb[0].mxu0
      %v954 = vadd.f32 0.0, %v953
      %v955 = vpop.f32.mrb[0].mxu0
      %956 = vmatprep.mubr.f32.mxu0 0.0
      %957 = vmatmul.mubr.f32.gmra.mrb[0].mxu0 %v579
      %v958 = vpop.f32.mrb[0].mxu0
      %v959 = vadd.f32 0.0, %v958
      %v960 = vpop.f32.mrb[0].mxu0
      %961 = vmatprep.mubr.f32.mxu0 0.0
      %962 = vmatmul.mubr.f32.gmra.mrb[0].mxu0 %v582
      %v963 = vpop.f32.mrb[0].mxu0
      %v964 = vadd.f32 0.0, %v963
      %v965 = vpop.f32.mrb[0].mxu0
      %966 = vmatprep.mubr.f32.mxu0 0.0
      %967 = vmatmul.mubr.f32.gmra.mrb[0].mxu0 %v585
      %v968 = vpop.f32.mrb[0].mxu0
      %v969 = vadd.f32 0.0, %v968
      %v970 = vpop.f32.mrb[0].mxu0
      %971 = vmatprep.mubr.f32.mxu0 0.0
      %972 = vmatmul.mubr.f32.gmra.mrb[0].mxu0 %v588
      %v973 = vpop.f32.mrb[0].mxu0
      %v974 = vadd.f32 0.0, %v973
      %v975 = vpop.f32.mrb[0].mxu0
      %976 = vmatprep.mubr.f32.mxu0 0.0
      %977 = vmatmul.mubr.f32.gmra.mrb[0].mxu0 %v591
      %v978 = vpop.f32.mrb[0].mxu0
      %v979 = vadd.f32 0.0, %v978
      %v980 = vpop.f32.mrb[0].mxu0
      %981 = vmatprep.mubr.f32.mxu0 0.0
      %982 = vmatmul.mubr.f32.gmra.mrb[0].mxu0 %v594
      %v983 = vpop.f32.mrb[0].mxu0
      %v984 = vadd.f32 0.0, %v983
      %v985 = vpop.f32.mrb[0].mxu0
      %986 = vmatprep.mubr.f32.mxu0 0.0
      %987 = vmatmul.mubr.f32.gmra.mrb[0].mxu0 %v597
      %v988 = vpop.f32.mrb[0].mxu0
      %v989 = vadd.f32 0.0, %v988
      %v990 = vpop.f32.mrb[0].mxu0
      %991 = vmatprep.mubr.f32.mxu0 0.0
      %992 = vmatmul.mubr.f32.gmra.mrb[0].mxu0 %v600
      %v993 = vpop.f32.mrb[0].mxu0
      %v994 = vadd.f32 0.0, %v993
      %v995 = vpop.f32.mrb[0].mxu0
      %996 = vmatprep.mubr.f32.mxu0 0.0
      %997 = vmatmul.mubr.f32.gmra.mrb[0].mxu0 %v603
      %v998 = vpop.f32.mrb[0].mxu0
      %v999 = vadd.f32 0.0, %v998
      %v1000 = vpop.f32.mrb[0].mxu0
      %1001 = vmatprep.mubr.f32.mxu0 0.0
      %1002 = vmatmul.mubr.f32.gmra.mrb[0].mxu0 %v606
      %v1003 = vpop.f32.mrb[0].mxu0
      %v1004 = vadd.f32 0.0, %v1003
      %v1005 = vpop.f32.mrb[0].mxu0
      %1006 = vmatprep.mubr.f32.mxu0 0.0
      %1007 = vmatmul.mubr.f32.gmra.mrb[0].mxu0 %v609
      %v1008 = vpop.f32.mrb[0].mxu0
      %v1009 = vadd.f32 0.0, %v1008
      %v1010 = vpop.f32.mrb[0].mxu0
      %1011 = vmatprep.mubr.f32.mxu0 0.0
      %1012 = vmatmul.mubr.f32.gmra.mrb[0].mxu0 %v612
      %v1013 = vpop.f32.mrb[0].mxu0
      %v1014 = vadd.f32 0.0, %v1013
      %v1015 = vpop.f32.mrb[0].mxu0
      %1016 = vmatprep.mubr.f32.mxu0 0.0
      %1017 = vmatmul.mubr.f32.gmra.mrb[0].mxu0 %v615
      %v1018 = vpop.f32.mrb[0].mxu0
      %v1019 = vadd.f32 0.0, %v1018
      %v1020 = vpop.f32.mrb[0].mxu0
      %1021 = vmatprep.mubr.f32.mxu0 0.0
      %1022 = vmatmul.mubr.f32.gmra.mrb[0].mxu0 %v618
      %v1023 = vpop.f32.mrb[0].mxu0
      %v1024 = vadd.f32 0.0, %v1023
      %v1025 = vpop.f32.mrb[0].mxu0
      %1026 = vmatprep.mubr.f32.mxu0 0.0
      %1027 = vmatmul.mubr.f32.gmra.mrb[0].mxu0 %v621
      %v1028 = vpop.f32.mrb[0].mxu0
      %v1029 = vadd.f32 0.0, %v1028
      %v1030 = vpop.f32.mrb[0].mxu0
      %1031 = vmatprep.mubr.f32.mxu0 0.0
      %1032 = vmatmul.mubr.f32.gmra.mrb[0].mxu0 %v624
      %v1033 = vpop.f32.mrb[0].mxu0
      %v1034 = vadd.f32 0.0, %v1033
      %v1035 = vpop.f32.mrb[0].mxu0
      %1036 = vmatprep.mubr.f32.mxu0 0.0
      %1037 = vmatmul.mubr.f32.gmra.mrb[0].mxu0 %v627
      %v1038 = vpop.f32.mrb[0].mxu0
      %v1039 = vadd.f32 0.0, %v1038
      %v1040 = vpop.f32.mrb[0].mxu0
      %1041 = vmatprep.mubr.f32.mxu0 0.0
      %1042 = vmatmul.mubr.f32.gmra.mrb[0].mxu0 %v630
      %v1043 = vpop.f32.mrb[0].mxu0
      %v1044 = vadd.f32 0.0, %v1043
      %v1045 = vpop.f32.mrb[0].mxu0
      %1046 = vmatprep.mubr.f32.mxu0 0.0
      %1047 = vmatmul.mubr.f32.gmra.mrb[0].mxu0 %v633
      %v1048 = vpop.f32.mrb[0].mxu0
      %v1049 = vadd.f32 0.0, %v1048
      %v1050 = vpop.f32.mrb[0].mxu0
      %1051 = vmatprep.mubr.f32.mxu0 0.0
      %1052 = vmatmul.mubr.f32.gmra.mrb[0].mxu0 %v636
      %v1053 = vpop.f32.mrb[0].mxu0
      %v1054 = vadd.f32 0.0, %v1053
      %v1055 = vpop.f32.mrb[0].mxu0
      %1056 = vmatprep.mubr.f32.mxu0 0.0
      %1057 = vmatmul.mubr.f32.gmra.mrb[0].mxu0 %v639
      %v1058 = vpop.f32.mrb[0].mxu0
      %v1059 = vadd.f32 0.0, %v1058
      %v1060 = vpop.f32.mrb[0].mxu0
      %1061 = vmatprep.mubr.f32.mxu0 0.0
      %1062 = vmatmul.mubr.f32.gmra.mrb[0].mxu0 %v642
      %v1063 = vpop.f32.mrb[0].mxu0
      %v1064 = vadd.f32 0.0, %v1063
      %v1065 = vpop.f32.mrb[0].mxu0
      %1066 = vmatprep.mubr.f32.mxu0 0.0
      %1067 = vmatmul.mubr.f32.gmra.mrb[0].mxu0 %v645
      %v1068 = vpop.f32.mrb[0].mxu0
      %v1069 = vadd.f32 0.0, %v1068
      %v1070 = vpop.f32.mrb[0].mxu0
      %1071 = vmatprep.mubr.f32.mxu0 0.0
      %1072 = vmatmul.mubr.f32.gmra.mrb[0].mxu0 %v648
      %v1073 = vpop.f32.mrb[0].mxu0
      %v1074 = vadd.f32 0.0, %v1073
      %v1075 = vpop.f32.mrb[0].mxu0
      %1076 = vmatprep.mubr.f32.mxu0 0.0
      %1077 = vmatmul.mubr.f32.gmra.mrb[0].mxu0 %v651
      %v1078 = vpop.f32.mrb[0].mxu0
      %v1079 = vadd.f32 0.0, %v1078
      %v1080 = vpop.f32.mrb[0].mxu0
      %1081 = vdwg.mxu0
      %vm1114 = vcmask 1046528
      %v1115 = vrot.slane %v729, 1
      %v1116 = vrot.slane %v734, 1
      %v1117 = vsel %vm1114, %v1115, %v1116
      %v1118 = vrot.slane %v749, 1
      %v1119 = vrot.slane %v754, 1
      %v1120 = vsel %vm1114, %v1118, %v1119
      %v1121 = vrot.slane %v769, 1
      %v1122 = vrot.slane %v774, 1
      %v1123 = vsel %vm1114, %v1121, %v1122
      %v1124 = vrot.slane %v789, 1
      %v1125 = vrot.slane %v794, 1
      %v1126 = vsel %vm1114, %v1124, %v1125
      %v1127 = vrot.slane %v809, 1
      %v1128 = vrot.slane %v814, 1
      %v1129 = vsel %vm1114, %v1127, %v1128
      %v1130 = vrot.slane %v829, 1
      %v1131 = vrot.slane %v834, 1
      %v1132 = vsel %vm1114, %v1130, %v1131
      %v1133 = vrot.slane %v849, 1
      %v1134 = vrot.slane %v854, 1
      %v1135 = vsel %vm1114, %v1133, %v1134
      %v1136 = vrot.slane %v869, 1
      %v1137 = vrot.slane %v874, 1
      %v1138 = vsel %vm1114, %v1136, %v1137
      %v1139 = vrot.slane %v889, 1
      %v1140 = vrot.slane %v894, 1
      %v1141 = vsel %vm1114, %v1139, %v1140
      %v1142 = vrot.slane %v909, 1
      %v1143 = vrot.slane %v914, 1
      %v1144 = vsel %vm1114, %v1142, %v1143
      %v1145 = vrot.slane %v929, 1
      %v1146 = vrot.slane %v934, 1
      %v1147 = vsel %vm1114, %v1145, %v1146
      %v1148 = vrot.slane %v949, 1
      %v1149 = vrot.slane %v954, 1
      %v1150 = vsel %vm1114, %v1148, %v1149
      %v1151 = vrot.slane %v969, 1
      %v1152 = vrot.slane %v974, 1
      %v1153 = vsel %vm1114, %v1151, %v1152
      %v1154 = vrot.slane %v989, 1
      %v1155 = vrot.slane %v994, 1
      %v1156 = vsel %vm1114, %v1154, %v1155
      %v1157 = vrot.slane %v1009, 1
      %v1158 = vrot.slane %v1014, 1
      %v1159 = vsel %vm1114, %v1157, %v1158
      %v1160 = vrot.slane %v1029, 1
      %v1161 = vrot.slane %v1034, 1
      %v1162 = vsel %vm1114, %v1160, %v1161
      %1163 = vrot.lane.b32.xlu0 %v1115, 124
      %v1164 = vpop.permute.xlu0 %1163
      %1165 = vrot.lane.b32.xlu0 %v1117, 124
      %v1166 = vpop.permute.xlu0 %1165
      %1167 = vrot.lane.b32.xlu0 %v1116, 124
      %v1168 = vpop.permute.xlu0 %1167
      %1169 = vrot.lane.b32.xlu0 %v1118, 124
      %v1170 = vpop.permute.xlu0 %1169
      %1171 = vrot.lane.b32.xlu0 %v1120, 124
      %v1172 = vpop.permute.xlu0 %1171
      %1173 = vrot.lane.b32.xlu0 %v1119, 124
      %v1174 = vpop.permute.xlu0 %1173
      %1175 = vrot.lane.b32.xlu0 %v1121, 124
      %v1176 = vpop.permute.xlu0 %1175
      %1177 = vrot.lane.b32.xlu0 %v1123, 124
      %v1178 = vpop.permute.xlu0 %1177
      %1179 = vrot.lane.b32.xlu0 %v1122, 124
      %v1180 = vpop.permute.xlu0 %1179
      %1181 = vrot.lane.b32.xlu0 %v1124, 124
      %v1182 = vpop.permute.xlu0 %1181
      %1183 = vrot.lane.b32.xlu0 %v1126, 124
      %v1184 = vpop.permute.xlu0 %1183
      %1185 = vrot.lane.b32.xlu0 %v1125, 124
      %v1186 = vpop.permute.xlu0 %1185
      %1187 = vrot.lane.b32.xlu0 %v1127, 124
      %v1188 = vpop.permute.xlu0 %1187
      %1189 = vrot.lane.b32.xlu0 %v1129, 124
      %v1190 = vpop.permute.xlu0 %1189
      %1191 = vrot.lane.b32.xlu0 %v1128, 124
      %v1192 = vpop.permute.xlu0 %1191
      %1193 = vrot.lane.b32.xlu0 %v1130, 124
      %v1194 = vpop.permute.xlu0 %1193
      %1195 = vrot.lane.b32.xlu0 %v1132, 124
      %v1196 = vpop.permute.xlu0 %1195
      %1197 = vrot.lane.b32.xlu0 %v1131, 124
      %v1198 = vpop.permute.xlu0 %1197
      %1199 = vrot.lane.b32.xlu0 %v1133, 124
      %v1200 = vpop.permute.xlu0 %1199
      %1201 = vrot.lane.b32.xlu0 %v1135, 124
      %v1202 = vpop.permute.xlu0 %1201
      %1203 = vrot.lane.b32.xlu0 %v1134, 124
      %v1204 = vpop.permute.xlu0 %1203
      %1205 = vrot.lane.b32.xlu0 %v1136, 124
      %v1206 = vpop.permute.xlu0 %1205
      %1207 = vrot.lane.b32.xlu0 %v1138, 124
      %v1208 = vpop.permute.xlu0 %1207
      %1209 = vrot.lane.b32.xlu0 %v1137, 124
      %v1210 = vpop.permute.xlu0 %1209
      %1211 = vrot.lane.b32.xlu0 %v1139, 124
      %v1212 = vpop.permute.xlu0 %1211
      %1213 = vrot.lane.b32.xlu0 %v1141, 124
      %v1214 = vpop.permute.xlu0 %1213
      %1215 = vrot.lane.b32.xlu0 %v1140, 124
      %v1216 = vpop.permute.xlu0 %1215
      %1217 = vrot.lane.b32.xlu0 %v1142, 124
      %v1218 = vpop.permute.xlu0 %1217
      %1219 = vrot.lane.b32.xlu0 %v1144, 124
      %v1220 = vpop.permute.xlu0 %1219
      %1221 = vrot.lane.b32.xlu0 %v1143, 124
      %v1222 = vpop.permute.xlu0 %1221
      %1223 = vrot.lane.b32.xlu0 %v1145, 124
      %v1224 = vpop.permute.xlu0 %1223
      %1225 = vrot.lane.b32.xlu0 %v1147, 124
      %v1226 = vpop.permute.xlu0 %1225
      %1227 = vrot.lane.b32.xlu0 %v1146, 124
      %v1228 = vpop.permute.xlu0 %1227
      %1229 = vrot.lane.b32.xlu0 %v1148, 124
      %v1230 = vpop.permute.xlu0 %1229
      %1231 = vrot.lane.b32.xlu0 %v1150, 124
      %v1232 = vpop.permute.xlu0 %1231
      %1233 = vrot.lane.b32.xlu0 %v1149, 124
      %v1234 = vpop.permute.xlu0 %1233
      %1235 = vrot.lane.b32.xlu0 %v1151, 124
      %v1236 = vpop.permute.xlu0 %1235
      %1237 = vrot.lane.b32.xlu0 %v1153, 124
      %v1238 = vpop.permute.xlu0 %1237
      %1239 = vrot.lane.b32.xlu0 %v1152, 124
      %v1240 = vpop.permute.xlu0 %1239
      %1241 = vrot.lane.b32.xlu0 %v1154, 124
      %v1242 = vpop.permute.xlu0 %1241
      %1243 = vrot.lane.b32.xlu0 %v1156, 124
      %v1244 = vpop.permute.xlu0 %1243
      %1245 = vrot.lane.b32.xlu0 %v1155, 124
      %v1246 = vpop.permute.xlu0 %1245
      %1247 = vrot.lane.b32.xlu0 %v1157, 124
      %v1248 = vpop.permute.xlu0 %1247
      %1249 = vrot.lane.b32.xlu0 %v1159, 124
      %v1250 = vpop.permute.xlu0 %1249
      %1251 = vrot.lane.b32.xlu0 %v1158, 124
      %v1252 = vpop.permute.xlu0 %1251
      %1253 = vrot.lane.b32.xlu0 %v1160, 124
      %v1254 = vpop.permute.xlu0 %1253
      %1255 = vrot.lane.b32.xlu0 %v1162, 124
      %v1256 = vpop.permute.xlu0 %1255
      %1257 = vrot.lane.b32.xlu0 %v1161, 124
      %v1258 = vpop.permute.xlu0 %1257
      %v1307 = vadd.f32 %v724, %v1164
      %v1308 = vadd.f32 %v729, %v1166
      %v1309 = vadd.f32 %v734, %v1168
      %v1310 = vadd.f32 %v744, %v1170
      %v1311 = vadd.f32 %v749, %v1172
      %v1312 = vadd.f32 %v754, %v1174
      %v1313 = vadd.f32 %v764, %v1176
      %v1314 = vadd.f32 %v769, %v1178
      %v1315 = vadd.f32 %v774, %v1180
      %v1316 = vadd.f32 %v784, %v1182
      %v1317 = vadd.f32 %v789, %v1184
      %v1318 = vadd.f32 %v794, %v1186
      %v1319 = vadd.f32 %v804, %v1188
      %v1320 = vadd.f32 %v809, %v1190
      %v1321 = vadd.f32 %v814, %v1192
      %v1322 = vadd.f32 %v824, %v1194
      %v1323 = vadd.f32 %v829, %v1196
      %v1324 = vadd.f32 %v834, %v1198
      %v1325 = vadd.f32 %v844, %v1200
      %v1326 = vadd.f32 %v849, %v1202
      %v1327 = vadd.f32 %v854, %v1204
      %v1328 = vadd.f32 %v864, %v1206
      %v1329 = vadd.f32 %v869, %v1208
      %v1330 = vadd.f32 %v874, %v1210
      %v1331 = vadd.f32 %v884, %v1212
      %v1332 = vadd.f32 %v889, %v1214
      %v1333 = vadd.f32 %v894, %v1216
      %v1334 = vadd.f32 %v904, %v1218
      %v1335 = vadd.f32 %v909, %v1220
      %v1336 = vadd.f32 %v914, %v1222
      %v1337 = vadd.f32 %v924, %v1224
      %v1338 = vadd.f32 %v929, %v1226
      %v1339 = vadd.f32 %v934, %v1228
      %v1340 = vadd.f32 %v944, %v1230
      %v1341 = vadd.f32 %v949, %v1232
      %v1342 = vadd.f32 %v954, %v1234
      %v1343 = vadd.f32 %v964, %v1236
      %v1344 = vadd.f32 %v969, %v1238
      %v1345 = vadd.f32 %v974, %v1240
      %v1346 = vadd.f32 %v984, %v1242
      %v1347 = vadd.f32 %v989, %v1244
      %v1348 = vadd.f32 %v994, %v1246
      %v1349 = vadd.f32 %v1004, %v1248
      %v1350 = vadd.f32 %v1009, %v1250
      %v1351 = vadd.f32 %v1014, %v1252
      %v1352 = vadd.f32 %v1024, %v1254
      %v1353 = vadd.f32 %v1029, %v1256
      %v1354 = vadd.f32 %v1034, %v1258
      %vm1371 = vcmask 1045504
      %v1372 = vrot.slane %v729, 2
      %v1373 = vrot.slane %v734, 2
      %v1374 = vsel %vm1371, %v1372, %v1373
      %v1375 = vrot.slane %v739, 2
      %v1376 = vsel %vm1371, %v1373, %v1375
      %v1377 = vrot.slane %v749, 2
      %v1378 = vrot.slane %v754, 2
      %v1379 = vsel %vm1371, %v1377, %v1378
      %v1380 = vrot.slane %v759, 2
      %v1381 = vsel %vm1371, %v1378, %v1380
      %v1382 = vrot.slane %v769, 2
      %v1383 = vrot.slane %v774, 2
      %v1384 = vsel %vm1371, %v1382, %v1383
      %v1385 = vrot.slane %v779, 2
      %v1386 = vsel %vm1371, %v1383, %v1385
      %v1387 = vrot.slane %v789, 2
      %v1388 = vrot.slane %v794, 2
      %v1389 = vsel %vm1371, %v1387, %v1388
      %v1390 = vrot.slane %v799, 2
      %v1391 = vsel %vm1371, %v1388, %v1390
      %v1392 = vrot.slane %v809, 2
      %v1393 = vrot.slane %v814, 2
      %v1394 = vsel %vm1371, %v1392, %v1393
      %v1395 = vrot.slane %v819, 2
      %v1396 = vsel %vm1371, %v1393, %v1395
      %v1397 = vrot.slane %v829, 2
      %v1398 = vrot.slane %v834, 2
      %v1399 = vsel %vm1371, %v1397, %v1398
      %v1400 = vrot.slane %v839, 2
      %v1401 = vsel %vm1371, %v1398, %v1400
      %v1402 = vrot.slane %v849, 2
      %v1403 = vrot.slane %v854, 2
      %v1404 = vsel %vm1371, %v1402, %v1403
      %v1405 = vrot.slane %v859, 2
      %v1406 = vsel %vm1371, %v1403, %v1405
      %v1407 = vrot.slane %v869, 2
      %v1408 = vrot.slane %v874, 2
      %v1409 = vsel %vm1371, %v1407, %v1408
      %v1410 = vrot.slane %v879, 2
      %v1411 = vsel %vm1371, %v1408, %v1410
      %v1412 = vrot.slane %v889, 2
      %v1413 = vrot.slane %v894, 2
      %v1414 = vsel %vm1371, %v1412, %v1413
      %v1415 = vrot.slane %v899, 2
      %v1416 = vsel %vm1371, %v1413, %v1415
      %v1417 = vrot.slane %v909, 2
      %v1418 = vrot.slane %v914, 2
      %v1419 = vsel %vm1371, %v1417, %v1418
      %v1420 = vrot.slane %v919, 2
      %v1421 = vsel %vm1371, %v1418, %v1420
      %v1422 = vrot.slane %v929, 2
      %v1423 = vrot.slane %v934, 2
      %v1424 = vsel %vm1371, %v1422, %v1423
      %v1425 = vrot.slane %v939, 2
      %v1426 = vsel %vm1371, %v1423, %v1425
      %v1427 = vrot.slane %v949, 2
      %v1428 = vrot.slane %v954, 2
      %v1429 = vsel %vm1371, %v1427, %v1428
      %v1430 = vrot.slane %v959, 2
      %v1431 = vsel %vm1371, %v1428, %v1430
      %v1432 = vrot.slane %v969, 2
      %v1433 = vrot.slane %v974, 2
      %v1434 = vsel %vm1371, %v1432, %v1433
      %v1435 = vrot.slane %v979, 2
      %v1436 = vsel %vm1371, %v1433, %v1435
      %v1437 = vrot.slane %v989, 2
      %v1438 = vrot.slane %v994, 2
      %v1439 = vsel %vm1371, %v1437, %v1438
      %v1440 = vrot.slane %v999, 2
      %v1441 = vsel %vm1371, %v1438, %v1440
      %v1442 = vrot.slane %v1009, 2
      %v1443 = vrot.slane %v1014, 2
      %v1444 = vsel %vm1371, %v1442, %v1443
      %v1445 = vrot.slane %v1019, 2
      %v1446 = vsel %vm1371, %v1443, %v1445
      %v1447 = vrot.slane %v1029, 2
      %v1448 = vrot.slane %v1034, 2
      %v1449 = vsel %vm1371, %v1447, %v1448
      %v1450 = vrot.slane %v1039, 2
      %v1451 = vsel %vm1371, %v1448, %v1450
      %1452 = vrot.lane.b32.xlu0 %v1372, 120
      %v1453 = vpop.permute.xlu0 %1452
      %1454 = vrot.lane.b32.xlu0 %v1374, 120
      %v1455 = vpop.permute.xlu0 %1454
      %1456 = vrot.lane.b32.xlu0 %v1376, 120
      %v1457 = vpop.permute.xlu0 %1456
      %1458 = vrot.lane.b32.xlu0 %v1377, 120
      %v1459 = vpop.permute.xlu0 %1458
      %1460 = vrot.lane.b32.xlu0 %v1379, 120
      %v1461 = vpop.permute.xlu0 %1460
      %1462 = vrot.lane.b32.xlu0 %v1381, 120
      %v1463 = vpop.permute.xlu0 %1462
      %1464 = vrot.lane.b32.xlu0 %v1382, 120
      %v1465 = vpop.permute.xlu0 %1464
      %1466 = vrot.lane.b32.xlu0 %v1384, 120
      %v1467 = vpop.permute.xlu0 %1466
      %1468 = vrot.lane.b32.xlu0 %v1386, 120
      %v1469 = vpop.permute.xlu0 %1468
      %1470 = vrot.lane.b32.xlu0 %v1387, 120
      %v1471 = vpop.permute.xlu0 %1470
      %1472 = vrot.lane.b32.xlu0 %v1389, 120
      %v1473 = vpop.permute.xlu0 %1472
      %1474 = vrot.lane.b32.xlu0 %v1391, 120
      %v1475 = vpop.permute.xlu0 %1474
      %1476 = vrot.lane.b32.xlu0 %v1392, 120
      %v1477 = vpop.permute.xlu0 %1476
      %1478 = vrot.lane.b32.xlu0 %v1394, 120
      %v1479 = vpop.permute.xlu0 %1478
      %1480 = vrot.lane.b32.xlu0 %v1396, 120
      %v1481 = vpop.permute.xlu0 %1480
      %1482 = vrot.lane.b32.xlu0 %v1397, 120
      %v1483 = vpop.permute.xlu0 %1482
      %1484 = vrot.lane.b32.xlu0 %v1399, 120
      %v1485 = vpop.permute.xlu0 %1484
      %1486 = vrot.lane.b32.xlu0 %v1401, 120
      %v1487 = vpop.permute.xlu0 %1486
      %1488 = vrot.lane.b32.xlu0 %v1402, 120
      %v1489 = vpop.permute.xlu0 %1488
      %1490 = vrot.lane.b32.xlu0 %v1404, 120
      %v1491 = vpop.permute.xlu0 %1490
      %1492 = vrot.lane.b32.xlu0 %v1406, 120
      %v1493 = vpop.permute.xlu0 %1492
      %1494 = vrot.lane.b32.xlu0 %v1407, 120
      %v1495 = vpop.permute.xlu0 %1494
      %1496 = vrot.lane.b32.xlu0 %v1409, 120
      %v1497 = vpop.permute.xlu0 %1496
      %1498 = vrot.lane.b32.xlu0 %v1411, 120
      %v1499 = vpop.permute.xlu0 %1498
      %1500 = vrot.lane.b32.xlu0 %v1412, 120
      %v1501 = vpop.permute.xlu0 %1500
      %1502 = vrot.lane.b32.xlu0 %v1414, 120
      %v1503 = vpop.permute.xlu0 %1502
      %1504 = vrot.lane.b32.xlu0 %v1416, 120
      %v1505 = vpop.permute.xlu0 %1504
      %1506 = vrot.lane.b32.xlu0 %v1417, 120
      %v1507 = vpop.permute.xlu0 %1506
      %1508 = vrot.lane.b32.xlu0 %v1419, 120
      %v1509 = vpop.permute.xlu0 %1508
      %1510 = vrot.lane.b32.xlu0 %v1421, 120
      %v1511 = vpop.permute.xlu0 %1510
      %1512 = vrot.lane.b32.xlu0 %v1422, 120
      %v1513 = vpop.permute.xlu0 %1512
      %1514 = vrot.lane.b32.xlu0 %v1424, 120
      %v1515 = vpop.permute.xlu0 %1514
      %1516 = vrot.lane.b32.xlu0 %v1426, 120
      %v1517 = vpop.permute.xlu0 %1516
      %1518 = vrot.lane.b32.xlu0 %v1427, 120
      %v1519 = vpop.permute.xlu0 %1518
      %1520 = vrot.lane.b32.xlu0 %v1429, 120
      %v1521 = vpop.permute.xlu0 %1520
      %1522 = vrot.lane.b32.xlu0 %v1431, 120
      %v1523 = vpop.permute.xlu0 %1522
      %1524 = vrot.lane.b32.xlu0 %v1432, 120
      %v1525 = vpop.permute.xlu0 %1524
      %1526 = vrot.lane.b32.xlu0 %v1434, 120
      %v1527 = vpop.permute.xlu0 %1526
      %1528 = vrot.lane.b32.xlu0 %v1436, 120
      %v1529 = vpop.permute.xlu0 %1528
      %1530 = vrot.lane.b32.xlu0 %v1437, 120
      %v1531 = vpop.permute.xlu0 %1530
      %1532 = vrot.lane.b32.xlu0 %v1439, 120
      %v1533 = vpop.permute.xlu0 %1532
      %1534 = vrot.lane.b32.xlu0 %v1441, 120
      %v1535 = vpop.permute.xlu0 %1534
      %1536 = vrot.lane.b32.xlu0 %v1442, 120
      %v1537 = vpop.permute.xlu0 %1536
      %1538 = vrot.lane.b32.xlu0 %v1444, 120
      %v1539 = vpop.permute.xlu0 %1538
      %1540 = vrot.lane.b32.xlu0 %v1446, 120
      %v1541 = vpop.permute.xlu0 %1540
      %1542 = vrot.lane.b32.xlu0 %v1447, 120
      %v1543 = vpop.permute.xlu0 %1542
      %1544 = vrot.lane.b32.xlu0 %v1449, 120
      %v1545 = vpop.permute.xlu0 %1544
      %1546 = vrot.lane.b32.xlu0 %v1451, 120
      %v1547 = vpop.permute.xlu0 %1546
      %v1596 = vadd.f32 %v1307, %v1453
      %v1597 = vadd.f32 %v1308, %v1455
      %v1598 = vadd.f32 %v1309, %v1457
      %v1599 = vadd.f32 %v1310, %v1459
      %v1600 = vadd.f32 %v1311, %v1461
      %v1601 = vadd.f32 %v1312, %v1463
      %v1602 = vadd.f32 %v1313, %v1465
      %v1603 = vadd.f32 %v1314, %v1467
      %v1604 = vadd.f32 %v1315, %v1469
      %v1605 = vadd.f32 %v1316, %v1471
      %v1606 = vadd.f32 %v1317, %v1473
      %v1607 = vadd.f32 %v1318, %v1475
      %v1608 = vadd.f32 %v1319, %v1477
      %v1609 = vadd.f32 %v1320, %v1479
      %v1610 = vadd.f32 %v1321, %v1481
      %v1611 = vadd.f32 %v1322, %v1483
      %v1612 = vadd.f32 %v1323, %v1485
      %v1613 = vadd.f32 %v1324, %v1487
      %v1614 = vadd.f32 %v1325, %v1489
      %v1615 = vadd.f32 %v1326, %v1491
      %v1616 = vadd.f32 %v1327, %v1493
      %v1617 = vadd.f32 %v1328, %v1495
      %v1618 = vadd.f32 %v1329, %v1497
      %v1619 = vadd.f32 %v1330, %v1499
      %v1620 = vadd.f32 %v1331, %v1501
      %v1621 = vadd.f32 %v1332, %v1503
      %v1622 = vadd.f32 %v1333, %v1505
      %v1623 = vadd.f32 %v1334, %v1507
      %v1624 = vadd.f32 %v1335, %v1509
      %v1625 = vadd.f32 %v1336, %v1511
      %v1626 = vadd.f32 %v1337, %v1513
      %v1627 = vadd.f32 %v1338, %v1515
      %v1628 = vadd.f32 %v1339, %v1517
      %v1629 = vadd.f32 %v1340, %v1519
      %v1630 = vadd.f32 %v1341, %v1521
      %v1631 = vadd.f32 %v1342, %v1523
      %v1632 = vadd.f32 %v1343, %v1525
      %v1633 = vadd.f32 %v1344, %v1527
      %v1634 = vadd.f32 %v1345, %v1529
      %v1635 = vadd.f32 %v1346, %v1531
      %v1636 = vadd.f32 %v1347, %v1533
      %v1637 = vadd.f32 %v1348, %v1535
      %v1638 = vadd.f32 %v1349, %v1537
      %v1639 = vadd.f32 %v1350, %v1539
      %v1640 = vadd.f32 %v1351, %v1541
      %v1641 = vadd.f32 %v1352, %v1543
      %v1642 = vadd.f32 %v1353, %v1545
      %v1643 = vadd.f32 %v1354, %v1547
      %1662 = vrot.lane.b32.xlu0 %v744, 116
      %v1663 = vpop.permute.xlu0 %1662
      %1664 = vrot.lane.b32.xlu0 %v749, 116
      %v1665 = vpop.permute.xlu0 %1664
      %1666 = vrot.lane.b32.xlu0 %v754, 116
      %v1667 = vpop.permute.xlu0 %1666
      %1668 = vrot.lane.b32.xlu0 %v764, 116
      %v1669 = vpop.permute.xlu0 %1668
      %1670 = vrot.lane.b32.xlu0 %v769, 116
      %v1671 = vpop.permute.xlu0 %1670
      %1672 = vrot.lane.b32.xlu0 %v774, 116
      %v1673 = vpop.permute.xlu0 %1672
      %1674 = vrot.lane.b32.xlu0 %v784, 116
      %v1675 = vpop.permute.xlu0 %1674
      %1676 = vrot.lane.b32.xlu0 %v789, 116
      %v1677 = vpop.permute.xlu0 %1676
      %1678 = vrot.lane.b32.xlu0 %v794, 116
      %v1679 = vpop.permute.xlu0 %1678
      %1680 = vrot.lane.b32.xlu0 %v804, 116
      %v1681 = vpop.permute.xlu0 %1680
      %1682 = vrot.lane.b32.xlu0 %v809, 116
      %v1683 = vpop.permute.xlu0 %1682
      %1684 = vrot.lane.b32.xlu0 %v814, 116
      %v1685 = vpop.permute.xlu0 %1684
      %1686 = vrot.lane.b32.xlu0 %v824, 116
      %v1687 = vpop.permute.xlu0 %1686
      %1688 = vrot.lane.b32.xlu0 %v829, 116
      %v1689 = vpop.permute.xlu0 %1688
      %1690 = vrot.lane.b32.xlu0 %v834, 116
      %v1691 = vpop.permute.xlu0 %1690
      %1692 = vrot.lane.b32.xlu0 %v844, 116
      %v1693 = vpop.permute.xlu0 %1692
      %1694 = vrot.lane.b32.xlu0 %v849, 116
      %v1695 = vpop.permute.xlu0 %1694
      %1696 = vrot.lane.b32.xlu0 %v854, 116
      %v1697 = vpop.permute.xlu0 %1696
      %1698 = vrot.lane.b32.xlu0 %v864, 116
      %v1699 = vpop.permute.xlu0 %1698
      %1700 = vrot.lane.b32.xlu0 %v869, 116
      %v1701 = vpop.permute.xlu0 %1700
      %1702 = vrot.lane.b32.xlu0 %v874, 116
      %v1703 = vpop.permute.xlu0 %1702
      %1704 = vrot.lane.b32.xlu0 %v884, 116
      %v1705 = vpop.permute.xlu0 %1704
      %1706 = vrot.lane.b32.xlu0 %v889, 116
      %v1707 = vpop.permute.xlu0 %1706
      %1708 = vrot.lane.b32.xlu0 %v894, 116
      %v1709 = vpop.permute.xlu0 %1708
      %1710 = vrot.lane.b32.xlu0 %v904, 116
      %v1711 = vpop.permute.xlu0 %1710
      %1712 = vrot.lane.b32.xlu0 %v909, 116
      %v1713 = vpop.permute.xlu0 %1712
      %1714 = vrot.lane.b32.xlu0 %v914, 116
      %v1715 = vpop.permute.xlu0 %1714
      %1716 = vrot.lane.b32.xlu0 %v924, 116
      %v1717 = vpop.permute.xlu0 %1716
      %1718 = vrot.lane.b32.xlu0 %v929, 116
      %v1719 = vpop.permute.xlu0 %1718
      %1720 = vrot.lane.b32.xlu0 %v934, 116
      %v1721 = vpop.permute.xlu0 %1720
      %1722 = vrot.lane.b32.xlu0 %v944, 116
      %v1723 = vpop.permute.xlu0 %1722
      %1724 = vrot.lane.b32.xlu0 %v949, 116
      %v1725 = vpop.permute.xlu0 %1724
      %1726 = vrot.lane.b32.xlu0 %v954, 116
      %v1727 = vpop.permute.xlu0 %1726
      %1728 = vrot.lane.b32.xlu0 %v964, 116
      %v1729 = vpop.permute.xlu0 %1728
      %1730 = vrot.lane.b32.xlu0 %v969, 116
      %v1731 = vpop.permute.xlu0 %1730
      %1732 = vrot.lane.b32.xlu0 %v974, 116
      %v1733 = vpop.permute.xlu0 %1732
      %1734 = vrot.lane.b32.xlu0 %v984, 116
      %v1735 = vpop.permute.xlu0 %1734
      %1736 = vrot.lane.b32.xlu0 %v989, 116
      %v1737 = vpop.permute.xlu0 %1736
      %1738 = vrot.lane.b32.xlu0 %v994, 116
      %v1739 = vpop.permute.xlu0 %1738
      %1740 = vrot.lane.b32.xlu0 %v1004, 116
      %v1741 = vpop.permute.xlu0 %1740
      %1742 = vrot.lane.b32.xlu0 %v1009, 116
      %v1743 = vpop.permute.xlu0 %1742
      %1744 = vrot.lane.b32.xlu0 %v1014, 116
      %v1745 = vpop.permute.xlu0 %1744
      %1746 = vrot.lane.b32.xlu0 %v1024, 116
      %v1747 = vpop.permute.xlu0 %1746
      %1748 = vrot.lane.b32.xlu0 %v1029, 116
      %v1749 = vpop.permute.xlu0 %1748
      %1750 = vrot.lane.b32.xlu0 %v1034, 116
      %v1751 = vpop.permute.xlu0 %1750
      %1752 = vrot.lane.b32.xlu0 %v1044, 116
      %v1753 = vpop.permute.xlu0 %1752
      %1754 = vrot.lane.b32.xlu0 %v1049, 116
      %v1755 = vpop.permute.xlu0 %1754
      %1756 = vrot.lane.b32.xlu0 %v1054, 116
      %v1757 = vpop.permute.xlu0 %1756
      %v1806 = vadd.f32 %v1596, %v1663
      %v1807 = vadd.f32 %v1597, %v1665
      %v1808 = vadd.f32 %v1598, %v1667
      %v1809 = vadd.f32 %v1599, %v1669
      %v1810 = vadd.f32 %v1600, %v1671
      %v1811 = vadd.f32 %v1601, %v1673
      %v1812 = vadd.f32 %v1602, %v1675
      %v1813 = vadd.f32 %v1603, %v1677
      %v1814 = vadd.f32 %v1604, %v1679
      %v1815 = vadd.f32 %v1605, %v1681
      %v1816 = vadd.f32 %v1606, %v1683
      %v1817 = vadd.f32 %v1607, %v1685
      %v1818 = vadd.f32 %v1608, %v1687
      %v1819 = vadd.f32 %v1609, %v1689
      %v1820 = vadd.f32 %v1610, %v1691
      %v1821 = vadd.f32 %v1611, %v1693
      %v1822 = vadd.f32 %v1612, %v1695
      %v1823 = vadd.f32 %v1613, %v1697
      %v1824 = vadd.f32 %v1614, %v1699
      %v1825 = vadd.f32 %v1615, %v1701
      %v1826 = vadd.f32 %v1616, %v1703
      %v1827 = vadd.f32 %v1617, %v1705
      %v1828 = vadd.f32 %v1618, %v1707
      %v1829 = vadd.f32 %v1619, %v1709
      %v1830 = vadd.f32 %v1620, %v1711
      %v1831 = vadd.f32 %v1621, %v1713
      %v1832 = vadd.f32 %v1622, %v1715
      %v1833 = vadd.f32 %v1623, %v1717
      %v1834 = vadd.f32 %v1624, %v1719
      %v1835 = vadd.f32 %v1625, %v1721
      %v1836 = vadd.f32 %v1626, %v1723
      %v1837 = vadd.f32 %v1627, %v1725
      %v1838 = vadd.f32 %v1628, %v1727
      %v1839 = vadd.f32 %v1629, %v1729
      %v1840 = vadd.f32 %v1630, %v1731
      %v1841 = vadd.f32 %v1631, %v1733
      %v1842 = vadd.f32 %v1632, %v1735
      %v1843 = vadd.f32 %v1633, %v1737
      %v1844 = vadd.f32 %v1634, %v1739
      %v1845 = vadd.f32 %v1635, %v1741
      %v1846 = vadd.f32 %v1636, %v1743
      %v1847 = vadd.f32 %v1637, %v1745
      %v1848 = vadd.f32 %v1638, %v1747
      %v1849 = vadd.f32 %v1639, %v1749
      %v1850 = vadd.f32 %v1640, %v1751
      %v1851 = vadd.f32 %v1641, %v1753
      %v1852 = vadd.f32 %v1642, %v1755
      %v1853 = vadd.f32 %v1643, %v1757
      %v1854 = vrot.slane %v1049, 1
      %v1855 = vrot.slane %v1054, 1
      %v1856 = vsel %vm1114, %v1854, %v1855
      %1857 = vrot.lane.b32.xlu0 %v1118, 112
      %v1858 = vpop.permute.xlu0 %1857
      %1859 = vrot.lane.b32.xlu0 %v1120, 112
      %v1860 = vpop.permute.xlu0 %1859
      %1861 = vrot.lane.b32.xlu0 %v1119, 112
      %v1862 = vpop.permute.xlu0 %1861
      %1863 = vrot.lane.b32.xlu0 %v1121, 112
      %v1864 = vpop.permute.xlu0 %1863
      %1865 = vrot.lane.b32.xlu0 %v1123, 112
      %v1866 = vpop.permute.xlu0 %1865
      %1867 = vrot.lane.b32.xlu0 %v1122, 112
      %v1868 = vpop.permute.xlu0 %1867
      %1869 = vrot.lane.b32.xlu0 %v1124, 112
      %v1870 = vpop.permute.xlu0 %1869
      %1871 = vrot.lane.b32.xlu0 %v1126, 112
      %v1872 = vpop.permute.xlu0 %1871
      %1873 = vrot.lane.b32.xlu0 %v1125, 112
      %v1874 = vpop.permute.xlu0 %1873
      %1875 = vrot.lane.b32.xlu0 %v1127, 112
      %v1876 = vpop.permute.xlu0 %1875
      %1877 = vrot.lane.b32.xlu0 %v1129, 112
      %v1878 = vpop.permute.xlu0 %1877
      %1879 = vrot.lane.b32.xlu0 %v1128, 112
      %v1880 = vpop.permute.xlu0 %1879
      %1881 = vrot.lane.b32.xlu0 %v1130, 112
      %v1882 = vpop.permute.xlu0 %1881
      %1883 = vrot.lane.b32.xlu0 %v1132, 112
      %v1884 = vpop.permute.xlu0 %1883
      %1885 = vrot.lane.b32.xlu0 %v1131, 112
      %v1886 = vpop.permute.xlu0 %1885
      %1887 = vrot.lane.b32.xlu0 %v1133, 112
      %v1888 = vpop.permute.xlu0 %1887
      %1889 = vrot.lane.b32.xlu0 %v1135, 112
      %v1890 = vpop.permute.xlu0 %1889
      %1891 = vrot.lane.b32.xlu0 %v1134, 112
      %v1892 = vpop.permute.xlu0 %1891
      %1893 = vrot.lane.b32.xlu0 %v1136, 112
      %v1894 = vpop.permute.xlu0 %1893
      %1895 = vrot.lane.b32.xlu0 %v1138, 112
      %v1896 = vpop.permute.xlu0 %1895
      %1897 = vrot.lane.b32.xlu0 %v1137, 112
      %v1898 = vpop.permute.xlu0 %1897
      %1899 = vrot.lane.b32.xlu0 %v1139, 112
      %v1900 = vpop.permute.xlu0 %1899
      %1901 = vrot.lane.b32.xlu0 %v1141, 112
      %v1902 = vpop.permute.xlu0 %1901
      %1903 = vrot.lane.b32.xlu0 %v1140, 112
      %v1904 = vpop.permute.xlu0 %1903
      %1905 = vrot.lane.b32.xlu0 %v1142, 112
      %v1906 = vpop.permute.xlu0 %1905
      %1907 = vrot.lane.b32.xlu0 %v1144, 112
      %v1908 = vpop.permute.xlu0 %1907
      %1909 = vrot.lane.b32.xlu0 %v1143, 112
      %v1910 = vpop.permute.xlu0 %1909
      %1911 = vrot.lane.b32.xlu0 %v1145, 112
      %v1912 = vpop.permute.xlu0 %1911
      %1913 = vrot.lane.b32.xlu0 %v1147, 112
      %v1914 = vpop.permute.xlu0 %1913
      %1915 = vrot.lane.b32.xlu0 %v1146, 112
      %v1916 = vpop.permute.xlu0 %1915
      %1917 = vrot.lane.b32.xlu0 %v1148, 112
      %v1918 = vpop.permute.xlu0 %1917
      %1919 = vrot.lane.b32.xlu0 %v1150, 112
      %v1920 = vpop.permute.xlu0 %1919
      %1921 = vrot.lane.b32.xlu0 %v1149, 112
      %v1922 = vpop.permute.xlu0 %1921
      %1923 = vrot.lane.b32.xlu0 %v1151, 112
      %v1924 = vpop.permute.xlu0 %1923
      %1925 = vrot.lane.b32.xlu0 %v1153, 112
      %v1926 = vpop.permute.xlu0 %1925
      %1927 = vrot.lane.b32.xlu0 %v1152, 112
      %v1928 = vpop.permute.xlu0 %1927
      %1929 = vrot.lane.b32.xlu0 %v1154, 112
      %v1930 = vpop.permute.xlu0 %1929
      %1931 = vrot.lane.b32.xlu0 %v1156, 112
      %v1932 = vpop.permute.xlu0 %1931
      %1933 = vrot.lane.b32.xlu0 %v1155, 112
      %v1934 = vpop.permute.xlu0 %1933
      %1935 = vrot.lane.b32.xlu0 %v1157, 112
      %v1936 = vpop.permute.xlu0 %1935
      %1937 = vrot.lane.b32.xlu0 %v1159, 112
      %v1938 = vpop.permute.xlu0 %1937
      %1939 = vrot.lane.b32.xlu0 %v1158, 112
      %v1940 = vpop.permute.xlu0 %1939
      %1941 = vrot.lane.b32.xlu0 %v1160, 112
      %v1942 = vpop.permute.xlu0 %1941
      %1943 = vrot.lane.b32.xlu0 %v1162, 112
      %v1944 = vpop.permute.xlu0 %1943
      %1945 = vrot.lane.b32.xlu0 %v1161, 112
      %v1946 = vpop.permute.xlu0 %1945
      %1947 = vrot.lane.b32.xlu0 %v1854, 112
      %v1948 = vpop.permute.xlu0 %1947
      %1949 = vrot.lane.b32.xlu0 %v1856, 112
      %v1950 = vpop.permute.xlu0 %1949
      %1951 = vrot.lane.b32.xlu0 %v1855, 112
      %v1952 = vpop.permute.xlu0 %1951
      %v2001 = vadd.f32 %v1806, %v1858
      %v2002 = vadd.f32 %v1807, %v1860
      %v2003 = vadd.f32 %v1808, %v1862
      %v2004 = vadd.f32 %v1809, %v1864
      %v2005 = vadd.f32 %v1810, %v1866
      %v2006 = vadd.f32 %v1811, %v1868
      %v2007 = vadd.f32 %v1812, %v1870
      %v2008 = vadd.f32 %v1813, %v1872
      %v2009 = vadd.f32 %v1814, %v1874
      %v2010 = vadd.f32 %v1815, %v1876
      %v2011 = vadd.f32 %v1816, %v1878
      %v2012 = vadd.f32 %v1817, %v1880
      %v2013 = vadd.f32 %v1818, %v1882
      %v2014 = vadd.f32 %v1819, %v1884
      %v2015 = vadd.f32 %v1820, %v1886
      %v2016 = vadd.f32 %v1821, %v1888
      %v2017 = vadd.f32 %v1822, %v1890
      %v2018 = vadd.f32 %v1823, %v1892
      %v2019 = vadd.f32 %v1824, %v1894
      %v2020 = vadd.f32 %v1825, %v1896
      %v2021 = vadd.f32 %v1826, %v1898
      %v2022 = vadd.f32 %v1827, %v1900
      %v2023 = vadd.f32 %v1828, %v1902
      %v2024 = vadd.f32 %v1829, %v1904
      %v2025 = vadd.f32 %v1830, %v1906
      %v2026 = vadd.f32 %v1831, %v1908
      %v2027 = vadd.f32 %v1832, %v1910
      %v2028 = vadd.f32 %v1833, %v1912
      %v2029 = vadd.f32 %v1834, %v1914
      %v2030 = vadd.f32 %v1835, %v1916
      %v2031 = vadd.f32 %v1836, %v1918
      %v2032 = vadd.f32 %v1837, %v1920
      %v2033 = vadd.f32 %v1838, %v1922
      %v2034 = vadd.f32 %v1839, %v1924
      %v2035 = vadd.f32 %v1840, %v1926
      %v2036 = vadd.f32 %v1841, %v1928
      %v2037 = vadd.f32 %v1842, %v1930
      %v2038 = vadd.f32 %v1843, %v1932
      %v2039 = vadd.f32 %v1844, %v1934
      %v2040 = vadd.f32 %v1845, %v1936
      %v2041 = vadd.f32 %v1846, %v1938
      %v2042 = vadd.f32 %v1847, %v1940
      %v2043 = vadd.f32 %v1848, %v1942
      %v2044 = vadd.f32 %v1849, %v1944
      %v2045 = vadd.f32 %v1850, %v1946
      %v2046 = vadd.f32 %v1851, %v1948
      %v2047 = vadd.f32 %v1852, %v1950
      %v2048 = vadd.f32 %v1853, %v1952
      %v2050 = vrot.slane %v1049, 2
      %v2051 = vrot.slane %v1054, 2
      %v2052 = vsel %vm1371, %v2050, %v2051
      %v2053 = vrot.slane %v1059, 2
      %v2054 = vsel %vm1371, %v2051, %v2053
      %2055 = vrot.lane.b32.xlu0 %v1377, 108
      %v2056 = vpop.permute.xlu0 %2055
      %2057 = vrot.lane.b32.xlu0 %v1379, 108
      %v2058 = vpop.permute.xlu0 %2057
      %2059 = vrot.lane.b32.xlu0 %v1381, 108
      %v2060 = vpop.permute.xlu0 %2059
      %2061 = vrot.lane.b32.xlu0 %v1382, 108
      %v2062 = vpop.permute.xlu0 %2061
      %2063 = vrot.lane.b32.xlu0 %v1384, 108
      %v2064 = vpop.permute.xlu0 %2063
      %2065 = vrot.lane.b32.xlu0 %v1386, 108
      %v2066 = vpop.permute.xlu0 %2065
      %2067 = vrot.lane.b32.xlu0 %v1387, 108
      %v2068 = vpop.permute.xlu0 %2067
      %2069 = vrot.lane.b32.xlu0 %v1389, 108
      %v2070 = vpop.permute.xlu0 %2069
      %2071 = vrot.lane.b32.xlu0 %v1391, 108
      %v2072 = vpop.permute.xlu0 %2071
      %2073 = vrot.lane.b32.xlu0 %v1392, 108
      %v2074 = vpop.permute.xlu0 %2073
      %2075 = vrot.lane.b32.xlu0 %v1394, 108
      %v2076 = vpop.permute.xlu0 %2075
      %2077 = vrot.lane.b32.xlu0 %v1396, 108
      %v2078 = vpop.permute.xlu0 %2077
      %2079 = vrot.lane.b32.xlu0 %v1397, 108
      %v2080 = vpop.permute.xlu0 %2079
      %2081 = vrot.lane.b32.xlu0 %v1399, 108
      %v2082 = vpop.permute.xlu0 %2081
      %2083 = vrot.lane.b32.xlu0 %v1401, 108
      %v2084 = vpop.permute.xlu0 %2083
      %2085 = vrot.lane.b32.xlu0 %v1402, 108
      %v2086 = vpop.permute.xlu0 %2085
      %2087 = vrot.lane.b32.xlu0 %v1404, 108
      %v2088 = vpop.permute.xlu0 %2087
      %2089 = vrot.lane.b32.xlu0 %v1406, 108
      %v2090 = vpop.permute.xlu0 %2089
      %2091 = vrot.lane.b32.xlu0 %v1407, 108
      %v2092 = vpop.permute.xlu0 %2091
      %2093 = vrot.lane.b32.xlu0 %v1409, 108
      %v2094 = vpop.permute.xlu0 %2093
      %2095 = vrot.lane.b32.xlu0 %v1411, 108
      %v2096 = vpop.permute.xlu0 %2095
      %2097 = vrot.lane.b32.xlu0 %v1412, 108
      %v2098 = vpop.permute.xlu0 %2097
      %2099 = vrot.lane.b32.xlu0 %v1414, 108
      %v2100 = vpop.permute.xlu0 %2099
      %2101 = vrot.lane.b32.xlu0 %v1416, 108
      %v2102 = vpop.permute.xlu0 %2101
      %2103 = vrot.lane.b32.xlu0 %v1417, 108
      %v2104 = vpop.permute.xlu0 %2103
      %2105 = vrot.lane.b32.xlu0 %v1419, 108
      %v2106 = vpop.permute.xlu0 %2105
      %2107 = vrot.lane.b32.xlu0 %v1421, 108
      %v2108 = vpop.permute.xlu0 %2107
      %2109 = vrot.lane.b32.xlu0 %v1422, 108
      %v2110 = vpop.permute.xlu0 %2109
      %2111 = vrot.lane.b32.xlu0 %v1424, 108
      %v2112 = vpop.permute.xlu0 %2111
      %2113 = vrot.lane.b32.xlu0 %v1426, 108
      %v2114 = vpop.permute.xlu0 %2113
      %2115 = vrot.lane.b32.xlu0 %v1427, 108
      %v2116 = vpop.permute.xlu0 %2115
      %2117 = vrot.lane.b32.xlu0 %v1429, 108
      %v2118 = vpop.permute.xlu0 %2117
      %2119 = vrot.lane.b32.xlu0 %v1431, 108
      %v2120 = vpop.permute.xlu0 %2119
      %2121 = vrot.lane.b32.xlu0 %v1432, 108
      %v2122 = vpop.permute.xlu0 %2121
      %2123 = vrot.lane.b32.xlu0 %v1434, 108
      %v2124 = vpop.permute.xlu0 %2123
      %2125 = vrot.lane.b32.xlu0 %v1436, 108
      %v2126 = vpop.permute.xlu0 %2125
      %2127 = vrot.lane.b32.xlu0 %v1437, 108
      %v2128 = vpop.permute.xlu0 %2127
      %2129 = vrot.lane.b32.xlu0 %v1439, 108
      %v2130 = vpop.permute.xlu0 %2129
      %2131 = vrot.lane.b32.xlu0 %v1441, 108
      %v2132 = vpop.permute.xlu0 %2131
      %2133 = vrot.lane.b32.xlu0 %v1442, 108
      %v2134 = vpop.permute.xlu0 %2133
      %2135 = vrot.lane.b32.xlu0 %v1444, 108
      %v2136 = vpop.permute.xlu0 %2135
      %2137 = vrot.lane.b32.xlu0 %v1446, 108
      %v2138 = vpop.permute.xlu0 %2137
      %2139 = vrot.lane.b32.xlu0 %v1447, 108
      %v2140 = vpop.permute.xlu0 %2139
      %2141 = vrot.lane.b32.xlu0 %v1449, 108
      %v2142 = vpop.permute.xlu0 %2141
      %2143 = vrot.lane.b32.xlu0 %v1451, 108
      %v2144 = vpop.permute.xlu0 %2143
      %2145 = vrot.lane.b32.xlu0 %v2050, 108
      %v2146 = vpop.permute.xlu0 %2145
      %2147 = vrot.lane.b32.xlu0 %v2052, 108
      %v2148 = vpop.permute.xlu0 %2147
      %2149 = vrot.lane.b32.xlu0 %v2054, 108
      %v2150 = vpop.permute.xlu0 %2149
      %v2199 = vadd.f32 %v2001, %v2056
      %v2200 = vadd.f32 %v2002, %v2058
      %v2201 = vadd.f32 %v2003, %v2060
      %v2202 = vadd.f32 %v2004, %v2062
      %v2203 = vadd.f32 %v2005, %v2064
      %v2204 = vadd.f32 %v2006, %v2066
      %v2205 = vadd.f32 %v2007, %v2068
      %v2206 = vadd.f32 %v2008, %v2070
      %v2207 = vadd.f32 %v2009, %v2072
      %v2208 = vadd.f32 %v2010, %v2074
      %v2209 = vadd.f32 %v2011, %v2076
      %v2210 = vadd.f32 %v2012, %v2078
      %v2211 = vadd.f32 %v2013, %v2080
      %v2212 = vadd.f32 %v2014, %v2082
      %v2213 = vadd.f32 %v2015, %v2084
      %v2214 = vadd.f32 %v2016, %v2086
      %v2215 = vadd.f32 %v2017, %v2088
      %v2216 = vadd.f32 %v2018, %v2090
      %v2217 = vadd.f32 %v2019, %v2092
      %v2218 = vadd.f32 %v2020, %v2094
      %v2219 = vadd.f32 %v2021, %v2096
      %v2220 = vadd.f32 %v2022, %v2098
      %v2221 = vadd.f32 %v2023, %v2100
      %v2222 = vadd.f32 %v2024, %v2102
      %v2223 = vadd.f32 %v2025, %v2104
      %v2224 = vadd.f32 %v2026, %v2106
      %v2225 = vadd.f32 %v2027, %v2108
      %v2226 = vadd.f32 %v2028, %v2110
      %v2227 = vadd.f32 %v2029, %v2112
      %v2228 = vadd.f32 %v2030, %v2114
      %v2229 = vadd.f32 %v2031, %v2116
      %v2230 = vadd.f32 %v2032, %v2118
      %v2231 = vadd.f32 %v2033, %v2120
      %v2232 = vadd.f32 %v2034, %v2122
      %v2233 = vadd.f32 %v2035, %v2124
      %v2234 = vadd.f32 %v2036, %v2126
      %v2235 = vadd.f32 %v2037, %v2128
      %v2236 = vadd.f32 %v2038, %v2130
      %v2237 = vadd.f32 %v2039, %v2132
      %v2238 = vadd.f32 %v2040, %v2134
      %v2239 = vadd.f32 %v2041, %v2136
      %v2240 = vadd.f32 %v2042, %v2138
      %v2241 = vadd.f32 %v2043, %v2140
      %v2242 = vadd.f32 %v2044, %v2142
      %v2243 = vadd.f32 %v2045, %v2144
      %v2244 = vadd.f32 %v2046, %v2146
      %v2245 = vadd.f32 %v2047, %v2148
      %v2246 = vadd.f32 %v2048, %v2150
      %2250 = vrot.lane.b32.xlu0 %v764, 104
      %v2251 = vpop.permute.xlu0 %2250
      %2252 = vrot.lane.b32.xlu0 %v769, 104
      %v2253 = vpop.permute.xlu0 %2252
      %2254 = vrot.lane.b32.xlu0 %v774, 104
      %v2255 = vpop.permute.xlu0 %2254
      %2256 = vrot.lane.b32.xlu0 %v784, 104
      %v2257 = vpop.permute.xlu0 %2256
      %2258 = vrot.lane.b32.xlu0 %v789, 104
      %v2259 = vpop.permute.xlu0 %2258
      %2260 = vrot.lane.b32.xlu0 %v794, 104
      %v2261 = vpop.permute.xlu0 %2260
      %2262 = vrot.lane.b32.xlu0 %v804, 104
      %v2263 = vpop.permute.xlu0 %2262
      %2264 = vrot.lane.b32.xlu0 %v809, 104
      %v2265 = vpop.permute.xlu0 %2264
      %2266 = vrot.lane.b32.xlu0 %v814, 104
      %v2267 = vpop.permute.xlu0 %2266
      %2268 = vrot.lane.b32.xlu0 %v824, 104
      %v2269 = vpop.permute.xlu0 %2268
      %2270 = vrot.lane.b32.xlu0 %v829, 104
      %v2271 = vpop.permute.xlu0 %2270
      %2272 = vrot.lane.b32.xlu0 %v834, 104
      %v2273 = vpop.permute.xlu0 %2272
      %2274 = vrot.lane.b32.xlu0 %v844, 104
      %v2275 = vpop.permute.xlu0 %2274
      %2276 = vrot.lane.b32.xlu0 %v849, 104
      %v2277 = vpop.permute.xlu0 %2276
      %2278 = vrot.lane.b32.xlu0 %v854, 104
      %v2279 = vpop.permute.xlu0 %2278
      %2280 = vrot.lane.b32.xlu0 %v864, 104
      %v2281 = vpop.permute.xlu0 %2280
      %2282 = vrot.lane.b32.xlu0 %v869, 104
      %v2283 = vpop.permute.xlu0 %2282
      %2284 = vrot.lane.b32.xlu0 %v874, 104
      %v2285 = vpop.permute.xlu0 %2284
      %2286 = vrot.lane.b32.xlu0 %v884, 104
      %v2287 = vpop.permute.xlu0 %2286
      %2288 = vrot.lane.b32.xlu0 %v889, 104
      %v2289 = vpop.permute.xlu0 %2288
      %2290 = vrot.lane.b32.xlu0 %v894, 104
      %v2291 = vpop.permute.xlu0 %2290
      %2292 = vrot.lane.b32.xlu0 %v904, 104
      %v2293 = vpop.permute.xlu0 %2292
      %2294 = vrot.lane.b32.xlu0 %v909, 104
      %v2295 = vpop.permute.xlu0 %2294
      %2296 = vrot.lane.b32.xlu0 %v914, 104
      %v2297 = vpop.permute.xlu0 %2296
      %2298 = vrot.lane.b32.xlu0 %v924, 104
      %v2299 = vpop.permute.xlu0 %2298
      %2300 = vrot.lane.b32.xlu0 %v929, 104
      %v2301 = vpop.permute.xlu0 %2300
      %2302 = vrot.lane.b32.xlu0 %v934, 104
      %v2303 = vpop.permute.xlu0 %2302
      %2304 = vrot.lane.b32.xlu0 %v944, 104
      %v2305 = vpop.permute.xlu0 %2304
      %2306 = vrot.lane.b32.xlu0 %v949, 104
      %v2307 = vpop.permute.xlu0 %2306
      %2308 = vrot.lane.b32.xlu0 %v954, 104
      %v2309 = vpop.permute.xlu0 %2308
      %2310 = vrot.lane.b32.xlu0 %v964, 104
      %v2311 = vpop.permute.xlu0 %2310
      %2312 = vrot.lane.b32.xlu0 %v969, 104
      %v2313 = vpop.permute.xlu0 %2312
      %2314 = vrot.lane.b32.xlu0 %v974, 104
      %v2315 = vpop.permute.xlu0 %2314
      %2316 = vrot.lane.b32.xlu0 %v984, 104
      %v2317 = vpop.permute.xlu0 %2316
      %2318 = vrot.lane.b32.xlu0 %v989, 104
      %v2319 = vpop.permute.xlu0 %2318
      %2320 = vrot.lane.b32.xlu0 %v994, 104
      %v2321 = vpop.permute.xlu0 %2320
      %2322 = vrot.lane.b32.xlu0 %v1004, 104
      %v2323 = vpop.permute.xlu0 %2322
      %2324 = vrot.lane.b32.xlu0 %v1009, 104
      %v2325 = vpop.permute.xlu0 %2324
      %2326 = vrot.lane.b32.xlu0 %v1014, 104
      %v2327 = vpop.permute.xlu0 %2326
      %2328 = vrot.lane.b32.xlu0 %v1024, 104
      %v2329 = vpop.permute.xlu0 %2328
      %2330 = vrot.lane.b32.xlu0 %v1029, 104
      %v2331 = vpop.permute.xlu0 %2330
      %2332 = vrot.lane.b32.xlu0 %v1034, 104
      %v2333 = vpop.permute.xlu0 %2332
      %2334 = vrot.lane.b32.xlu0 %v1044, 104
      %v2335 = vpop.permute.xlu0 %2334
      %2336 = vrot.lane.b32.xlu0 %v1049, 104
      %v2337 = vpop.permute.xlu0 %2336
      %2338 = vrot.lane.b32.xlu0 %v1054, 104
      %v2339 = vpop.permute.xlu0 %2338
      %2340 = vrot.lane.b32.xlu0 %v1064, 104
      %v2341 = vpop.permute.xlu0 %2340
      %2342 = vrot.lane.b32.xlu0 %v1069, 104
      %v2343 = vpop.permute.xlu0 %2342
      %2344 = vrot.lane.b32.xlu0 %v1074, 104
      %v2345 = vpop.permute.xlu0 %2344
      %v2394 = vadd.f32 %v2199, %v2251
      %v2395 = vadd.f32 %v2200, %v2253
      %v2396 = vadd.f32 %v2201, %v2255
      %v2397 = vadd.f32 %v2202, %v2257
      %v2398 = vadd.f32 %v2203, %v2259
      %v2399 = vadd.f32 %v2204, %v2261
      %v2400 = vadd.f32 %v2205, %v2263
      %v2401 = vadd.f32 %v2206, %v2265
      %v2402 = vadd.f32 %v2207, %v2267
      %v2403 = vadd.f32 %v2208, %v2269
      %v2404 = vadd.f32 %v2209, %v2271
      %v2405 = vadd.f32 %v2210, %v2273
      %v2406 = vadd.f32 %v2211, %v2275
      %v2407 = vadd.f32 %v2212, %v2277
      %v2408 = vadd.f32 %v2213, %v2279
      %v2409 = vadd.f32 %v2214, %v2281
      %v2410 = vadd.f32 %v2215, %v2283
      %v2411 = vadd.f32 %v2216, %v2285
      %v2412 = vadd.f32 %v2217, %v2287
      %v2413 = vadd.f32 %v2218, %v2289
      %v2414 = vadd.f32 %v2219, %v2291
      %v2415 = vadd.f32 %v2220, %v2293
      %v2416 = vadd.f32 %v2221, %v2295
      %v2417 = vadd.f32 %v2222, %v2297
      %v2418 = vadd.f32 %v2223, %v2299
      %v2419 = vadd.f32 %v2224, %v2301
      %v2420 = vadd.f32 %v2225, %v2303
      %v2421 = vadd.f32 %v2226, %v2305
      %v2422 = vadd.f32 %v2227, %v2307
      %v2423 = vadd.f32 %v2228, %v2309
      %v2424 = vadd.f32 %v2229, %v2311
      %v2425 = vadd.f32 %v2230, %v2313
      %v2426 = vadd.f32 %v2231, %v2315
      %v2427 = vadd.f32 %v2232, %v2317
      %v2428 = vadd.f32 %v2233, %v2319
      %v2429 = vadd.f32 %v2234, %v2321
      %v2430 = vadd.f32 %v2235, %v2323
      %v2431 = vadd.f32 %v2236, %v2325
      %v2432 = vadd.f32 %v2237, %v2327
      %v2433 = vadd.f32 %v2238, %v2329
      %v2434 = vadd.f32 %v2239, %v2331
      %v2435 = vadd.f32 %v2240, %v2333
      %v2436 = vadd.f32 %v2241, %v2335
      %v2437 = vadd.f32 %v2242, %v2337
      %v2438 = vadd.f32 %v2243, %v2339
      %v2439 = vadd.f32 %v2244, %v2341
      %v2440 = vadd.f32 %v2245, %v2343
      %v2441 = vadd.f32 %v2246, %v2345
      %v2442 = vrot.slane %v1069, 1
      %v2443 = vrot.slane %v1074, 1
      %v2444 = vsel %vm1114, %v2442, %v2443
      %2445 = vrot.lane.b32.xlu0 %v1121, 100
      %v2446 = vpop.permute.xlu0 %2445
      %2447 = vrot.lane.b32.xlu0 %v1123, 100
      %v2448 = vpop.permute.xlu0 %2447
      %2449 = vrot.lane.b32.xlu0 %v1122, 100
      %v2450 = vpop.permute.xlu0 %2449
      %2451 = vrot.lane.b32.xlu0 %v1124, 100
      %v2452 = vpop.permute.xlu0 %2451
      %2453 = vrot.lane.b32.xlu0 %v1126, 100
      %v2454 = vpop.permute.xlu0 %2453
      %2455 = vrot.lane.b32.xlu0 %v1125, 100
      %v2456 = vpop.permute.xlu0 %2455
      %2457 = vrot.lane.b32.xlu0 %v1127, 100
      %v2458 = vpop.permute.xlu0 %2457
      %2459 = vrot.lane.b32.xlu0 %v1129, 100
      %v2460 = vpop.permute.xlu0 %2459
      %2461 = vrot.lane.b32.xlu0 %v1128, 100
      %v2462 = vpop.permute.xlu0 %2461
      %2463 = vrot.lane.b32.xlu0 %v1130, 100
      %v2464 = vpop.permute.xlu0 %2463
      %2465 = vrot.lane.b32.xlu0 %v1132, 100
      %v2466 = vpop.permute.xlu0 %2465
      %2467 = vrot.lane.b32.xlu0 %v1131, 100
      %v2468 = vpop.permute.xlu0 %2467
      %2469 = vrot.lane.b32.xlu0 %v1133, 100
      %v2470 = vpop.permute.xlu0 %2469
      %2471 = vrot.lane.b32.xlu0 %v1135, 100
      %v2472 = vpop.permute.xlu0 %2471
      %2473 = vrot.lane.b32.xlu0 %v1134, 100
      %v2474 = vpop.permute.xlu0 %2473
      %2475 = vrot.lane.b32.xlu0 %v1136, 100
      %v2476 = vpop.permute.xlu0 %2475
      %2477 = vrot.lane.b32.xlu0 %v1138, 100
      %v2478 = vpop.permute.xlu0 %2477
      %2479 = vrot.lane.b32.xlu0 %v1137, 100
      %v2480 = vpop.permute.xlu0 %2479
      %2481 = vrot.lane.b32.xlu0 %v1139, 100
      %v2482 = vpop.permute.xlu0 %2481
      %2483 = vrot.lane.b32.xlu0 %v1141, 100
      %v2484 = vpop.permute.xlu0 %2483
      %2485 = vrot.lane.b32.xlu0 %v1140, 100
      %v2486 = vpop.permute.xlu0 %2485
      %2487 = vrot.lane.b32.xlu0 %v1142, 100
      %v2488 = vpop.permute.xlu0 %2487
      %2489 = vrot.lane.b32.xlu0 %v1144, 100
      %v2490 = vpop.permute.xlu0 %2489
      %2491 = vrot.lane.b32.xlu0 %v1143, 100
      %v2492 = vpop.permute.xlu0 %2491
      %2493 = vrot.lane.b32.xlu0 %v1145, 100
      %v2494 = vpop.permute.xlu0 %2493
      %2495 = vrot.lane.b32.xlu0 %v1147, 100
      %v2496 = vpop.permute.xlu0 %2495
      %2497 = vrot.lane.b32.xlu0 %v1146, 100
      %v2498 = vpop.permute.xlu0 %2497
      %2499 = vrot.lane.b32.xlu0 %v1148, 100
      %v2500 = vpop.permute.xlu0 %2499
      %2501 = vrot.lane.b32.xlu0 %v1150, 100
      %v2502 = vpop.permute.xlu0 %2501
      %2503 = vrot.lane.b32.xlu0 %v1149, 100
      %v2504 = vpop.permute.xlu0 %2503
      %2505 = vrot.lane.b32.xlu0 %v1151, 100
      %v2506 = vpop.permute.xlu0 %2505
      %2507 = vrot.lane.b32.xlu0 %v1153, 100
      %v2508 = vpop.permute.xlu0 %2507
      %2509 = vrot.lane.b32.xlu0 %v1152, 100
      %v2510 = vpop.permute.xlu0 %2509
      %2511 = vrot.lane.b32.xlu0 %v1154, 100
      %v2512 = vpop.permute.xlu0 %2511
      %2513 = vrot.lane.b32.xlu0 %v1156, 100
      %v2514 = vpop.permute.xlu0 %2513
      %2515 = vrot.lane.b32.xlu0 %v1155, 100
      %v2516 = vpop.permute.xlu0 %2515
      %2517 = vrot.lane.b32.xlu0 %v1157, 100
      %v2518 = vpop.permute.xlu0 %2517
      %2519 = vrot.lane.b32.xlu0 %v1159, 100
      %v2520 = vpop.permute.xlu0 %2519
      %2521 = vrot.lane.b32.xlu0 %v1158, 100
      %v2522 = vpop.permute.xlu0 %2521
      %2523 = vrot.lane.b32.xlu0 %v1160, 100
      %v2524 = vpop.permute.xlu0 %2523
      %2525 = vrot.lane.b32.xlu0 %v1162, 100
      %v2526 = vpop.permute.xlu0 %2525
      %2527 = vrot.lane.b32.xlu0 %v1161, 100
      %v2528 = vpop.permute.xlu0 %2527
      %2529 = vrot.lane.b32.xlu0 %v1854, 100
      %v2530 = vpop.permute.xlu0 %2529
      %2531 = vrot.lane.b32.xlu0 %v1856, 100
      %v2532 = vpop.permute.xlu0 %2531
      %2533 = vrot.lane.b32.xlu0 %v1855, 100
      %v2534 = vpop.permute.xlu0 %2533
      %2535 = vrot.lane.b32.xlu0 %v2442, 100
      %v2536 = vpop.permute.xlu0 %2535
      %2537 = vrot.lane.b32.xlu0 %v2444, 100
      %v2538 = vpop.permute.xlu0 %2537
      %2539 = vrot.lane.b32.xlu0 %v2443, 100
      %v2540 = vpop.permute.xlu0 %2539
      %v2589 = vadd.f32 %v2394, %v2446
      %v2590 = vadd.f32 %v2395, %v2448
      %v2591 = vadd.f32 %v2396, %v2450
      %v2592 = vadd.f32 %v2397, %v2452
      %v2593 = vadd.f32 %v2398, %v2454
      %v2594 = vadd.f32 %v2399, %v2456
      %v2595 = vadd.f32 %v2400, %v2458
      %v2596 = vadd.f32 %v2401, %v2460
      %v2597 = vadd.f32 %v2402, %v2462
      %v2598 = vadd.f32 %v2403, %v2464
      %v2599 = vadd.f32 %v2404, %v2466
      %v2600 = vadd.f32 %v2405, %v2468
      %v2601 = vadd.f32 %v2406, %v2470
      %v2602 = vadd.f32 %v2407, %v2472
      %v2603 = vadd.f32 %v2408, %v2474
      %v2604 = vadd.f32 %v2409, %v2476
      %v2605 = vadd.f32 %v2410, %v2478
      %v2606 = vadd.f32 %v2411, %v2480
      %v2607 = vadd.f32 %v2412, %v2482
      %v2608 = vadd.f32 %v2413, %v2484
      %v2609 = vadd.f32 %v2414, %v2486
      %v2610 = vadd.f32 %v2415, %v2488
      %v2611 = vadd.f32 %v2416, %v2490
      %v2612 = vadd.f32 %v2417, %v2492
      %v2613 = vadd.f32 %v2418, %v2494
      %v2614 = vadd.f32 %v2419, %v2496
      %v2615 = vadd.f32 %v2420, %v2498
      %v2616 = vadd.f32 %v2421, %v2500
      %v2617 = vadd.f32 %v2422, %v2502
      %v2618 = vadd.f32 %v2423, %v2504
      %v2619 = vadd.f32 %v2424, %v2506
      %v2620 = vadd.f32 %v2425, %v2508
      %v2621 = vadd.f32 %v2426, %v2510
      %v2622 = vadd.f32 %v2427, %v2512
      %v2623 = vadd.f32 %v2428, %v2514
      %v2624 = vadd.f32 %v2429, %v2516
      %v2625 = vadd.f32 %v2430, %v2518
      %v2626 = vadd.f32 %v2431, %v2520
      %v2627 = vadd.f32 %v2432, %v2522
      %v2628 = vadd.f32 %v2433, %v2524
      %v2629 = vadd.f32 %v2434, %v2526
      %v2630 = vadd.f32 %v2435, %v2528
      %v2631 = vadd.f32 %v2436, %v2530
      %v2632 = vadd.f32 %v2437, %v2532
      %v2633 = vadd.f32 %v2438, %v2534
      %v2634 = vadd.f32 %v2439, %v2536
      %v2635 = vadd.f32 %v2440, %v2538
      %v2636 = vadd.f32 %v2441, %v2540
      %v2638 = vrot.slane %v1069, 2
      %v2639 = vrot.slane %v1074, 2
      %v2640 = vsel %vm1371, %v2638, %v2639
      %v2641 = vrot.slane %v1079, 2
      %v2642 = vsel %vm1371, %v2639, %v2641
      %2643 = vrot.lane.b32.xlu0 %v1382, 96
      %v2644 = vpop.permute.xlu0 %2643
      %2645 = vrot.lane.b32.xlu0 %v1384, 96
      %v2646 = vpop.permute.xlu0 %2645
      %2647 = vrot.lane.b32.xlu0 %v1386, 96
      %v2648 = vpop.permute.xlu0 %2647
      %2649 = vrot.lane.b32.xlu0 %v1387, 96
      %v2650 = vpop.permute.xlu0 %2649
      %2651 = vrot.lane.b32.xlu0 %v1389, 96
      %v2652 = vpop.permute.xlu0 %2651
      %2653 = vrot.lane.b32.xlu0 %v1391, 96
      %v2654 = vpop.permute.xlu0 %2653
      %2655 = vrot.lane.b32.xlu0 %v1392, 96
      %v2656 = vpop.permute.xlu0 %2655
      %2657 = vrot.lane.b32.xlu0 %v1394, 96
      %v2658 = vpop.permute.xlu0 %2657
      %2659 = vrot.lane.b32.xlu0 %v1396, 96
      %v2660 = vpop.permute.xlu0 %2659
      %2661 = vrot.lane.b32.xlu0 %v1397, 96
      %v2662 = vpop.permute.xlu0 %2661
      %2663 = vrot.lane.b32.xlu0 %v1399, 96
      %v2664 = vpop.permute.xlu0 %2663
      %2665 = vrot.lane.b32.xlu0 %v1401, 96
      %v2666 = vpop.permute.xlu0 %2665
      %2667 = vrot.lane.b32.xlu0 %v1402, 96
      %v2668 = vpop.permute.xlu0 %2667
      %2669 = vrot.lane.b32.xlu0 %v1404, 96
      %v2670 = vpop.permute.xlu0 %2669
      %2671 = vrot.lane.b32.xlu0 %v1406, 96
      %v2672 = vpop.permute.xlu0 %2671
      %2673 = vrot.lane.b32.xlu0 %v1407, 96
      %v2674 = vpop.permute.xlu0 %2673
      %2675 = vrot.lane.b32.xlu0 %v1409, 96
      %v2676 = vpop.permute.xlu0 %2675
      %2677 = vrot.lane.b32.xlu0 %v1411, 96
      %v2678 = vpop.permute.xlu0 %2677
      %2679 = vrot.lane.b32.xlu0 %v1412, 96
      %v2680 = vpop.permute.xlu0 %2679
      %2681 = vrot.lane.b32.xlu0 %v1414, 96
      %v2682 = vpop.permute.xlu0 %2681
      %2683 = vrot.lane.b32.xlu0 %v1416, 96
      %v2684 = vpop.permute.xlu0 %2683
      %2685 = vrot.lane.b32.xlu0 %v1417, 96
      %v2686 = vpop.permute.xlu0 %2685
      %2687 = vrot.lane.b32.xlu0 %v1419, 96
      %v2688 = vpop.permute.xlu0 %2687
      %2689 = vrot.lane.b32.xlu0 %v1421, 96
      %v2690 = vpop.permute.xlu0 %2689
      %2691 = vrot.lane.b32.xlu0 %v1422, 96
      %v2692 = vpop.permute.xlu0 %2691
      %2693 = vrot.lane.b32.xlu0 %v1424, 96
      %v2694 = vpop.permute.xlu0 %2693
      %2695 = vrot.lane.b32.xlu0 %v1426, 96
      %v2696 = vpop.permute.xlu0 %2695
      %2697 = vrot.lane.b32.xlu0 %v1427, 96
      %v2698 = vpop.permute.xlu0 %2697
      %2699 = vrot.lane.b32.xlu0 %v1429, 96
      %v2700 = vpop.permute.xlu0 %2699
      %2701 = vrot.lane.b32.xlu0 %v1431, 96
      %v2702 = vpop.permute.xlu0 %2701
      %2703 = vrot.lane.b32.xlu0 %v1432, 96
      %v2704 = vpop.permute.xlu0 %2703
      %2705 = vrot.lane.b32.xlu0 %v1434, 96
      %v2706 = vpop.permute.xlu0 %2705
      %2707 = vrot.lane.b32.xlu0 %v1436, 96
      %v2708 = vpop.permute.xlu0 %2707
      %2709 = vrot.lane.b32.xlu0 %v1437, 96
      %v2710 = vpop.permute.xlu0 %2709
      %2711 = vrot.lane.b32.xlu0 %v1439, 96
      %v2712 = vpop.permute.xlu0 %2711
      %2713 = vrot.lane.b32.xlu0 %v1441, 96
      %v2714 = vpop.permute.xlu0 %2713
      %2715 = vrot.lane.b32.xlu0 %v1442, 96
      %v2716 = vpop.permute.xlu0 %2715
      %2717 = vrot.lane.b32.xlu0 %v1444, 96
      %v2718 = vpop.permute.xlu0 %2717
      %2719 = vrot.lane.b32.xlu0 %v1446, 96
      %v2720 = vpop.permute.xlu0 %2719
      %2721 = vrot.lane.b32.xlu0 %v1447, 96
      %v2722 = vpop.permute.xlu0 %2721
      %2723 = vrot.lane.b32.xlu0 %v1449, 96
      %v2724 = vpop.permute.xlu0 %2723
      %2725 = vrot.lane.b32.xlu0 %v1451, 96
      %v2726 = vpop.permute.xlu0 %2725
      %2727 = vrot.lane.b32.xlu0 %v2050, 96
      %v2728 = vpop.permute.xlu0 %2727
      %2729 = vrot.lane.b32.xlu0 %v2052, 96
      %v2730 = vpop.permute.xlu0 %2729
      %2731 = vrot.lane.b32.xlu0 %v2054, 96
      %v2732 = vpop.permute.xlu0 %2731
      %2733 = vrot.lane.b32.xlu0 %v2638, 96
      %v2734 = vpop.permute.xlu0 %2733
      %2735 = vrot.lane.b32.xlu0 %v2640, 96
      %v2736 = vpop.permute.xlu0 %2735
      %2737 = vrot.lane.b32.xlu0 %v2642, 96
      %v2738 = vpop.permute.xlu0 %2737
      %v2787 = vadd.f32 %v2589, %v2644
      %v2788 = vadd.f32 %v2590, %v2646
      %v2789 = vadd.f32 %v2591, %v2648
      %v2790 = vadd.f32 %v2592, %v2650
      %v2791 = vadd.f32 %v2593, %v2652
      %v2792 = vadd.f32 %v2594, %v2654
      %v2793 = vadd.f32 %v2595, %v2656
      %v2794 = vadd.f32 %v2596, %v2658
      %v2795 = vadd.f32 %v2597, %v2660
      %v2796 = vadd.f32 %v2598, %v2662
      %v2797 = vadd.f32 %v2599, %v2664
      %v2798 = vadd.f32 %v2600, %v2666
      %v2799 = vadd.f32 %v2601, %v2668
      %v2800 = vadd.f32 %v2602, %v2670
      %v2801 = vadd.f32 %v2603, %v2672
      %v2802 = vadd.f32 %v2604, %v2674
      %v2803 = vadd.f32 %v2605, %v2676
      %v2804 = vadd.f32 %v2606, %v2678
      %v2805 = vadd.f32 %v2607, %v2680
      %v2806 = vadd.f32 %v2608, %v2682
      %v2807 = vadd.f32 %v2609, %v2684
      %v2808 = vadd.f32 %v2610, %v2686
      %v2809 = vadd.f32 %v2611, %v2688
      %v2810 = vadd.f32 %v2612, %v2690
      %v2811 = vadd.f32 %v2613, %v2692
      %v2812 = vadd.f32 %v2614, %v2694
      %v2813 = vadd.f32 %v2615, %v2696
      %v2814 = vadd.f32 %v2616, %v2698
      %v2815 = vadd.f32 %v2617, %v2700
      %v2816 = vadd.f32 %v2618, %v2702
      %v2817 = vadd.f32 %v2619, %v2704
      %v2818 = vadd.f32 %v2620, %v2706
      %v2819 = vadd.f32 %v2621, %v2708
      %v2820 = vadd.f32 %v2622, %v2710
      %v2821 = vadd.f32 %v2623, %v2712
      %v2822 = vadd.f32 %v2624, %v2714
      %v2823 = vadd.f32 %v2625, %v2716
      %v2824 = vadd.f32 %v2626, %v2718
      %v2825 = vadd.f32 %v2627, %v2720
      %v2826 = vadd.f32 %v2628, %v2722
      %v2827 = vadd.f32 %v2629, %v2724
      %v2828 = vadd.f32 %v2630, %v2726
      %v2829 = vadd.f32 %v2631, %v2728
      %v2830 = vadd.f32 %v2632, %v2730
      %v2831 = vadd.f32 %v2633, %v2732
      %v2832 = vadd.f32 %v2634, %v2734
      %v2833 = vadd.f32 %v2635, %v2736
      %v2834 = vadd.f32 %v2636, %v2738
      %v2836 = vlaneseq
      %v2837 = vshrl.u32 %v2836, 7
      %v2838 = vsub.s32 0, %v2837
      %v2839 = vrot.slane %v364, %v2838
      %v2841 = vadd.f32 %v2787, %v2839
      %v2842 = vadd.f32 %v2788, %v2839
      %v2843 = vadd.f32 %v2789, %v2839
      %v2844 = vadd.f32 %v2790, %v2839
      %v2845 = vadd.f32 %v2791, %v2839
      %v2846 = vadd.f32 %v2792, %v2839
      %v2847 = vadd.f32 %v2793, %v2839
      %v2848 = vadd.f32 %v2794, %v2839
      %v2849 = vadd.f32 %v2795, %v2839
      %v2850 = vadd.f32 %v2796, %v2839
      %v2851 = vadd.f32 %v2797, %v2839
      %v2852 = vadd.f32 %v2798, %v2839
      %v2853 = vadd.f32 %v2799, %v2839
      %v2854 = vadd.f32 %v2800, %v2839
      %v2855 = vadd.f32 %v2801, %v2839
      %v2856 = vadd.f32 %v2802, %v2839
      %v2857 = vadd.f32 %v2803, %v2839
      %v2858 = vadd.f32 %v2804, %v2839
      %v2859 = vadd.f32 %v2805, %v2839
      %v2860 = vadd.f32 %v2806, %v2839
      %v2861 = vadd.f32 %v2807, %v2839
      %v2862 = vadd.f32 %v2808, %v2839
      %v2863 = vadd.f32 %v2809, %v2839
      %v2864 = vadd.f32 %v2810, %v2839
      %v2865 = vadd.f32 %v2811, %v2839
      %v2866 = vadd.f32 %v2812, %v2839
      %v2867 = vadd.f32 %v2813, %v2839
      %v2868 = vadd.f32 %v2814, %v2839
      %v2869 = vadd.f32 %v2815, %v2839
      %v2870 = vadd.f32 %v2816, %v2839
      %v2871 = vadd.f32 %v2817, %v2839
      %v2872 = vadd.f32 %v2818, %v2839
      %v2873 = vadd.f32 %v2819, %v2839
      %v2874 = vadd.f32 %v2820, %v2839
      %v2875 = vadd.f32 %v2821, %v2839
      %v2876 = vadd.f32 %v2822, %v2839
      %v2877 = vadd.f32 %v2823, %v2839
      %v2878 = vadd.f32 %v2824, %v2839
      %v2879 = vadd.f32 %v2825, %v2839
      %v2880 = vadd.f32 %v2826, %v2839
      %v2881 = vadd.f32 %v2827, %v2839
      %v2882 = vadd.f32 %v2828, %v2839
      %v2883 = vadd.f32 %v2829, %v2839
      %v2884 = vadd.f32 %v2830, %v2839
      %v2885 = vadd.f32 %v2831, %v2839
      %v2886 = vadd.f32 %v2832, %v2839
      %v2887 = vadd.f32 %v2833, %v2839
      %v2888 = vadd.f32 %v2834, %v2839
      %v2889 = vmax.f32 %v2841, 0.0
      %v2890 = vmax.f32 %v2842, 0.0
      %v2891 = vmax.f32 %v2843, 0.0
      %v2892 = vmax.f32 %v2844, 0.0
      %v2893 = vmax.f32 %v2845, 0.0
      %v2894 = vmax.f32 %v2846, 0.0
      %v2895 = vmax.f32 %v2847, 0.0
      %v2896 = vmax.f32 %v2848, 0.0
      %v2897 = vmax.f32 %v2849, 0.0
      %v2898 = vmax.f32 %v2850, 0.0
      %v2899 = vmax.f32 %v2851, 0.0
      %v2900 = vmax.f32 %v2852, 0.0
      %v2901 = vmax.f32 %v2853, 0.0
      %v2902 = vmax.f32 %v2854, 0.0
      %v2903 = vmax.f32 %v2855, 0.0
      %v2904 = vmax.f32 %v2856, 0.0
      %v2905 = vmax.f32 %v2857, 0.0
      %v2906 = vmax.f32 %v2858, 0.0
      %v2907 = vmax.f32 %v2859, 0.0
      %v2908 = vmax.f32 %v2860, 0.0
      %v2909 = vmax.f32 %v2861, 0.0
      %v2910 = vmax.f32 %v2862, 0.0
      %v2911 = vmax.f32 %v2863, 0.0
      %v2912 = vmax.f32 %v2864, 0.0
      %v2913 = vmax.f32 %v2865, 0.0
      %v2914 = vmax.f32 %v2866, 0.0
      %v2915 = vmax.f32 %v2867, 0.0
      %v2916 = vmax.f32 %v2868, 0.0
      %v2917 = vmax.f32 %v2869, 0.0
      %v2918 = vmax.f32 %v2870, 0.0
      %v2919 = vmax.f32 %v2871, 0.0
      %v2920 = vmax.f32 %v2872, 0.0
      %v2921 = vmax.f32 %v2873, 0.0
      %v2922 = vmax.f32 %v2874, 0.0
      %v2923 = vmax.f32 %v2875, 0.0
      %v2924 = vmax.f32 %v2876, 0.0
      %v2925 = vmax.f32 %v2877, 0.0
      %v2926 = vmax.f32 %v2878, 0.0
      %v2927 = vmax.f32 %v2879, 0.0
      %v2928 = vmax.f32 %v2880, 0.0
      %v2929 = vmax.f32 %v2881, 0.0
      %v2930 = vmax.f32 %v2882, 0.0
      %v2931 = vmax.f32 %v2883, 0.0
      %v2932 = vmax.f32 %v2884, 0.0
      %v2933 = vmax.f32 %v2885, 0.0
      %v2934 = vmax.f32 %v2886, 0.0
      %v2935 = vmax.f32 %v2887, 0.0
      %v2936 = vmax.f32 %v2888, 0.0
      %vm2937 = vcmask 31751
      %2938 = vst.msk [vmem:[%s330 + $0x1] sm:$0x80] %vm2937, %v2889
      %2939 = vst.msk [vmem:[%s330 + $0x9] sm:$0xff] %vm225, %v2890
      %vm2940 = vcmask 30720
      %2941 = vst.msk [vmem:[%s330 + $0x11] sm:$0x7f] %vm2940, %v2891
      %2942 = vst.msk [vmem:[%s330 + $0x21] sm:$0x80] %vm2937, %v2892
      %2943 = vst.msk [vmem:[%s330 + $0x29] sm:$0xff] %vm225, %v2893
      %2944 = vst.msk [vmem:[%s330 + $0x31] sm:$0x7f] %vm2940, %v2894
      %2945 = vst.msk [vmem:[%s330 + $0x41] sm:$0x80] %vm2937, %v2895
      %2946 = vst.msk [vmem:[%s330 + $0x49] sm:$0xff] %vm225, %v2896
      %2947 = vst.msk [vmem:[%s330 + $0x51] sm:$0x7f] %vm2940, %v2897
      %2948 = vst.msk [vmem:[%s330 + $0x61] sm:$0x80] %vm2937, %v2898
      %2949 = vst.msk [vmem:[%s330 + $0x69] sm:$0xff] %vm225, %v2899
      %2950 = vst.msk [vmem:[%s330 + $0x71] sm:$0x7f] %vm2940, %v2900
      %2951 = vst.msk [vmem:[%s330 + $0x81] sm:$0x80] %vm2937, %v2901
      %2952 = vst.msk [vmem:[%s330 + $0x89] sm:$0xff] %vm225, %v2902
      %2953 = vst.msk [vmem:[%s330 + $0x91] sm:$0x7f] %vm2940, %v2903
      %2954 = vst.msk [vmem:[%s330 + $0xa1] sm:$0x80] %vm2937, %v2904
      %2955 = vst.msk [vmem:[%s330 + $0xa9] sm:$0xff] %vm225, %v2905
      %2956 = vst.msk [vmem:[%s330 + $0xb1] sm:$0x7f] %vm2940, %v2906
      %2957 = vst.msk [vmem:[%s330 + $0xc1] sm:$0x80] %vm2937, %v2907
      %2958 = vst.msk [vmem:[%s330 + $0xc9] sm:$0xff] %vm225, %v2908
      %2959 = vst.msk [vmem:[%s330 + $0xd1] sm:$0x7f] %vm2940, %v2909
      %2960 = vst.msk [vmem:[%s330 + $0xe1] sm:$0x80] %vm2937, %v2910
      %2961 = vst.msk [vmem:[%s330 + $0xe9] sm:$0xff] %vm225, %v2911
      %2962 = vst.msk [vmem:[%s330 + $0xf1] sm:$0x7f] %vm2940, %v2912
      %2963 = vst.msk [vmem:[%s330 + $0x101] sm:$0x80] %vm2937, %v2913
      %2964 = vst.msk [vmem:[%s330 + $0x109] sm:$0xff] %vm225, %v2914
      %2965 = vst.msk [vmem:[%s330 + $0x111] sm:$0x7f] %vm2940, %v2915
      %2966 = vst.msk [vmem:[%s330 + $0x121] sm:$0x80] %vm2937, %v2916
      %2967 = vst.msk [vmem:[%s330 + $0x129] sm:$0xff] %vm225, %v2917
      %2968 = vst.msk [vmem:[%s330 + $0x131] sm:$0x7f] %vm2940, %v2918
      %2969 = vst.msk [vmem:[%s330 + $0x141] sm:$0x80] %vm2937, %v2919
      %2970 = vst.msk [vmem:[%s330 + $0x149] sm:$0xff] %vm225, %v2920
      %2971 = vst.msk [vmem:[%s330 + $0x151] sm:$0x7f] %vm2940, %v2921
      %2972 = vst.msk [vmem:[%s330 + $0x161] sm:$0x80] %vm2937, %v2922
      %2973 = vst.msk [vmem:[%s330 + $0x169] sm:$0xff] %vm225, %v2923
      %2974 = vst.msk [vmem:[%s330 + $0x171] sm:$0x7f] %vm2940, %v2924
      %2975 = vst.msk [vmem:[%s330 + $0x181] sm:$0x80] %vm2937, %v2925
      %2976 = vst.msk [vmem:[%s330 + $0x189] sm:$0xff] %vm225, %v2926
      %2977 = vst.msk [vmem:[%s330 + $0x191] sm:$0x7f] %vm2940, %v2927
      %2978 = vst.msk [vmem:[%s330 + $0x1a1] sm:$0x80] %vm2937, %v2928
      %2979 = vst.msk [vmem:[%s330 + $0x1a9] sm:$0xff] %vm225, %v2929
      %2980 = vst.msk [vmem:[%s330 + $0x1b1] sm:$0x7f] %vm2940, %v2930
      %2981 = vst.msk [vmem:[%s330 + $0x1c1] sm:$0x80] %vm2937, %v2931
      %2982 = vst.msk [vmem:[%s330 + $0x1c9] sm:$0xff] %vm225, %v2932
      %2983 = vst.msk [vmem:[%s330 + $0x1d1] sm:$0x7f] %vm2940, %v2933
      %2984 = vst.msk [vmem:[%s330 + $0x1e1] sm:$0x80] %vm2937, %v2934
      %2985 = vst.msk [vmem:[%s330 + $0x1e9] sm:$0xff] %vm225, %v2935
      %2986 = vst.msk [vmem:[%s330 + $0x1f1] sm:$0x7f] %vm2940, %v2936
      %v2987 = vld [vmem:[%s3] sm:$0xf]
      %v2988 = vld [vmem:[%s4] sm:$0x1]
      %v2989 = vld [vmem:[#allocation2] sm:$0xff]
      %v2990 = vld [vmem:[#allocation2 + $0x8] sm:$0xff]
      %v2991 = vld [vmem:[#allocation2 + $0x10] sm:$0xff]
      %v2992 = vld [vmem:[#allocation2 + $0x18] sm:$0xff]
      %v2993 = vld [vmem:[#allocation2 + $0x20] sm:$0xff]
      %v2994 = vld [vmem:[#allocation2 + $0x28] sm:$0xff]
      %v2995 = vld [vmem:[#allocation2 + $0x30] sm:$0xff]
      %v2996 = vld [vmem:[#allocation2 + $0x38] sm:$0xff]
      %v2997 = vld [vmem:[#allocation2 + $0x40] sm:$0xff]
      %v2998 = vld [vmem:[#allocation2 + $0x48] sm:$0xff]
      %v2999 = vld [vmem:[#allocation2 + $0x50] sm:$0xff]
      %v3000 = vld [vmem:[#allocation2 + $0x58] sm:$0xff]
      %v3001 = vld [vmem:[#allocation2 + $0x60] sm:$0xff]
      %v3002 = vld [vmem:[#allocation2 + $0x68] sm:$0xff]
      %v3003 = vld [vmem:[#allocation2 + $0x70] sm:$0xff]
      %v3004 = vld [vmem:[#allocation2 + $0x78] sm:$0xff]
      %v3005 = vld [vmem:[#allocation2 + $0x80] sm:$0xff]
      %v3006 = vld [vmem:[#allocation2 + $0x88] sm:$0xff]
      %v3007 = vld [vmem:[#allocation2 + $0x90] sm:$0xff]
      %v3008 = vld [vmem:[#allocation2 + $0x98] sm:$0xff]
      %v3009 = vld [vmem:[#allocation2 + $0xa0] sm:$0xff]
      %v3010 = vld [vmem:[#allocation2 + $0xa8] sm:$0xff]
      %v3011 = vld [vmem:[#allocation2 + $0xb0] sm:$0xff]
      %v3012 = vld [vmem:[#allocation2 + $0xb8] sm:$0xff]
      %v3013 = vld [vmem:[#allocation2 + $0xc0] sm:$0xff]
      %v3014 = vld [vmem:[#allocation2 + $0xc8] sm:$0xff]
      %v3015 = vld [vmem:[#allocation2 + $0xd0] sm:$0xff]
      %v3016 = vld [vmem:[#allocation2 + $0xd8] sm:$0xff]
      %v3017 = vld [vmem:[#allocation2 + $0xe0] sm:$0xff]
      %v3018 = vld [vmem:[#allocation2 + $0xe8] sm:$0xff]
      %v3019 = vld [vmem:[#allocation2 + $0xf0] sm:$0xff]
      %v3020 = vld [vmem:[#allocation2 + $0xf8] sm:$0xff]
      %v3021 = vld [vmem:[#allocation2 + $0x100] sm:$0xff]
      %v3022 = vld [vmem:[#allocation2 + $0x108] sm:$0xff]
      %v3023 = vld [vmem:[#allocation2 + $0x110] sm:$0xff]
      %v3024 = vld [vmem:[#allocation2 + $0x118] sm:$0xff]
      %v3025 = vld [vmem:[#allocation2 + $0x120] sm:$0xff]
      %v3026 = vld [vmem:[#allocation2 + $0x128] sm:$0xff]
      %v3027 = vld [vmem:[#allocation2 + $0x130] sm:$0xff]
      %v3028 = vld [vmem:[#allocation2 + $0x138] sm:$0xff]
      %v3029 = vld [vmem:[#allocation2 + $0x140] sm:$0xff]
      %v3030 = vld [vmem:[#allocation2 + $0x148] sm:$0xff]
      %v3031 = vld [vmem:[#allocation2 + $0x150] sm:$0xff]
      %v3032 = vld [vmem:[#allocation2 + $0x158] sm:$0xff]
      %v3033 = vld [vmem:[#allocation2 + $0x160] sm:$0xff]
      %v3034 = vld [vmem:[#allocation2 + $0x168] sm:$0xff]
      %v3035 = vld [vmem:[#allocation2 + $0x170] sm:$0xff]
      %v3036 = vld [vmem:[#allocation2 + $0x178] sm:$0xff]
      %v3037 = vld [vmem:[#allocation2 + $0x180] sm:$0xff]
      %v3038 = vld [vmem:[#allocation2 + $0x188] sm:$0xff]
      %v3039 = vld [vmem:[#allocation2 + $0x190] sm:$0xff]
      %v3040 = vld [vmem:[#allocation2 + $0x198] sm:$0xff]
      %v3041 = vld [vmem:[#allocation2 + $0x1a0] sm:$0xff]
      %v3042 = vld [vmem:[#allocation2 + $0x1a8] sm:$0xff]
      %v3043 = vld [vmem:[#allocation2 + $0x1b0] sm:$0xff]
      %v3044 = vld [vmem:[#allocation2 + $0x1b8] sm:$0xff]
      %v3045 = vld [vmem:[#allocation2 + $0x1c0] sm:$0xff]
      %v3046 = vld [vmem:[#allocation2 + $0x1c8] sm:$0xff]
      %v3047 = vld [vmem:[#allocation2 + $0x1d0] sm:$0xff]
      %v3048 = vld [vmem:[#allocation2 + $0x1d8] sm:$0xff]
      %v3049 = vld [vmem:[#allocation2 + $0x1e0] sm:$0xff]
      %v3050 = vld [vmem:[#allocation2 + $0x1e8] sm:$0xff]
      %v3051 = vld [vmem:[#allocation2 + $0x1f0] sm:$0xff]
      %v3052 = vld [vmem:[#allocation2 + $0x1f8] sm:$0xff]
      %v3053 = vld [vmem:[#allocation2 + $0x200] sm:$0xff]
      %v3054 = vld [vmem:[#allocation2 + $0x208] sm:$0xff]
      %v3055 = vld [vmem:[#allocation2 + $0x210] sm:$0xff]
      %v3056 = vld [vmem:[#allocation2 + $0x218] sm:$0xff]
      %v3057 = vld [vmem:[#allocation2 + $0x220] sm:$0xff]
      %v3058 = vld [vmem:[#allocation2 + $0x228] sm:$0xff]
      %v3059 = vld [vmem:[#allocation2 + $0x230] sm:$0xff]
      %v3060 = vld [vmem:[#allocation2 + $0x238] sm:$0xff]
      %v3062 = vsel %vm225, %v2989, 0
      %v3065 = vsel %vm225, %v2990, 0
      %v3068 = vsel %vm225, %v2991, 0
      %v3071 = vsel %vm225, %v2992, 0
      %v3074 = vsel %vm225, %v2993, 0
      %v3077 = vsel %vm225, %v2994, 0
      %v3080 = vsel %vm225, %v2995, 0
      %v3083 = vsel %vm225, %v2996, 0
      %v3086 = vsel %vm225, %v2997, 0
      %v3089 = vsel %vm225, %v2998, 0
      %v3092 = vsel %vm225, %v2999, 0
      %v3095 = vsel %vm225, %v3000, 0
      %v3098 = vsel %vm225, %v3001, 0
      %v3101 = vsel %vm225, %v3002, 0
      %v3104 = vsel %vm225, %v3003, 0
      %v3107 = vsel %vm225, %v3004, 0
      %v3110 = vsel %vm225, %v3005, 0
      %v3113 = vsel %vm225, %v3006, 0
      %v3116 = vsel %vm225, %v3007, 0
      %v3119 = vsel %vm225, %v3008, 0
      %v3122 = vsel %vm225, %v3009, 0
      %v3125 = vsel %vm225, %v3010, 0
      %v3128 = vsel %vm225, %v3011, 0
      %v3131 = vsel %vm225, %v3012, 0
      %v3134 = vsel %vm225, %v3013, 0
      %v3137 = vsel %vm225, %v3014, 0
      %v3140 = vsel %vm225, %v3015, 0
      %v3143 = vsel %vm225, %v3016, 0
      %v3146 = vsel %vm225, %v3017, 0
      %v3149 = vsel %vm225, %v3018, 0
      %v3152 = vsel %vm225, %v3019, 0
      %v3155 = vsel %vm225, %v3020, 0
      %v3158 = vsel %vm225, %v3021, 0
      %v3161 = vsel %vm225, %v3022, 0
      %v3164 = vsel %vm225, %v3023, 0
      %v3167 = vsel %vm225, %v3024, 0
      %v3170 = vsel %vm225, %v3025, 0
      %v3173 = vsel %vm225, %v3026, 0
      %v3176 = vsel %vm225, %v3027, 0
      %v3179 = vsel %vm225, %v3028, 0
      %v3182 = vsel %vm225, %v3029, 0
      %v3185 = vsel %vm225, %v3030, 0
      %v3188 = vsel %vm225, %v3031, 0
      %v3191 = vsel %vm225, %v3032, 0
      %v3194 = vsel %vm225, %v3033, 0
      %v3197 = vsel %vm225, %v3034, 0
      %v3200 = vsel %vm225, %v3035, 0
      %v3203 = vsel %vm225, %v3036, 0
      %v3206 = vsel %vm225, %v3037, 0
      %v3209 = vsel %vm225, %v3038, 0
      %v3212 = vsel %vm225, %v3039, 0
      %v3215 = vsel %vm225, %v3040, 0
      %v3218 = vsel %vm225, %v3041, 0
      %v3221 = vsel %vm225, %v3042, 0
      %v3224 = vsel %vm225, %v3043, 0
      %v3227 = vsel %vm225, %v3044, 0
      %v3230 = vsel %vm225, %v3045, 0
      %v3233 = vsel %vm225, %v3046, 0
      %v3236 = vsel %vm225, %v3047, 0
      %v3239 = vsel %vm225, %v3048, 0
      %v3242 = vsel %vm225, %v3049, 0
      %v3245 = vsel %vm225, %v3050, 0
      %v3248 = vsel %vm225, %v3051, 0
      %v3251 = vsel %vm225, %v3052, 0
      %v3254 = vsel %vm225, %v3053, 0
      %v3257 = vsel %vm225, %v3054, 0
      %v3260 = vsel %vm225, %v3055, 0
      %v3263 = vsel %vm225, %v3056, 0
      %v3266 = vsel %vm225, %v3057, 0
      %v3269 = vsel %vm225, %v3058, 0
      %v3272 = vsel %vm225, %v3059, 0
      %v3275 = vsel %vm225, %v3060, 0
      %v3278 = vsel %vm653, %v2987, 0
      %3280 = vmatprep.subr.mxu0 0.0
      %3281 = vmatpush1.msra.mxu0 %v3278
      %3282 = vmatprep.subr.mxu0 0.0
      %3283 = vmatpush1.msra.mxu0 0.0
      %3284 = vmatprep.subr.mxu0 0.0
      %3285 = vmatpush1.msra.mxu0 0.0
      %3286 = vmatprep.subr.mxu0 0.0
      %3287 = vmatpush1.msra.mxu0 0.0
      %3288 = vmatprep.subr.mxu0 0.0
      %3289 = vmatpush1.msra.mxu0 0.0
      %3290 = vmatprep.subr.mxu0 0.0
      %3291 = vmatpush1.msra.mxu0 0.0
      %3292 = vmatprep.subr.mxu0 0.0
      %3293 = vmatpush1.msra.mxu0 0.0
      %3294 = vmatprep.subr.mxu0 0.0
      %3295 = vmatpush1.msra.mxu0 0.0
      %3296 = vmatprep.subr.mxu0 0.0
      %3297 = vmatpush1.msra.mxu0 0.0
      %3298 = vmatprep.subr.mxu0 0.0
      %3299 = vmatpush1.msra.mxu0 0.0
      %3300 = vmatprep.subr.mxu0 0.0
      %3301 = vmatpush1.msra.mxu0 0.0
      %3302 = vmatprep.subr.mxu0 0.0
      %3303 = vmatpush1.msra.mxu0 0.0
      %3304 = vmatprep.subr.mxu0 0.0
      %3305 = vmatpush1.msra.mxu0 0.0
      %3306 = vmatprep.subr.mxu0 0.0
      %3307 = vmatpush1.msra.mxu0 0.0
      %3308 = vmatprep.subr.mxu0 0.0
      %3309 = vmatpush1.msra.mxu0 0.0
      %3310 = vmatprep.subr.mxu0 0.0
      %3311 = vmatpush1.msra.mxu0 0.0
      %3312 = vmatprep.subr.mxu0 0.0
      %3313 = vmatpush1.msra.mxu0 0.0
      %3314 = vmatprep.subr.mxu0 0.0
      %3315 = vmatpush1.msra.mxu0 0.0
      %3316 = vmatprep.subr.mxu0 0.0
      %3317 = vmatpush1.msra.mxu0 0.0
      %3318 = vmatprep.subr.mxu0 0.0
      %3319 = vmatpush1.msra.mxu0 0.0
      %3320 = vmatprep.subr.mxu0 0.0
      %3321 = vmatpush1.msra.mxu0 0.0
      %3322 = vmatprep.subr.mxu0 0.0
      %3323 = vmatpush1.msra.mxu0 0.0
      %3324 = vmatprep.subr.mxu0 0.0
      %3325 = vmatpush1.msra.mxu0 0.0
      %3326 = vmatprep.subr.mxu0 0.0
      %3327 = vmatpush1.msra.mxu0 0.0
      %3328 = vmatprep.subr.mxu0 0.0
      %3329 = vmatpush1.msra.mxu0 0.0
      %3330 = vmatprep.subr.mxu0 0.0
      %3331 = vmatpush1.msra.mxu0 0.0
      %3332 = vmatprep.subr.mxu0 0.0
      %3333 = vmatpush1.msra.mxu0 0.0
      %3334 = vmatprep.subr.mxu0 0.0
      %3335 = vmatpush1.msra.mxu0 0.0
      %3336 = vmatprep.subr.mxu0 0.0
      %3337 = vmatpush1.msra.mxu0 0.0
      %3338 = vmatprep.subr.mxu0 0.0
      %3339 = vmatpush1.msra.mxu0 0.0
      %3340 = vmatprep.subr.mxu0 0.0
      %3341 = vmatpush1.msra.mxu0 0.0
      %3342 = vmatprep.subr.mxu0 0.0
      %3343 = vmatpush1.msra.mxu0 0.0
      %3344 = vmatprep.mubr.f32.mxu0 0.0
      %3345 = vmatmul.mubr.f32.gmra.mrb[0].mxu0 %v3062
      %v3346 = vpop.f32.mrb[0].mxu0
      %v3347 = vadd.f32 0.0, %v3346
      %v3348 = vpop.f32.mrb[0].mxu0
      %3349 = vmatprep.mubr.f32.mxu0 0.0
      %3350 = vmatmul.mubr.f32.gmra.mrb[0].mxu0 %v3065
      %v3351 = vpop.f32.mrb[0].mxu0
      %v3352 = vadd.f32 0.0, %v3351
      %v3353 = vpop.f32.mrb[0].mxu0
      %3354 = vmatprep.mubr.f32.mxu0 0.0
      %3355 = vmatmul.mubr.f32.gmra.mrb[0].mxu0 %v3068
      %v3356 = vpop.f32.mrb[0].mxu0
      %v3357 = vadd.f32 0.0, %v3356
      %v3358 = vpop.f32.mrb[0].mxu0
      %3359 = vmatprep.mubr.f32.mxu0 0.0
      %3360 = vmatmul.mubr.f32.gmra.mrb[0].mxu0 %v3071
      %v3361 = vpop.f32.mrb[0].mxu0
      %v3362 = vadd.f32 0.0, %v3361
      %v3363 = vpop.f32.mrb[0].mxu0
      %3364 = vmatprep.mubr.f32.mxu0 0.0
      %3365 = vmatmul.mubr.f32.gmra.mrb[0].mxu0 %v3074
      %v3366 = vpop.f32.mrb[0].mxu0
      %v3367 = vadd.f32 0.0, %v3366
      %v3368 = vpop.f32.mrb[0].mxu0
      %3369 = vmatprep.mubr.f32.mxu0 0.0
      %3370 = vmatmul.mubr.f32.gmra.mrb[0].mxu0 %v3077
      %v3371 = vpop.f32.mrb[0].mxu0
      %v3372 = vadd.f32 0.0, %v3371
      %v3373 = vpop.f32.mrb[0].mxu0
      %3374 = vmatprep.mubr.f32.mxu0 0.0
      %3375 = vmatmul.mubr.f32.gmra.mrb[0].mxu0 %v3080
      %v3376 = vpop.f32.mrb[0].mxu0
      %v3377 = vadd.f32 0.0, %v3376
      %v3378 = vpop.f32.mrb[0].mxu0
      %3379 = vmatprep.mubr.f32.mxu0 0.0
      %3380 = vmatmul.mubr.f32.gmra.mrb[0].mxu0 %v3083
      %v3381 = vpop.f32.mrb[0].mxu0
      %v3382 = vadd.f32 0.0, %v3381
      %v3383 = vpop.f32.mrb[0].mxu0
      %3384 = vmatprep.mubr.f32.mxu0 0.0
      %3385 = vmatmul.mubr.f32.gmra.mrb[0].mxu0 %v3086
      %v3386 = vpop.f32.mrb[0].mxu0
      %v3387 = vadd.f32 0.0, %v3386
      %v3388 = vpop.f32.mrb[0].mxu0
      %3389 = vmatprep.mubr.f32.mxu0 0.0
      %3390 = vmatmul.mubr.f32.gmra.mrb[0].mxu0 %v3089
      %v3391 = vpop.f32.mrb[0].mxu0
      %v3392 = vadd.f32 0.0, %v3391
      %v3393 = vpop.f32.mrb[0].mxu0
      %3394 = vmatprep.mubr.f32.mxu0 0.0
      %3395 = vmatmul.mubr.f32.gmra.mrb[0].mxu0 %v3092
      %v3396 = vpop.f32.mrb[0].mxu0
      %v3397 = vadd.f32 0.0, %v3396
      %v3398 = vpop.f32.mrb[0].mxu0
      %3399 = vmatprep.mubr.f32.mxu0 0.0
      %3400 = vmatmul.mubr.f32.gmra.mrb[0].mxu0 %v3095
      %v3401 = vpop.f32.mrb[0].mxu0
      %v3402 = vadd.f32 0.0, %v3401
      %v3403 = vpop.f32.mrb[0].mxu0
      %3404 = vmatprep.mubr.f32.mxu0 0.0
      %3405 = vmatmul.mubr.f32.gmra.mrb[0].mxu0 %v3098
      %v3406 = vpop.f32.mrb[0].mxu0
      %v3407 = vadd.f32 0.0, %v3406
      %v3408 = vpop.f32.mrb[0].mxu0
      %3409 = vmatprep.mubr.f32.mxu0 0.0
      %3410 = vmatmul.mubr.f32.gmra.mrb[0].mxu0 %v3101
      %v3411 = vpop.f32.mrb[0].mxu0
      %v3412 = vadd.f32 0.0, %v3411
      %v3413 = vpop.f32.mrb[0].mxu0
      %3414 = vmatprep.mubr.f32.mxu0 0.0
      %3415 = vmatmul.mubr.f32.gmra.mrb[0].mxu0 %v3104
      %v3416 = vpop.f32.mrb[0].mxu0
      %v3417 = vadd.f32 0.0, %v3416
      %v3418 = vpop.f32.mrb[0].mxu0
      %3419 = vmatprep.mubr.f32.mxu0 0.0
      %3420 = vmatmul.mubr.f32.gmra.mrb[0].mxu0 %v3107
      %v3421 = vpop.f32.mrb[0].mxu0
      %v3422 = vadd.f32 0.0, %v3421
      %v3423 = vpop.f32.mrb[0].mxu0
      %3424 = vmatprep.mubr.f32.mxu0 0.0
      %3425 = vmatmul.mubr.f32.gmra.mrb[0].mxu0 %v3110
      %v3426 = vpop.f32.mrb[0].mxu0
      %v3427 = vadd.f32 0.0, %v3426
      %v3428 = vpop.f32.mrb[0].mxu0
      %3429 = vmatprep.mubr.f32.mxu0 0.0
      %3430 = vmatmul.mubr.f32.gmra.mrb[0].mxu0 %v3113
      %v3431 = vpop.f32.mrb[0].mxu0
      %v3432 = vadd.f32 0.0, %v3431
      %v3433 = vpop.f32.mrb[0].mxu0
      %3434 = vmatprep.mubr.f32.mxu0 0.0
      %3435 = vmatmul.mubr.f32.gmra.mrb[0].mxu0 %v3116
      %v3436 = vpop.f32.mrb[0].mxu0
      %v3437 = vadd.f32 0.0, %v3436
      %v3438 = vpop.f32.mrb[0].mxu0
      %3439 = vmatprep.mubr.f32.mxu0 0.0
      %3440 = vmatmul.mubr.f32.gmra.mrb[0].mxu0 %v3119
      %v3441 = vpop.f32.mrb[0].mxu0
      %v3442 = vadd.f32 0.0, %v3441
      %v3443 = vpop.f32.mrb[0].mxu0
      %3444 = vmatprep.mubr.f32.mxu0 0.0
      %3445 = vmatmul.mubr.f32.gmra.mrb[0].mxu0 %v3122
      %v3446 = vpop.f32.mrb[0].mxu0
      %v3447 = vadd.f32 0.0, %v3446
      %v3448 = vpop.f32.mrb[0].mxu0
      %3449 = vmatprep.mubr.f32.mxu0 0.0
      %3450 = vmatmul.mubr.f32.gmra.mrb[0].mxu0 %v3125
      %v3451 = vpop.f32.mrb[0].mxu0
      %v3452 = vadd.f32 0.0, %v3451
      %v3453 = vpop.f32.mrb[0].mxu0
      %3454 = vmatprep.mubr.f32.mxu0 0.0
      %3455 = vmatmul.mubr.f32.gmra.mrb[0].mxu0 %v3128
      %v3456 = vpop.f32.mrb[0].mxu0
      %v3457 = vadd.f32 0.0, %v3456
      %v3458 = vpop.f32.mrb[0].mxu0
      %3459 = vmatprep.mubr.f32.mxu0 0.0
      %3460 = vmatmul.mubr.f32.gmra.mrb[0].mxu0 %v3131
      %v3461 = vpop.f32.mrb[0].mxu0
      %v3462 = vadd.f32 0.0, %v3461
      %v3463 = vpop.f32.mrb[0].mxu0
      %3464 = vmatprep.mubr.f32.mxu0 0.0
      %3465 = vmatmul.mubr.f32.gmra.mrb[0].mxu0 %v3134
      %v3466 = vpop.f32.mrb[0].mxu0
      %v3467 = vadd.f32 0.0, %v3466
      %v3468 = vpop.f32.mrb[0].mxu0
      %3469 = vmatprep.mubr.f32.mxu0 0.0
      %3470 = vmatmul.mubr.f32.gmra.mrb[0].mxu0 %v3137
      %v3471 = vpop.f32.mrb[0].mxu0
      %v3472 = vadd.f32 0.0, %v3471
      %v3473 = vpop.f32.mrb[0].mxu0
      %3474 = vmatprep.mubr.f32.mxu0 0.0
      %3475 = vmatmul.mubr.f32.gmra.mrb[0].mxu0 %v3140
      %v3476 = vpop.f32.mrb[0].mxu0
      %v3477 = vadd.f32 0.0, %v3476
      %v3478 = vpop.f32.mrb[0].mxu0
      %3479 = vmatprep.mubr.f32.mxu0 0.0
      %3480 = vmatmul.mubr.f32.gmra.mrb[0].mxu0 %v3143
      %v3481 = vpop.f32.mrb[0].mxu0
      %v3482 = vadd.f32 0.0, %v3481
      %v3483 = vpop.f32.mrb[0].mxu0
      %3484 = vmatprep.mubr.f32.mxu0 0.0
      %3485 = vmatmul.mubr.f32.gmra.mrb[0].mxu0 %v3146
      %v3486 = vpop.f32.mrb[0].mxu0
      %v3487 = vadd.f32 0.0, %v3486
      %v3488 = vpop.f32.mrb[0].mxu0
      %3489 = vmatprep.mubr.f32.mxu0 0.0
      %3490 = vmatmul.mubr.f32.gmra.mrb[0].mxu0 %v3149
      %v3491 = vpop.f32.mrb[0].mxu0
      %v3492 = vadd.f32 0.0, %v3491
      %v3493 = vpop.f32.mrb[0].mxu0
      %3494 = vmatprep.mubr.f32.mxu0 0.0
      %3495 = vmatmul.mubr.f32.gmra.mrb[0].mxu0 %v3152
      %v3496 = vpop.f32.mrb[0].mxu0
      %v3497 = vadd.f32 0.0, %v3496
      %v3498 = vpop.f32.mrb[0].mxu0
      %3499 = vmatprep.mubr.f32.mxu0 0.0
      %3500 = vmatmul.mubr.f32.gmra.mrb[0].mxu0 %v3155
      %v3501 = vpop.f32.mrb[0].mxu0
      %v3502 = vadd.f32 0.0, %v3501
      %v3503 = vpop.f32.mrb[0].mxu0
      %3504 = vmatprep.mubr.f32.mxu0 0.0
      %3505 = vmatmul.mubr.f32.gmra.mrb[0].mxu0 %v3158
      %v3506 = vpop.f32.mrb[0].mxu0
      %v3507 = vadd.f32 0.0, %v3506
      %v3508 = vpop.f32.mrb[0].mxu0
      %3509 = vmatprep.mubr.f32.mxu0 0.0
      %3510 = vmatmul.mubr.f32.gmra.mrb[0].mxu0 %v3161
      %v3511 = vpop.f32.mrb[0].mxu0
      %v3512 = vadd.f32 0.0, %v3511
      %v3513 = vpop.f32.mrb[0].mxu0
      %3514 = vmatprep.mubr.f32.mxu0 0.0
      %3515 = vmatmul.mubr.f32.gmra.mrb[0].mxu0 %v3164
      %v3516 = vpop.f32.mrb[0].mxu0
      %v3517 = vadd.f32 0.0, %v3516
      %v3518 = vpop.f32.mrb[0].mxu0
      %3519 = vmatprep.mubr.f32.mxu0 0.0
      %3520 = vmatmul.mubr.f32.gmra.mrb[0].mxu0 %v3167
      %v3521 = vpop.f32.mrb[0].mxu0
      %v3522 = vadd.f32 0.0, %v3521
      %v3523 = vpop.f32.mrb[0].mxu0
      %3524 = vmatprep.mubr.f32.mxu0 0.0
      %3525 = vmatmul.mubr.f32.gmra.mrb[0].mxu0 %v3170
      %v3526 = vpop.f32.mrb[0].mxu0
      %v3527 = vadd.f32 0.0, %v3526
      %v3528 = vpop.f32.mrb[0].mxu0
      %3529 = vmatprep.mubr.f32.mxu0 0.0
      %3530 = vmatmul.mubr.f32.gmra.mrb[0].mxu0 %v3173
      %v3531 = vpop.f32.mrb[0].mxu0
      %v3532 = vadd.f32 0.0, %v3531
      %v3533 = vpop.f32.mrb[0].mxu0
      %3534 = vmatprep.mubr.f32.mxu0 0.0
      %3535 = vmatmul.mubr.f32.gmra.mrb[0].mxu0 %v3176
      %v3536 = vpop.f32.mrb[0].mxu0
      %v3537 = vadd.f32 0.0, %v3536
      %v3538 = vpop.f32.mrb[0].mxu0
      %3539 = vmatprep.mubr.f32.mxu0 0.0
      %3540 = vmatmul.mubr.f32.gmra.mrb[0].mxu0 %v3179
      %v3541 = vpop.f32.mrb[0].mxu0
      %v3542 = vadd.f32 0.0, %v3541
      %v3543 = vpop.f32.mrb[0].mxu0
      %3544 = vmatprep.mubr.f32.mxu0 0.0
      %3545 = vmatmul.mubr.f32.gmra.mrb[0].mxu0 %v3182
      %v3546 = vpop.f32.mrb[0].mxu0
      %v3547 = vadd.f32 0.0, %v3546
      %v3548 = vpop.f32.mrb[0].mxu0
      %3549 = vmatprep.mubr.f32.mxu0 0.0
      %3550 = vmatmul.mubr.f32.gmra.mrb[0].mxu0 %v3185
      %v3551 = vpop.f32.mrb[0].mxu0
      %v3552 = vadd.f32 0.0, %v3551
      %v3553 = vpop.f32.mrb[0].mxu0
      %3554 = vmatprep.mubr.f32.mxu0 0.0
      %3555 = vmatmul.mubr.f32.gmra.mrb[0].mxu0 %v3188
      %v3556 = vpop.f32.mrb[0].mxu0
      %v3557 = vadd.f32 0.0, %v3556
      %v3558 = vpop.f32.mrb[0].mxu0
      %3559 = vmatprep.mubr.f32.mxu0 0.0
      %3560 = vmatmul.mubr.f32.gmra.mrb[0].mxu0 %v3191
      %v3561 = vpop.f32.mrb[0].mxu0
      %v3562 = vadd.f32 0.0, %v3561
      %v3563 = vpop.f32.mrb[0].mxu0
      %3564 = vmatprep.mubr.f32.mxu0 0.0
      %3565 = vmatmul.mubr.f32.gmra.mrb[0].mxu0 %v3194
      %v3566 = vpop.f32.mrb[0].mxu0
      %v3567 = vadd.f32 0.0, %v3566
      %v3568 = vpop.f32.mrb[0].mxu0
      %3569 = vmatprep.mubr.f32.mxu0 0.0
      %3570 = vmatmul.mubr.f32.gmra.mrb[0].mxu0 %v3197
      %v3571 = vpop.f32.mrb[0].mxu0
      %v3572 = vadd.f32 0.0, %v3571
      %v3573 = vpop.f32.mrb[0].mxu0
      %3574 = vmatprep.mubr.f32.mxu0 0.0
      %3575 = vmatmul.mubr.f32.gmra.mrb[0].mxu0 %v3200
      %v3576 = vpop.f32.mrb[0].mxu0
      %v3577 = vadd.f32 0.0, %v3576
      %v3578 = vpop.f32.mrb[0].mxu0
      %3579 = vmatprep.mubr.f32.mxu0 0.0
      %3580 = vmatmul.mubr.f32.gmra.mrb[0].mxu0 %v3203
      %v3581 = vpop.f32.mrb[0].mxu0
      %v3582 = vadd.f32 0.0, %v3581
      %v3583 = vpop.f32.mrb[0].mxu0
      %3584 = vmatprep.mubr.f32.mxu0 0.0
      %3585 = vmatmul.mubr.f32.gmra.mrb[0].mxu0 %v3206
      %v3586 = vpop.f32.mrb[0].mxu0
      %v3587 = vadd.f32 0.0, %v3586
      %v3588 = vpop.f32.mrb[0].mxu0
      %3589 = vmatprep.mubr.f32.mxu0 0.0
      %3590 = vmatmul.mubr.f32.gmra.mrb[0].mxu0 %v3209
      %v3591 = vpop.f32.mrb[0].mxu0
      %v3592 = vadd.f32 0.0, %v3591
      %v3593 = vpop.f32.mrb[0].mxu0
      %3594 = vmatprep.mubr.f32.mxu0 0.0
      %3595 = vmatmul.mubr.f32.gmra.mrb[0].mxu0 %v3212
      %v3596 = vpop.f32.mrb[0].mxu0
      %v3597 = vadd.f32 0.0, %v3596
      %v3598 = vpop.f32.mrb[0].mxu0
      %3599 = vmatprep.mubr.f32.mxu0 0.0
      %3600 = vmatmul.mubr.f32.gmra.mrb[0].mxu0 %v3215
      %v3601 = vpop.f32.mrb[0].mxu0
      %v3602 = vadd.f32 0.0, %v3601
      %v3603 = vpop.f32.mrb[0].mxu0
      %3604 = vmatprep.mubr.f32.mxu0 0.0
      %3605 = vmatmul.mubr.f32.gmra.mrb[0].mxu0 %v3218
      %v3606 = vpop.f32.mrb[0].mxu0
      %v3607 = vadd.f32 0.0, %v3606
      %v3608 = vpop.f32.mrb[0].mxu0
      %3609 = vmatprep.mubr.f32.mxu0 0.0
      %3610 = vmatmul.mubr.f32.gmra.mrb[0].mxu0 %v3221
      %v3611 = vpop.f32.mrb[0].mxu0
      %v3612 = vadd.f32 0.0, %v3611
      %v3613 = vpop.f32.mrb[0].mxu0
      %3614 = vmatprep.mubr.f32.mxu0 0.0
      %3615 = vmatmul.mubr.f32.gmra.mrb[0].mxu0 %v3224
      %v3616 = vpop.f32.mrb[0].mxu0
      %v3617 = vadd.f32 0.0, %v3616
      %v3618 = vpop.f32.mrb[0].mxu0
      %3619 = vmatprep.mubr.f32.mxu0 0.0
      %3620 = vmatmul.mubr.f32.gmra.mrb[0].mxu0 %v3227
      %v3621 = vpop.f32.mrb[0].mxu0
      %v3622 = vadd.f32 0.0, %v3621
      %v3623 = vpop.f32.mrb[0].mxu0
      %3624 = vmatprep.mubr.f32.mxu0 0.0
      %3625 = vmatmul.mubr.f32.gmra.mrb[0].mxu0 %v3230
      %v3626 = vpop.f32.mrb[0].mxu0
      %v3627 = vadd.f32 0.0, %v3626
      %v3628 = vpop.f32.mrb[0].mxu0
      %3629 = vmatprep.mubr.f32.mxu0 0.0
      %3630 = vmatmul.mubr.f32.gmra.mrb[0].mxu0 %v3233
      %v3631 = vpop.f32.mrb[0].mxu0
      %v3632 = vadd.f32 0.0, %v3631
      %v3633 = vpop.f32.mrb[0].mxu0
      %3634 = vmatprep.mubr.f32.mxu0 0.0
      %3635 = vmatmul.mubr.f32.gmra.mrb[0].mxu0 %v3236
      %v3636 = vpop.f32.mrb[0].mxu0
      %v3637 = vadd.f32 0.0, %v3636
      %v3638 = vpop.f32.mrb[0].mxu0
      %3639 = vmatprep.mubr.f32.mxu0 0.0
      %3640 = vmatmul.mubr.f32.gmra.mrb[0].mxu0 %v3239
      %v3641 = vpop.f32.mrb[0].mxu0
      %v3642 = vadd.f32 0.0, %v3641
      %v3643 = vpop.f32.mrb[0].mxu0
      %3644 = vmatprep.mubr.f32.mxu0 0.0
      %3645 = vmatmul.mubr.f32.gmra.mrb[0].mxu0 %v3242
      %v3646 = vpop.f32.mrb[0].mxu0
      %v3647 = vadd.f32 0.0, %v3646
      %v3648 = vpop.f32.mrb[0].mxu0
      %3649 = vmatprep.mubr.f32.mxu0 0.0
      %3650 = vmatmul.mubr.f32.gmra.mrb[0].mxu0 %v3245
      %v3651 = vpop.f32.mrb[0].mxu0
      %v3652 = vadd.f32 0.0, %v3651
      %v3653 = vpop.f32.mrb[0].mxu0
      %3654 = vmatprep.mubr.f32.mxu0 0.0
      %3655 = vmatmul.mubr.f32.gmra.mrb[0].mxu0 %v3248
      %v3656 = vpop.f32.mrb[0].mxu0
      %v3657 = vadd.f32 0.0, %v3656
      %v3658 = vpop.f32.mrb[0].mxu0
      %3659 = vmatprep.mubr.f32.mxu0 0.0
      %3660 = vmatmul.mubr.f32.gmra.mrb[0].mxu0 %v3251
      %v3661 = vpop.f32.mrb[0].mxu0
      %v3662 = vadd.f32 0.0, %v3661
      %v3663 = vpop.f32.mrb[0].mxu0
      %3664 = vmatprep.mubr.f32.mxu0 0.0
      %3665 = vmatmul.mubr.f32.gmra.mrb[0].mxu0 %v3254
      %v3666 = vpop.f32.mrb[0].mxu0
      %v3667 = vadd.f32 0.0, %v3666
      %v3668 = vpop.f32.mrb[0].mxu0
      %3669 = vmatprep.mubr.f32.mxu0 0.0
      %3670 = vmatmul.mubr.f32.gmra.mrb[0].mxu0 %v3257
      %v3671 = vpop.f32.mrb[0].mxu0
      %v3672 = vadd.f32 0.0, %v3671
      %v3673 = vpop.f32.mrb[0].mxu0
      %3674 = vmatprep.mubr.f32.mxu0 0.0
      %3675 = vmatmul.mubr.f32.gmra.mrb[0].mxu0 %v3260
      %v3676 = vpop.f32.mrb[0].mxu0
      %v3677 = vadd.f32 0.0, %v3676
      %v3678 = vpop.f32.mrb[0].mxu0
      %3679 = vmatprep.mubr.f32.mxu0 0.0
      %3680 = vmatmul.mubr.f32.gmra.mrb[0].mxu0 %v3263
      %v3681 = vpop.f32.mrb[0].mxu0
      %v3682 = vadd.f32 0.0, %v3681
      %v3683 = vpop.f32.mrb[0].mxu0
      %3684 = vmatprep.mubr.f32.mxu0 0.0
      %3685 = vmatmul.mubr.f32.gmra.mrb[0].mxu0 %v3266
      %v3686 = vpop.f32.mrb[0].mxu0
      %v3687 = vadd.f32 0.0, %v3686
      %v3688 = vpop.f32.mrb[0].mxu0
      %3689 = vmatprep.mubr.f32.mxu0 0.0
      %3690 = vmatmul.mubr.f32.gmra.mrb[0].mxu0 %v3269
      %v3691 = vpop.f32.mrb[0].mxu0
      %v3692 = vadd.f32 0.0, %v3691
      %v3693 = vpop.f32.mrb[0].mxu0
      %3694 = vmatprep.mubr.f32.mxu0 0.0
      %3695 = vmatmul.mubr.f32.gmra.mrb[0].mxu0 %v3272
      %v3696 = vpop.f32.mrb[0].mxu0
      %v3697 = vadd.f32 0.0, %v3696
      %v3698 = vpop.f32.mrb[0].mxu0
      %3699 = vmatprep.mubr.f32.mxu0 0.0
      %3700 = vmatmul.mubr.f32.gmra.mrb[0].mxu0 %v3275
      %v3701 = vpop.f32.mrb[0].mxu0
      %v3702 = vadd.f32 0.0, %v3701
      %v3703 = vpop.f32.mrb[0].mxu0
      %3704 = vdwg.mxu0
      %v3737 = vrot.slane %v3352, 1
      %v3738 = vrot.slane %v3357, 1
      %v3739 = vsel %vm1114, %v3737, %v3738
      %v3740 = vrot.slane %v3372, 1
      %v3741 = vrot.slane %v3377, 1
      %v3742 = vsel %vm1114, %v3740, %v3741
      %v3743 = vrot.slane %v3392, 1
      %v3744 = vrot.slane %v3397, 1
      %v3745 = vsel %vm1114, %v3743, %v3744
      %v3746 = vrot.slane %v3412, 1
      %v3747 = vrot.slane %v3417, 1
      %v3748 = vsel %vm1114, %v3746, %v3747
      %v3749 = vrot.slane %v3432, 1
      %v3750 = vrot.slane %v3437, 1
      %v3751 = vsel %vm1114, %v3749, %v3750
      %v3752 = vrot.slane %v3452, 1
      %v3753 = vrot.slane %v3457, 1
      %v3754 = vsel %vm1114, %v3752, %v3753
      %v3755 = vrot.slane %v3472, 1
      %v3756 = vrot.slane %v3477, 1
      %v3757 = vsel %vm1114, %v3755, %v3756
      %v3758 = vrot.slane %v3492, 1
      %v3759 = vrot.slane %v3497, 1
      %v3760 = vsel %vm1114, %v3758, %v3759
      %v3761 = vrot.slane %v3512, 1
      %v3762 = vrot.slane %v3517, 1
      %v3763 = vsel %vm1114, %v3761, %v3762
      %v3764 = vrot.slane %v3532, 1
      %v3765 = vrot.slane %v3537, 1
      %v3766 = vsel %vm1114, %v3764, %v3765
      %v3767 = vrot.slane %v3552, 1
      %v3768 = vrot.slane %v3557, 1
      %v3769 = vsel %vm1114, %v3767, %v3768
      %v3770 = vrot.slane %v3572, 1
      %v3771 = vrot.slane %v3577, 1
      %v3772 = vsel %vm1114, %v3770, %v3771
      %v3773 = vrot.slane %v3592, 1
      %v3774 = vrot.slane %v3597, 1
      %v3775 = vsel %vm1114, %v3773, %v3774
      %v3776 = vrot.slane %v3612, 1
      %v3777 = vrot.slane %v3617, 1
      %v3778 = vsel %vm1114, %v3776, %v3777
      %v3779 = vrot.slane %v3632, 1
      %v3780 = vrot.slane %v3637, 1
      %v3781 = vsel %vm1114, %v3779, %v3780
      %v3782 = vrot.slane %v3652, 1
      %v3783 = vrot.slane %v3657, 1
      %v3784 = vsel %vm1114, %v3782, %v3783
      %3785 = vrot.lane.b32.xlu0 %v3737, 124
      %v3786 = vpop.permute.xlu0 %3785
      %3787 = vrot.lane.b32.xlu0 %v3739, 124
      %v3788 = vpop.permute.xlu0 %3787
      %3789 = vrot.lane.b32.xlu0 %v3738, 124
      %v3790 = vpop.permute.xlu0 %3789
      %3791 = vrot.lane.b32.xlu0 %v3740, 124
      %v3792 = vpop.permute.xlu0 %3791
      %3793 = vrot.lane.b32.xlu0 %v3742, 124
      %v3794 = vpop.permute.xlu0 %3793
      %3795 = vrot.lane.b32.xlu0 %v3741, 124
      %v3796 = vpop.permute.xlu0 %3795
      %3797 = vrot.lane.b32.xlu0 %v3743, 124
      %v3798 = vpop.permute.xlu0 %3797
      %3799 = vrot.lane.b32.xlu0 %v3745, 124
      %v3800 = vpop.permute.xlu0 %3799
      %3801 = vrot.lane.b32.xlu0 %v3744, 124
      %v3802 = vpop.permute.xlu0 %3801
      %3803 = vrot.lane.b32.xlu0 %v3746, 124
      %v3804 = vpop.permute.xlu0 %3803
      %3805 = vrot.lane.b32.xlu0 %v3748, 124
      %v3806 = vpop.permute.xlu0 %3805
      %3807 = vrot.lane.b32.xlu0 %v3747, 124
      %v3808 = vpop.permute.xlu0 %3807
      %3809 = vrot.lane.b32.xlu0 %v3749, 124
      %v3810 = vpop.permute.xlu0 %3809
      %3811 = vrot.lane.b32.xlu0 %v3751, 124
      %v3812 = vpop.permute.xlu0 %3811
      %3813 = vrot.lane.b32.xlu0 %v3750, 124
      %v3814 = vpop.permute.xlu0 %3813
      %3815 = vrot.lane.b32.xlu0 %v3752, 124
      %v3816 = vpop.permute.xlu0 %3815
      %3817 = vrot.lane.b32.xlu0 %v3754, 124
      %v3818 = vpop.permute.xlu0 %3817
      %3819 = vrot.lane.b32.xlu0 %v3753, 124
      %v3820 = vpop.permute.xlu0 %3819
      %3821 = vrot.lane.b32.xlu0 %v3755, 124
      %v3822 = vpop.permute.xlu0 %3821
      %3823 = vrot.lane.b32.xlu0 %v3757, 124
      %v3824 = vpop.permute.xlu0 %3823
      %3825 = vrot.lane.b32.xlu0 %v3756, 124
      %v3826 = vpop.permute.xlu0 %3825
      %3827 = vrot.lane.b32.xlu0 %v3758, 124
      %v3828 = vpop.permute.xlu0 %3827
      %3829 = vrot.lane.b32.xlu0 %v3760, 124
      %v3830 = vpop.permute.xlu0 %3829
      %3831 = vrot.lane.b32.xlu0 %v3759, 124
      %v3832 = vpop.permute.xlu0 %3831
      %3833 = vrot.lane.b32.xlu0 %v3761, 124
      %v3834 = vpop.permute.xlu0 %3833
      %3835 = vrot.lane.b32.xlu0 %v3763, 124
      %v3836 = vpop.permute.xlu0 %3835
      %3837 = vrot.lane.b32.xlu0 %v3762, 124
      %v3838 = vpop.permute.xlu0 %3837
      %3839 = vrot.lane.b32.xlu0 %v3764, 124
      %v3840 = vpop.permute.xlu0 %3839
      %3841 = vrot.lane.b32.xlu0 %v3766, 124
      %v3842 = vpop.permute.xlu0 %3841
      %3843 = vrot.lane.b32.xlu0 %v3765, 124
      %v3844 = vpop.permute.xlu0 %3843
      %3845 = vrot.lane.b32.xlu0 %v3767, 124
      %v3846 = vpop.permute.xlu0 %3845
      %3847 = vrot.lane.b32.xlu0 %v3769, 124
      %v3848 = vpop.permute.xlu0 %3847
      %3849 = vrot.lane.b32.xlu0 %v3768, 124
      %v3850 = vpop.permute.xlu0 %3849
      %3851 = vrot.lane.b32.xlu0 %v3770, 124
      %v3852 = vpop.permute.xlu0 %3851
      %3853 = vrot.lane.b32.xlu0 %v3772, 124
      %v3854 = vpop.permute.xlu0 %3853
      %3855 = vrot.lane.b32.xlu0 %v3771, 124
      %v3856 = vpop.permute.xlu0 %3855
      %3857 = vrot.lane.b32.xlu0 %v3773, 124
      %v3858 = vpop.permute.xlu0 %3857
      %3859 = vrot.lane.b32.xlu0 %v3775, 124
      %v3860 = vpop.permute.xlu0 %3859
      %3861 = vrot.lane.b32.xlu0 %v3774, 124
      %v3862 = vpop.permute.xlu0 %3861
      %3863 = vrot.lane.b32.xlu0 %v3776, 124
      %v3864 = vpop.permute.xlu0 %3863
      %3865 = vrot.lane.b32.xlu0 %v3778, 124
      %v3866 = vpop.permute.xlu0 %3865
      %3867 = vrot.lane.b32.xlu0 %v3777, 124
      %v3868 = vpop.permute.xlu0 %3867
      %3869 = vrot.lane.b32.xlu0 %v3779, 124
      %v3870 = vpop.permute.xlu0 %3869
      %3871 = vrot.lane.b32.xlu0 %v3781, 124
      %v3872 = vpop.permute.xlu0 %3871
      %3873 = vrot.lane.b32.xlu0 %v3780, 124
      %v3874 = vpop.permute.xlu0 %3873
      %3875 = vrot.lane.b32.xlu0 %v3782, 124
      %v3876 = vpop.permute.xlu0 %3875
      %3877 = vrot.lane.b32.xlu0 %v3784, 124
      %v3878 = vpop.permute.xlu0 %3877
      %3879 = vrot.lane.b32.xlu0 %v3783, 124
      %v3880 = vpop.permute.xlu0 %3879
      %v3929 = vadd.f32 %v3347, %v3786
      %v3930 = vadd.f32 %v3352, %v3788
      %v3931 = vadd.f32 %v3357, %v3790
      %v3932 = vadd.f32 %v3367, %v3792
      %v3933 = vadd.f32 %v3372, %v3794
      %v3934 = vadd.f32 %v3377, %v3796
      %v3935 = vadd.f32 %v3387, %v3798
      %v3936 = vadd.f32 %v3392, %v3800
      %v3937 = vadd.f32 %v3397, %v3802
      %v3938 = vadd.f32 %v3407, %v3804
      %v3939 = vadd.f32 %v3412, %v3806
      %v3940 = vadd.f32 %v3417, %v3808
      %v3941 = vadd.f32 %v3427, %v3810
      %v3942 = vadd.f32 %v3432, %v3812
      %v3943 = vadd.f32 %v3437, %v3814
      %v3944 = vadd.f32 %v3447, %v3816
      %v3945 = vadd.f32 %v3452, %v3818
      %v3946 = vadd.f32 %v3457, %v3820
      %v3947 = vadd.f32 %v3467, %v3822
      %v3948 = vadd.f32 %v3472, %v3824
      %v3949 = vadd.f32 %v3477, %v3826
      %v3950 = vadd.f32 %v3487, %v3828
      %v3951 = vadd.f32 %v3492, %v3830
      %v3952 = vadd.f32 %v3497, %v3832
      %v3953 = vadd.f32 %v3507, %v3834
      %v3954 = vadd.f32 %v3512, %v3836
      %v3955 = vadd.f32 %v3517, %v3838
      %v3956 = vadd.f32 %v3527, %v3840
      %v3957 = vadd.f32 %v3532, %v3842
      %v3958 = vadd.f32 %v3537, %v3844
      %v3959 = vadd.f32 %v3547, %v3846
      %v3960 = vadd.f32 %v3552, %v3848
      %v3961 = vadd.f32 %v3557, %v3850
      %v3962 = vadd.f32 %v3567, %v3852
      %v3963 = vadd.f32 %v3572, %v3854
      %v3964 = vadd.f32 %v3577, %v3856
      %v3965 = vadd.f32 %v3587, %v3858
      %v3966 = vadd.f32 %v3592, %v3860
      %v3967 = vadd.f32 %v3597, %v3862
      %v3968 = vadd.f32 %v3607, %v3864
      %v3969 = vadd.f32 %v3612, %v3866
      %v3970 = vadd.f32 %v3617, %v3868
      %v3971 = vadd.f32 %v3627, %v3870
      %v3972 = vadd.f32 %v3632, %v3872
      %v3973 = vadd.f32 %v3637, %v3874
      %v3974 = vadd.f32 %v3647, %v3876
      %v3975 = vadd.f32 %v3652, %v3878
      %v3976 = vadd.f32 %v3657, %v3880
      %v3993 = vrot.slane %v3352, 2
      %v3994 = vrot.slane %v3357, 2
      %v3995 = vsel %vm1371, %v3993, %v3994
      %v3996 = vrot.slane %v3362, 2
      %v3997 = vsel %vm1371, %v3994, %v3996
      %v3998 = vrot.slane %v3372, 2
      %v3999 = vrot.slane %v3377, 2
      %v4000 = vsel %vm1371, %v3998, %v3999
      %v4001 = vrot.slane %v3382, 2
      %v4002 = vsel %vm1371, %v3999, %v4001
      %v4003 = vrot.slane %v3392, 2
      %v4004 = vrot.slane %v3397, 2
      %v4005 = vsel %vm1371, %v4003, %v4004
      %v4006 = vrot.slane %v3402, 2
      %v4007 = vsel %vm1371, %v4004, %v4006
      %v4008 = vrot.slane %v3412, 2
      %v4009 = vrot.slane %v3417, 2
      %v4010 = vsel %vm1371, %v4008, %v4009
      %v4011 = vrot.slane %v3422, 2
      %v4012 = vsel %vm1371, %v4009, %v4011
      %v4013 = vrot.slane %v3432, 2
      %v4014 = vrot.slane %v3437, 2
      %v4015 = vsel %vm1371, %v4013, %v4014
      %v4016 = vrot.slane %v3442, 2
      %v4017 = vsel %vm1371, %v4014, %v4016
      %v4018 = vrot.slane %v3452, 2
      %v4019 = vrot.slane %v3457, 2
      %v4020 = vsel %vm1371, %v4018, %v4019
      %v4021 = vrot.slane %v3462, 2
      %v4022 = vsel %vm1371, %v4019, %v4021
      %v4023 = vrot.slane %v3472, 2
      %v4024 = vrot.slane %v3477, 2
      %v4025 = vsel %vm1371, %v4023, %v4024
      %v4026 = vrot.slane %v3482, 2
      %v4027 = vsel %vm1371, %v4024, %v4026
      %v4028 = vrot.slane %v3492, 2
      %v4029 = vrot.slane %v3497, 2
      %v4030 = vsel %vm1371, %v4028, %v4029
      %v4031 = vrot.slane %v3502, 2
      %v4032 = vsel %vm1371, %v4029, %v4031
      %v4033 = vrot.slane %v3512, 2
      %v4034 = vrot.slane %v3517, 2
      %v4035 = vsel %vm1371, %v4033, %v4034
      %v4036 = vrot.slane %v3522, 2
      %v4037 = vsel %vm1371, %v4034, %v4036
      %v4038 = vrot.slane %v3532, 2
      %v4039 = vrot.slane %v3537, 2
      %v4040 = vsel %vm1371, %v4038, %v4039
      %v4041 = vrot.slane %v3542, 2
      %v4042 = vsel %vm1371, %v4039, %v4041
      %v4043 = vrot.slane %v3552, 2
      %v4044 = vrot.slane %v3557, 2
      %v4045 = vsel %vm1371, %v4043, %v4044
      %v4046 = vrot.slane %v3562, 2
      %v4047 = vsel %vm1371, %v4044, %v4046
      %v4048 = vrot.slane %v3572, 2
      %v4049 = vrot.slane %v3577, 2
      %v4050 = vsel %vm1371, %v4048, %v4049
      %v4051 = vrot.slane %v3582, 2
      %v4052 = vsel %vm1371, %v4049, %v4051
      %v4053 = vrot.slane %v3592, 2
      %v4054 = vrot.slane %v3597, 2
      %v4055 = vsel %vm1371, %v4053, %v4054
      %v4056 = vrot.slane %v3602, 2
      %v4057 = vsel %vm1371, %v4054, %v4056
      %v4058 = vrot.slane %v3612, 2
      %v4059 = vrot.slane %v3617, 2
      %v4060 = vsel %vm1371, %v4058, %v4059
      %v4061 = vrot.slane %v3622, 2
      %v4062 = vsel %vm1371, %v4059, %v4061
      %v4063 = vrot.slane %v3632, 2
      %v4064 = vrot.slane %v3637, 2
      %v4065 = vsel %vm1371, %v4063, %v4064
      %v4066 = vrot.slane %v3642, 2
      %v4067 = vsel %vm1371, %v4064, %v4066
      %v4068 = vrot.slane %v3652, 2
      %v4069 = vrot.slane %v3657, 2
      %v4070 = vsel %vm1371, %v4068, %v4069
      %v4071 = vrot.slane %v3662, 2
      %v4072 = vsel %vm1371, %v4069, %v4071
      %4073 = vrot.lane.b32.xlu0 %v3993, 120
      %v4074 = vpop.permute.xlu0 %4073
      %4075 = vrot.lane.b32.xlu0 %v3995, 120
      %v4076 = vpop.permute.xlu0 %4075
      %4077 = vrot.lane.b32.xlu0 %v3997, 120
      %v4078 = vpop.permute.xlu0 %4077
      %4079 = vrot.lane.b32.xlu0 %v3998, 120
      %v4080 = vpop.permute.xlu0 %4079
      %4081 = vrot.lane.b32.xlu0 %v4000, 120
      %v4082 = vpop.permute.xlu0 %4081
      %4083 = vrot.lane.b32.xlu0 %v4002, 120
      %v4084 = vpop.permute.xlu0 %4083
      %4085 = vrot.lane.b32.xlu0 %v4003, 120
      %v4086 = vpop.permute.xlu0 %4085
      %4087 = vrot.lane.b32.xlu0 %v4005, 120
      %v4088 = vpop.permute.xlu0 %4087
      %4089 = vrot.lane.b32.xlu0 %v4007, 120
      %v4090 = vpop.permute.xlu0 %4089
      %4091 = vrot.lane.b32.xlu0 %v4008, 120
      %v4092 = vpop.permute.xlu0 %4091
      %4093 = vrot.lane.b32.xlu0 %v4010, 120
      %v4094 = vpop.permute.xlu0 %4093
      %4095 = vrot.lane.b32.xlu0 %v4012, 120
      %v4096 = vpop.permute.xlu0 %4095
      %4097 = vrot.lane.b32.xlu0 %v4013, 120
      %v4098 = vpop.permute.xlu0 %4097
      %4099 = vrot.lane.b32.xlu0 %v4015, 120
      %v4100 = vpop.permute.xlu0 %4099
      %4101 = vrot.lane.b32.xlu0 %v4017, 120
      %v4102 = vpop.permute.xlu0 %4101
      %4103 = vrot.lane.b32.xlu0 %v4018, 120
      %v4104 = vpop.permute.xlu0 %4103
      %4105 = vrot.lane.b32.xlu0 %v4020, 120
      %v4106 = vpop.permute.xlu0 %4105
      %4107 = vrot.lane.b32.xlu0 %v4022, 120
      %v4108 = vpop.permute.xlu0 %4107
      %4109 = vrot.lane.b32.xlu0 %v4023, 120
      %v4110 = vpop.permute.xlu0 %4109
      %4111 = vrot.lane.b32.xlu0 %v4025, 120
      %v4112 = vpop.permute.xlu0 %4111
      %4113 = vrot.lane.b32.xlu0 %v4027, 120
      %v4114 = vpop.permute.xlu0 %4113
      %4115 = vrot.lane.b32.xlu0 %v4028, 120
      %v4116 = vpop.permute.xlu0 %4115
      %4117 = vrot.lane.b32.xlu0 %v4030, 120
      %v4118 = vpop.permute.xlu0 %4117
      %4119 = vrot.lane.b32.xlu0 %v4032, 120
      %v4120 = vpop.permute.xlu0 %4119
      %4121 = vrot.lane.b32.xlu0 %v4033, 120
      %v4122 = vpop.permute.xlu0 %4121
      %4123 = vrot.lane.b32.xlu0 %v4035, 120
      %v4124 = vpop.permute.xlu0 %4123
      %4125 = vrot.lane.b32.xlu0 %v4037, 120
      %v4126 = vpop.permute.xlu0 %4125
      %4127 = vrot.lane.b32.xlu0 %v4038, 120
      %v4128 = vpop.permute.xlu0 %4127
      %4129 = vrot.lane.b32.xlu0 %v4040, 120
      %v4130 = vpop.permute.xlu0 %4129
      %4131 = vrot.lane.b32.xlu0 %v4042, 120
      %v4132 = vpop.permute.xlu0 %4131
      %4133 = vrot.lane.b32.xlu0 %v4043, 120
      %v4134 = vpop.permute.xlu0 %4133
      %4135 = vrot.lane.b32.xlu0 %v4045, 120
      %v4136 = vpop.permute.xlu0 %4135
      %4137 = vrot.lane.b32.xlu0 %v4047, 120
      %v4138 = vpop.permute.xlu0 %4137
      %4139 = vrot.lane.b32.xlu0 %v4048, 120
      %v4140 = vpop.permute.xlu0 %4139
      %4141 = vrot.lane.b32.xlu0 %v4050, 120
      %v4142 = vpop.permute.xlu0 %4141
      %4143 = vrot.lane.b32.xlu0 %v4052, 120
      %v4144 = vpop.permute.xlu0 %4143
      %4145 = vrot.lane.b32.xlu0 %v4053, 120
      %v4146 = vpop.permute.xlu0 %4145
      %4147 = vrot.lane.b32.xlu0 %v4055, 120
      %v4148 = vpop.permute.xlu0 %4147
      %4149 = vrot.lane.b32.xlu0 %v4057, 120
      %v4150 = vpop.permute.xlu0 %4149
      %4151 = vrot.lane.b32.xlu0 %v4058, 120
      %v4152 = vpop.permute.xlu0 %4151
      %4153 = vrot.lane.b32.xlu0 %v4060, 120
      %v4154 = vpop.permute.xlu0 %4153
      %4155 = vrot.lane.b32.xlu0 %v4062, 120
      %v4156 = vpop.permute.xlu0 %4155
      %4157 = vrot.lane.b32.xlu0 %v4063, 120
      %v4158 = vpop.permute.xlu0 %4157
      %4159 = vrot.lane.b32.xlu0 %v4065, 120
      %v4160 = vpop.permute.xlu0 %4159
      %4161 = vrot.lane.b32.xlu0 %v4067, 120
      %v4162 = vpop.permute.xlu0 %4161
      %4163 = vrot.lane.b32.xlu0 %v4068, 120
      %v4164 = vpop.permute.xlu0 %4163
      %4165 = vrot.lane.b32.xlu0 %v4070, 120
      %v4166 = vpop.permute.xlu0 %4165
      %4167 = vrot.lane.b32.xlu0 %v4072, 120
      %v4168 = vpop.permute.xlu0 %4167
      %v4217 = vadd.f32 %v3929, %v4074
      %v4218 = vadd.f32 %v3930, %v4076
      %v4219 = vadd.f32 %v3931, %v4078
      %v4220 = vadd.f32 %v3932, %v4080
      %v4221 = vadd.f32 %v3933, %v4082
      %v4222 = vadd.f32 %v3934, %v4084
      %v4223 = vadd.f32 %v3935, %v4086
      %v4224 = vadd.f32 %v3936, %v4088
      %v4225 = vadd.f32 %v3937, %v4090
      %v4226 = vadd.f32 %v3938, %v4092
      %v4227 = vadd.f32 %v3939, %v4094
      %v4228 = vadd.f32 %v3940, %v4096
      %v4229 = vadd.f32 %v3941, %v4098
      %v4230 = vadd.f32 %v3942, %v4100
      %v4231 = vadd.f32 %v3943, %v4102
      %v4232 = vadd.f32 %v3944, %v4104
      %v4233 = vadd.f32 %v3945, %v4106
      %v4234 = vadd.f32 %v3946, %v4108
      %v4235 = vadd.f32 %v3947, %v4110
      %v4236 = vadd.f32 %v3948, %v4112
      %v4237 = vadd.f32 %v3949, %v4114
      %v4238 = vadd.f32 %v3950, %v4116
      %v4239 = vadd.f32 %v3951, %v4118
      %v4240 = vadd.f32 %v3952, %v4120
      %v4241 = vadd.f32 %v3953, %v4122
      %v4242 = vadd.f32 %v3954, %v4124
      %v4243 = vadd.f32 %v3955, %v4126
      %v4244 = vadd.f32 %v3956, %v4128
      %v4245 = vadd.f32 %v3957, %v4130
      %v4246 = vadd.f32 %v3958, %v4132
      %v4247 = vadd.f32 %v3959, %v4134
      %v4248 = vadd.f32 %v3960, %v4136
      %v4249 = vadd.f32 %v3961, %v4138
      %v4250 = vadd.f32 %v3962, %v4140
      %v4251 = vadd.f32 %v3963, %v4142
      %v4252 = vadd.f32 %v3964, %v4144
      %v4253 = vadd.f32 %v3965, %v4146
      %v4254 = vadd.f32 %v3966, %v4148
      %v4255 = vadd.f32 %v3967, %v4150
      %v4256 = vadd.f32 %v3968, %v4152
      %v4257 = vadd.f32 %v3969, %v4154
      %v4258 = vadd.f32 %v3970, %v4156
      %v4259 = vadd.f32 %v3971, %v4158
      %v4260 = vadd.f32 %v3972, %v4160
      %v4261 = vadd.f32 %v3973, %v4162
      %v4262 = vadd.f32 %v3974, %v4164
      %v4263 = vadd.f32 %v3975, %v4166
      %v4264 = vadd.f32 %v3976, %v4168
      %4283 = vrot.lane.b32.xlu0 %v3367, 116
      %v4284 = vpop.permute.xlu0 %4283
      %4285 = vrot.lane.b32.xlu0 %v3372, 116
      %v4286 = vpop.permute.xlu0 %4285
      %4287 = vrot.lane.b32.xlu0 %v3377, 116
      %v4288 = vpop.permute.xlu0 %4287
      %4289 = vrot.lane.b32.xlu0 %v3387, 116
      %v4290 = vpop.permute.xlu0 %4289
      %4291 = vrot.lane.b32.xlu0 %v3392, 116
      %v4292 = vpop.permute.xlu0 %4291
      %4293 = vrot.lane.b32.xlu0 %v3397, 116
      %v4294 = vpop.permute.xlu0 %4293
      %4295 = vrot.lane.b32.xlu0 %v3407, 116
      %v4296 = vpop.permute.xlu0 %4295
      %4297 = vrot.lane.b32.xlu0 %v3412, 116
      %v4298 = vpop.permute.xlu0 %4297
      %4299 = vrot.lane.b32.xlu0 %v3417, 116
      %v4300 = vpop.permute.xlu0 %4299
      %4301 = vrot.lane.b32.xlu0 %v3427, 116
      %v4302 = vpop.permute.xlu0 %4301
      %4303 = vrot.lane.b32.xlu0 %v3432, 116
      %v4304 = vpop.permute.xlu0 %4303
      %4305 = vrot.lane.b32.xlu0 %v3437, 116
      %v4306 = vpop.permute.xlu0 %4305
      %4307 = vrot.lane.b32.xlu0 %v3447, 116
      %v4308 = vpop.permute.xlu0 %4307
      %4309 = vrot.lane.b32.xlu0 %v3452, 116
      %v4310 = vpop.permute.xlu0 %4309
      %4311 = vrot.lane.b32.xlu0 %v3457, 116
      %v4312 = vpop.permute.xlu0 %4311
      %4313 = vrot.lane.b32.xlu0 %v3467, 116
      %v4314 = vpop.permute.xlu0 %4313
      %4315 = vrot.lane.b32.xlu0 %v3472, 116
      %v4316 = vpop.permute.xlu0 %4315
      %4317 = vrot.lane.b32.xlu0 %v3477, 116
      %v4318 = vpop.permute.xlu0 %4317
      %4319 = vrot.lane.b32.xlu0 %v3487, 116
      %v4320 = vpop.permute.xlu0 %4319
      %4321 = vrot.lane.b32.xlu0 %v3492, 116
      %v4322 = vpop.permute.xlu0 %4321
      %4323 = vrot.lane.b32.xlu0 %v3497, 116
      %v4324 = vpop.permute.xlu0 %4323
      %4325 = vrot.lane.b32.xlu0 %v3507, 116
      %v4326 = vpop.permute.xlu0 %4325
      %4327 = vrot.lane.b32.xlu0 %v3512, 116
      %v4328 = vpop.permute.xlu0 %4327
      %4329 = vrot.lane.b32.xlu0 %v3517, 116
      %v4330 = vpop.permute.xlu0 %4329
      %4331 = vrot.lane.b32.xlu0 %v3527, 116
      %v4332 = vpop.permute.xlu0 %4331
      %4333 = vrot.lane.b32.xlu0 %v3532, 116
      %v4334 = vpop.permute.xlu0 %4333
      %4335 = vrot.lane.b32.xlu0 %v3537, 116
      %v4336 = vpop.permute.xlu0 %4335
      %4337 = vrot.lane.b32.xlu0 %v3547, 116
      %v4338 = vpop.permute.xlu0 %4337
      %4339 = vrot.lane.b32.xlu0 %v3552, 116
      %v4340 = vpop.permute.xlu0 %4339
      %4341 = vrot.lane.b32.xlu0 %v3557, 116
      %v4342 = vpop.permute.xlu0 %4341
      %4343 = vrot.lane.b32.xlu0 %v3567, 116
      %v4344 = vpop.permute.xlu0 %4343
      %4345 = vrot.lane.b32.xlu0 %v3572, 116
      %v4346 = vpop.permute.xlu0 %4345
      %4347 = vrot.lane.b32.xlu0 %v3577, 116
      %v4348 = vpop.permute.xlu0 %4347
      %4349 = vrot.lane.b32.xlu0 %v3587, 116
      %v4350 = vpop.permute.xlu0 %4349
      %4351 = vrot.lane.b32.xlu0 %v3592, 116
      %v4352 = vpop.permute.xlu0 %4351
      %4353 = vrot.lane.b32.xlu0 %v3597, 116
      %v4354 = vpop.permute.xlu0 %4353
      %4355 = vrot.lane.b32.xlu0 %v3607, 116
      %v4356 = vpop.permute.xlu0 %4355
      %4357 = vrot.lane.b32.xlu0 %v3612, 116
      %v4358 = vpop.permute.xlu0 %4357
      %4359 = vrot.lane.b32.xlu0 %v3617, 116
      %v4360 = vpop.permute.xlu0 %4359
      %4361 = vrot.lane.b32.xlu0 %v3627, 116
      %v4362 = vpop.permute.xlu0 %4361
      %4363 = vrot.lane.b32.xlu0 %v3632, 116
      %v4364 = vpop.permute.xlu0 %4363
      %4365 = vrot.lane.b32.xlu0 %v3637, 116
      %v4366 = vpop.permute.xlu0 %4365
      %4367 = vrot.lane.b32.xlu0 %v3647, 116
      %v4368 = vpop.permute.xlu0 %4367
      %4369 = vrot.lane.b32.xlu0 %v3652, 116
      %v4370 = vpop.permute.xlu0 %4369
      %4371 = vrot.lane.b32.xlu0 %v3657, 116
      %v4372 = vpop.permute.xlu0 %4371
      %4373 = vrot.lane.b32.xlu0 %v3667, 116
      %v4374 = vpop.permute.xlu0 %4373
      %4375 = vrot.lane.b32.xlu0 %v3672, 116
      %v4376 = vpop.permute.xlu0 %4375
      %4377 = vrot.lane.b32.xlu0 %v3677, 116
      %v4378 = vpop.permute.xlu0 %4377
      %v4427 = vadd.f32 %v4217, %v4284
      %v4428 = vadd.f32 %v4218, %v4286
      %v4429 = vadd.f32 %v4219, %v4288
      %v4430 = vadd.f32 %v4220, %v4290
      %v4431 = vadd.f32 %v4221, %v4292
      %v4432 = vadd.f32 %v4222, %v4294
      %v4433 = vadd.f32 %v4223, %v4296
      %v4434 = vadd.f32 %v4224, %v4298
      %v4435 = vadd.f32 %v4225, %v4300
      %v4436 = vadd.f32 %v4226, %v4302
      %v4437 = vadd.f32 %v4227, %v4304
      %v4438 = vadd.f32 %v4228, %v4306
      %v4439 = vadd.f32 %v4229, %v4308
      %v4440 = vadd.f32 %v4230, %v4310
      %v4441 = vadd.f32 %v4231, %v4312
      %v4442 = vadd.f32 %v4232, %v4314
      %v4443 = vadd.f32 %v4233, %v4316
      %v4444 = vadd.f32 %v4234, %v4318
      %v4445 = vadd.f32 %v4235, %v4320
      %v4446 = vadd.f32 %v4236, %v4322
      %v4447 = vadd.f32 %v4237, %v4324
      %v4448 = vadd.f32 %v4238, %v4326
      %v4449 = vadd.f32 %v4239, %v4328
      %v4450 = vadd.f32 %v4240, %v4330
      %v4451 = vadd.f32 %v4241, %v4332
      %v4452 = vadd.f32 %v4242, %v4334
      %v4453 = vadd.f32 %v4243, %v4336
      %v4454 = vadd.f32 %v4244, %v4338
      %v4455 = vadd.f32 %v4245, %v4340
      %v4456 = vadd.f32 %v4246, %v4342
      %v4457 = vadd.f32 %v4247, %v4344
      %v4458 = vadd.f32 %v4248, %v4346
      %v4459 = vadd.f32 %v4249, %v4348
      %v4460 = vadd.f32 %v4250, %v4350
      %v4461 = vadd.f32 %v4251, %v4352
      %v4462 = vadd.f32 %v4252, %v4354
      %v4463 = vadd.f32 %v4253, %v4356
      %v4464 = vadd.f32 %v4254, %v4358
      %v4465 = vadd.f32 %v4255, %v4360
      %v4466 = vadd.f32 %v4256, %v4362
      %v4467 = vadd.f32 %v4257, %v4364
      %v4468 = vadd.f32 %v4258, %v4366
      %v4469 = vadd.f32 %v4259, %v4368
      %v4470 = vadd.f32 %v4260, %v4370
      %v4471 = vadd.f32 %v4261, %v4372
      %v4472 = vadd.f32 %v4262, %v4374
      %v4473 = vadd.f32 %v4263, %v4376
      %v4474 = vadd.f32 %v4264, %v4378
      %v4475 = vrot.slane %v3672, 1
      %v4476 = vrot.slane %v3677, 1
      %v4477 = vsel %vm1114, %v4475, %v4476
      %4478 = vrot.lane.b32.xlu0 %v3740, 112
      %v4479 = vpop.permute.xlu0 %4478
      %4480 = vrot.lane.b32.xlu0 %v3742, 112
      %v4481 = vpop.permute.xlu0 %4480
      %4482 = vrot.lane.b32.xlu0 %v3741, 112
      %v4483 = vpop.permute.xlu0 %4482
      %4484 = vrot.lane.b32.xlu0 %v3743, 112
      %v4485 = vpop.permute.xlu0 %4484
      %4486 = vrot.lane.b32.xlu0 %v3745, 112
      %v4487 = vpop.permute.xlu0 %4486
      %4488 = vrot.lane.b32.xlu0 %v3744, 112
      %v4489 = vpop.permute.xlu0 %4488
      %4490 = vrot.lane.b32.xlu0 %v3746, 112
      %v4491 = vpop.permute.xlu0 %4490
      %4492 = vrot.lane.b32.xlu0 %v3748, 112
      %v4493 = vpop.permute.xlu0 %4492
      %4494 = vrot.lane.b32.xlu0 %v3747, 112
      %v4495 = vpop.permute.xlu0 %4494
      %4496 = vrot.lane.b32.xlu0 %v3749, 112
      %v4497 = vpop.permute.xlu0 %4496
      %4498 = vrot.lane.b32.xlu0 %v3751, 112
      %v4499 = vpop.permute.xlu0 %4498
      %4500 = vrot.lane.b32.xlu0 %v3750, 112
      %v4501 = vpop.permute.xlu0 %4500
      %4502 = vrot.lane.b32.xlu0 %v3752, 112
      %v4503 = vpop.permute.xlu0 %4502
      %4504 = vrot.lane.b32.xlu0 %v3754, 112
      %v4505 = vpop.permute.xlu0 %4504
      %4506 = vrot.lane.b32.xlu0 %v3753, 112
      %v4507 = vpop.permute.xlu0 %4506
      %4508 = vrot.lane.b32.xlu0 %v3755, 112
      %v4509 = vpop.permute.xlu0 %4508
      %4510 = vrot.lane.b32.xlu0 %v3757, 112
      %v4511 = vpop.permute.xlu0 %4510
      %4512 = vrot.lane.b32.xlu0 %v3756, 112
      %v4513 = vpop.permute.xlu0 %4512
      %4514 = vrot.lane.b32.xlu0 %v3758, 112
      %v4515 = vpop.permute.xlu0 %4514
      %4516 = vrot.lane.b32.xlu0 %v3760, 112
      %v4517 = vpop.permute.xlu0 %4516
      %4518 = vrot.lane.b32.xlu0 %v3759, 112
      %v4519 = vpop.permute.xlu0 %4518
      %4520 = vrot.lane.b32.xlu0 %v3761, 112
      %v4521 = vpop.permute.xlu0 %4520
      %4522 = vrot.lane.b32.xlu0 %v3763, 112
      %v4523 = vpop.permute.xlu0 %4522
      %4524 = vrot.lane.b32.xlu0 %v3762, 112
      %v4525 = vpop.permute.xlu0 %4524
      %4526 = vrot.lane.b32.xlu0 %v3764, 112
      %v4527 = vpop.permute.xlu0 %4526
      %4528 = vrot.lane.b32.xlu0 %v3766, 112
      %v4529 = vpop.permute.xlu0 %4528
      %4530 = vrot.lane.b32.xlu0 %v3765, 112
      %v4531 = vpop.permute.xlu0 %4530
      %4532 = vrot.lane.b32.xlu0 %v3767, 112
      %v4533 = vpop.permute.xlu0 %4532
      %4534 = vrot.lane.b32.xlu0 %v3769, 112
      %v4535 = vpop.permute.xlu0 %4534
      %4536 = vrot.lane.b32.xlu0 %v3768, 112
      %v4537 = vpop.permute.xlu0 %4536
      %4538 = vrot.lane.b32.xlu0 %v3770, 112
      %v4539 = vpop.permute.xlu0 %4538
      %4540 = vrot.lane.b32.xlu0 %v3772, 112
      %v4541 = vpop.permute.xlu0 %4540
      %4542 = vrot.lane.b32.xlu0 %v3771, 112
      %v4543 = vpop.permute.xlu0 %4542
      %4544 = vrot.lane.b32.xlu0 %v3773, 112
      %v4545 = vpop.permute.xlu0 %4544
      %4546 = vrot.lane.b32.xlu0 %v3775, 112
      %v4547 = vpop.permute.xlu0 %4546
      %4548 = vrot.lane.b32.xlu0 %v3774, 112
      %v4549 = vpop.permute.xlu0 %4548
      %4550 = vrot.lane.b32.xlu0 %v3776, 112
      %v4551 = vpop.permute.xlu0 %4550
      %4552 = vrot.lane.b32.xlu0 %v3778, 112
      %v4553 = vpop.permute.xlu0 %4552
      %4554 = vrot.lane.b32.xlu0 %v3777, 112
      %v4555 = vpop.permute.xlu0 %4554
      %4556 = vrot.lane.b32.xlu0 %v3779, 112
      %v4557 = vpop.permute.xlu0 %4556
      %4558 = vrot.lane.b32.xlu0 %v3781, 112
      %v4559 = vpop.permute.xlu0 %4558
      %4560 = vrot.lane.b32.xlu0 %v3780, 112
      %v4561 = vpop.permute.xlu0 %4560
      %4562 = vrot.lane.b32.xlu0 %v3782, 112
      %v4563 = vpop.permute.xlu0 %4562
      %4564 = vrot.lane.b32.xlu0 %v3784, 112
      %v4565 = vpop.permute.xlu0 %4564
      %4566 = vrot.lane.b32.xlu0 %v3783, 112
      %v4567 = vpop.permute.xlu0 %4566
      %4568 = vrot.lane.b32.xlu0 %v4475, 112
      %v4569 = vpop.permute.xlu0 %4568
      %4570 = vrot.lane.b32.xlu0 %v4477, 112
      %v4571 = vpop.permute.xlu0 %4570
      %4572 = vrot.lane.b32.xlu0 %v4476, 112
      %v4573 = vpop.permute.xlu0 %4572
      %v4622 = vadd.f32 %v4427, %v4479
      %v4623 = vadd.f32 %v4428, %v4481
      %v4624 = vadd.f32 %v4429, %v4483
      %v4625 = vadd.f32 %v4430, %v4485
      %v4626 = vadd.f32 %v4431, %v4487
      %v4627 = vadd.f32 %v4432, %v4489
      %v4628 = vadd.f32 %v4433, %v4491
      %v4629 = vadd.f32 %v4434, %v4493
      %v4630 = vadd.f32 %v4435, %v4495
      %v4631 = vadd.f32 %v4436, %v4497
      %v4632 = vadd.f32 %v4437, %v4499
      %v4633 = vadd.f32 %v4438, %v4501
      %v4634 = vadd.f32 %v4439, %v4503
      %v4635 = vadd.f32 %v4440, %v4505
      %v4636 = vadd.f32 %v4441, %v4507
      %v4637 = vadd.f32 %v4442, %v4509
      %v4638 = vadd.f32 %v4443, %v4511
      %v4639 = vadd.f32 %v4444, %v4513
      %v4640 = vadd.f32 %v4445, %v4515
      %v4641 = vadd.f32 %v4446, %v4517
      %v4642 = vadd.f32 %v4447, %v4519
      %v4643 = vadd.f32 %v4448, %v4521
      %v4644 = vadd.f32 %v4449, %v4523
      %v4645 = vadd.f32 %v4450, %v4525
      %v4646 = vadd.f32 %v4451, %v4527
      %v4647 = vadd.f32 %v4452, %v4529
      %v4648 = vadd.f32 %v4453, %v4531
      %v4649 = vadd.f32 %v4454, %v4533
      %v4650 = vadd.f32 %v4455, %v4535
      %v4651 = vadd.f32 %v4456, %v4537
      %v4652 = vadd.f32 %v4457, %v4539
      %v4653 = vadd.f32 %v4458, %v4541
      %v4654 = vadd.f32 %v4459, %v4543
      %v4655 = vadd.f32 %v4460, %v4545
      %v4656 = vadd.f32 %v4461, %v4547
      %v4657 = vadd.f32 %v4462, %v4549
      %v4658 = vadd.f32 %v4463, %v4551
      %v4659 = vadd.f32 %v4464, %v4553
      %v4660 = vadd.f32 %v4465, %v4555
      %v4661 = vadd.f32 %v4466, %v4557
      %v4662 = vadd.f32 %v4467, %v4559
      %v4663 = vadd.f32 %v4468, %v4561
      %v4664 = vadd.f32 %v4469, %v4563
      %v4665 = vadd.f32 %v4470, %v4565
      %v4666 = vadd.f32 %v4471, %v4567
      %v4667 = vadd.f32 %v4472, %v4569
      %v4668 = vadd.f32 %v4473, %v4571
      %v4669 = vadd.f32 %v4474, %v4573
      %v4671 = vrot.slane %v3672, 2
      %v4672 = vrot.slane %v3677, 2
      %v4673 = vsel %vm1371, %v4671, %v4672
      %v4674 = vrot.slane %v3682, 2
      %v4675 = vsel %vm1371, %v4672, %v4674
      %4676 = vrot.lane.b32.xlu0 %v3998, 108
      %v4677 = vpop.permute.xlu0 %4676
      %4678 = vrot.lane.b32.xlu0 %v4000, 108
      %v4679 = vpop.permute.xlu0 %4678
      %4680 = vrot.lane.b32.xlu0 %v4002, 108
      %v4681 = vpop.permute.xlu0 %4680
      %4682 = vrot.lane.b32.xlu0 %v4003, 108
      %v4683 = vpop.permute.xlu0 %4682
      %4684 = vrot.lane.b32.xlu0 %v4005, 108
      %v4685 = vpop.permute.xlu0 %4684
      %4686 = vrot.lane.b32.xlu0 %v4007, 108
      %v4687 = vpop.permute.xlu0 %4686
      %4688 = vrot.lane.b32.xlu0 %v4008, 108
      %v4689 = vpop.permute.xlu0 %4688
      %4690 = vrot.lane.b32.xlu0 %v4010, 108
      %v4691 = vpop.permute.xlu0 %4690
      %4692 = vrot.lane.b32.xlu0 %v4012, 108
      %v4693 = vpop.permute.xlu0 %4692
      %4694 = vrot.lane.b32.xlu0 %v4013, 108
      %v4695 = vpop.permute.xlu0 %4694
      %4696 = vrot.lane.b32.xlu0 %v4015, 108
      %v4697 = vpop.permute.xlu0 %4696
      %4698 = vrot.lane.b32.xlu0 %v4017, 108
      %v4699 = vpop.permute.xlu0 %4698
      %4700 = vrot.lane.b32.xlu0 %v4018, 108
      %v4701 = vpop.permute.xlu0 %4700
      %4702 = vrot.lane.b32.xlu0 %v4020, 108
      %v4703 = vpop.permute.xlu0 %4702
      %4704 = vrot.lane.b32.xlu0 %v4022, 108
      %v4705 = vpop.permute.xlu0 %4704
      %4706 = vrot.lane.b32.xlu0 %v4023, 108
      %v4707 = vpop.permute.xlu0 %4706
      %4708 = vrot.lane.b32.xlu0 %v4025, 108
      %v4709 = vpop.permute.xlu0 %4708
      %4710 = vrot.lane.b32.xlu0 %v4027, 108
      %v4711 = vpop.permute.xlu0 %4710
      %4712 = vrot.lane.b32.xlu0 %v4028, 108
      %v4713 = vpop.permute.xlu0 %4712
      %4714 = vrot.lane.b32.xlu0 %v4030, 108
      %v4715 = vpop.permute.xlu0 %4714
      %4716 = vrot.lane.b32.xlu0 %v4032, 108
      %v4717 = vpop.permute.xlu0 %4716
      %4718 = vrot.lane.b32.xlu0 %v4033, 108
      %v4719 = vpop.permute.xlu0 %4718
      %4720 = vrot.lane.b32.xlu0 %v4035, 108
      %v4721 = vpop.permute.xlu0 %4720
      %4722 = vrot.lane.b32.xlu0 %v4037, 108
      %v4723 = vpop.permute.xlu0 %4722
      %4724 = vrot.lane.b32.xlu0 %v4038, 108
      %v4725 = vpop.permute.xlu0 %4724
      %4726 = vrot.lane.b32.xlu0 %v4040, 108
      %v4727 = vpop.permute.xlu0 %4726
      %4728 = vrot.lane.b32.xlu0 %v4042, 108
      %v4729 = vpop.permute.xlu0 %4728
      %4730 = vrot.lane.b32.xlu0 %v4043, 108
      %v4731 = vpop.permute.xlu0 %4730
      %4732 = vrot.lane.b32.xlu0 %v4045, 108
      %v4733 = vpop.permute.xlu0 %4732
      %4734 = vrot.lane.b32.xlu0 %v4047, 108
      %v4735 = vpop.permute.xlu0 %4734
      %4736 = vrot.lane.b32.xlu0 %v4048, 108
      %v4737 = vpop.permute.xlu0 %4736
      %4738 = vrot.lane.b32.xlu0 %v4050, 108
      %v4739 = vpop.permute.xlu0 %4738
      %4740 = vrot.lane.b32.xlu0 %v4052, 108
      %v4741 = vpop.permute.xlu0 %4740
      %4742 = vrot.lane.b32.xlu0 %v4053, 108
      %v4743 = vpop.permute.xlu0 %4742
      %4744 = vrot.lane.b32.xlu0 %v4055, 108
      %v4745 = vpop.permute.xlu0 %4744
      %4746 = vrot.lane.b32.xlu0 %v4057, 108
      %v4747 = vpop.permute.xlu0 %4746
      %4748 = vrot.lane.b32.xlu0 %v4058, 108
      %v4749 = vpop.permute.xlu0 %4748
      %4750 = vrot.lane.b32.xlu0 %v4060, 108
      %v4751 = vpop.permute.xlu0 %4750
      %4752 = vrot.lane.b32.xlu0 %v4062, 108
      %v4753 = vpop.permute.xlu0 %4752
      %4754 = vrot.lane.b32.xlu0 %v4063, 108
      %v4755 = vpop.permute.xlu0 %4754
      %4756 = vrot.lane.b32.xlu0 %v4065, 108
      %v4757 = vpop.permute.xlu0 %4756
      %4758 = vrot.lane.b32.xlu0 %v4067, 108
      %v4759 = vpop.permute.xlu0 %4758
      %4760 = vrot.lane.b32.xlu0 %v4068, 108
      %v4761 = vpop.permute.xlu0 %4760
      %4762 = vrot.lane.b32.xlu0 %v4070, 108
      %v4763 = vpop.permute.xlu0 %4762
      %4764 = vrot.lane.b32.xlu0 %v4072, 108
      %v4765 = vpop.permute.xlu0 %4764
      %4766 = vrot.lane.b32.xlu0 %v4671, 108
      %v4767 = vpop.permute.xlu0 %4766
      %4768 = vrot.lane.b32.xlu0 %v4673, 108
      %v4769 = vpop.permute.xlu0 %4768
      %4770 = vrot.lane.b32.xlu0 %v4675, 108
      %v4771 = vpop.permute.xlu0 %4770
      %v4820 = vadd.f32 %v4622, %v4677
      %v4821 = vadd.f32 %v4623, %v4679
      %v4822 = vadd.f32 %v4624, %v4681
      %v4823 = vadd.f32 %v4625, %v4683
      %v4824 = vadd.f32 %v4626, %v4685
      %v4825 = vadd.f32 %v4627, %v4687
      %v4826 = vadd.f32 %v4628, %v4689
      %v4827 = vadd.f32 %v4629, %v4691
      %v4828 = vadd.f32 %v4630, %v4693
      %v4829 = vadd.f32 %v4631, %v4695
      %v4830 = vadd.f32 %v4632, %v4697
      %v4831 = vadd.f32 %v4633, %v4699
      %v4832 = vadd.f32 %v4634, %v4701
      %v4833 = vadd.f32 %v4635, %v4703
      %v4834 = vadd.f32 %v4636, %v4705
      %v4835 = vadd.f32 %v4637, %v4707
      %v4836 = vadd.f32 %v4638, %v4709
      %v4837 = vadd.f32 %v4639, %v4711
      %v4838 = vadd.f32 %v4640, %v4713
      %v4839 = vadd.f32 %v4641, %v4715
      %v4840 = vadd.f32 %v4642, %v4717
      %v4841 = vadd.f32 %v4643, %v4719
      %v4842 = vadd.f32 %v4644, %v4721
      %v4843 = vadd.f32 %v4645, %v4723
      %v4844 = vadd.f32 %v4646, %v4725
      %v4845 = vadd.f32 %v4647, %v4727
      %v4846 = vadd.f32 %v4648, %v4729
      %v4847 = vadd.f32 %v4649, %v4731
      %v4848 = vadd.f32 %v4650, %v4733
      %v4849 = vadd.f32 %v4651, %v4735
      %v4850 = vadd.f32 %v4652, %v4737
      %v4851 = vadd.f32 %v4653, %v4739
      %v4852 = vadd.f32 %v4654, %v4741
      %v4853 = vadd.f32 %v4655, %v4743
      %v4854 = vadd.f32 %v4656, %v4745
      %v4855 = vadd.f32 %v4657, %v4747
      %v4856 = vadd.f32 %v4658, %v4749
      %v4857 = vadd.f32 %v4659, %v4751
      %v4858 = vadd.f32 %v4660, %v4753
      %v4859 = vadd.f32 %v4661, %v4755
      %v4860 = vadd.f32 %v4662, %v4757
      %v4861 = vadd.f32 %v4663, %v4759
      %v4862 = vadd.f32 %v4664, %v4761
      %v4863 = vadd.f32 %v4665, %v4763
      %v4864 = vadd.f32 %v4666, %v4765
      %v4865 = vadd.f32 %v4667, %v4767
      %v4866 = vadd.f32 %v4668, %v4769
      %v4867 = vadd.f32 %v4669, %v4771
      %4871 = vrot.lane.b32.xlu0 %v3387, 104
      %v4872 = vpop.permute.xlu0 %4871
      %4873 = vrot.lane.b32.xlu0 %v3392, 104
      %v4874 = vpop.permute.xlu0 %4873
      %4875 = vrot.lane.b32.xlu0 %v3397, 104
      %v4876 = vpop.permute.xlu0 %4875
      %4877 = vrot.lane.b32.xlu0 %v3407, 104
      %v4878 = vpop.permute.xlu0 %4877
      %4879 = vrot.lane.b32.xlu0 %v3412, 104
      %v4880 = vpop.permute.xlu0 %4879
      %4881 = vrot.lane.b32.xlu0 %v3417, 104
      %v4882 = vpop.permute.xlu0 %4881
      %4883 = vrot.lane.b32.xlu0 %v3427, 104
      %v4884 = vpop.permute.xlu0 %4883
      %4885 = vrot.lane.b32.xlu0 %v3432, 104
      %v4886 = vpop.permute.xlu0 %4885
      %4887 = vrot.lane.b32.xlu0 %v3437, 104
      %v4888 = vpop.permute.xlu0 %4887
      %4889 = vrot.lane.b32.xlu0 %v3447, 104
      %v4890 = vpop.permute.xlu0 %4889
      %4891 = vrot.lane.b32.xlu0 %v3452, 104
      %v4892 = vpop.permute.xlu0 %4891
      %4893 = vrot.lane.b32.xlu0 %v3457, 104
      %v4894 = vpop.permute.xlu0 %4893
      %4895 = vrot.lane.b32.xlu0 %v3467, 104
      %v4896 = vpop.permute.xlu0 %4895
      %4897 = vrot.lane.b32.xlu0 %v3472, 104
      %v4898 = vpop.permute.xlu0 %4897
      %4899 = vrot.lane.b32.xlu0 %v3477, 104
      %v4900 = vpop.permute.xlu0 %4899
      %4901 = vrot.lane.b32.xlu0 %v3487, 104
      %v4902 = vpop.permute.xlu0 %4901
      %4903 = vrot.lane.b32.xlu0 %v3492, 104
      %v4904 = vpop.permute.xlu0 %4903
      %4905 = vrot.lane.b32.xlu0 %v3497, 104
      %v4906 = vpop.permute.xlu0 %4905
      %4907 = vrot.lane.b32.xlu0 %v3507, 104
      %v4908 = vpop.permute.xlu0 %4907
      %4909 = vrot.lane.b32.xlu0 %v3512, 104
      %v4910 = vpop.permute.xlu0 %4909
      %4911 = vrot.lane.b32.xlu0 %v3517, 104
      %v4912 = vpop.permute.xlu0 %4911
      %4913 = vrot.lane.b32.xlu0 %v3527, 104
      %v4914 = vpop.permute.xlu0 %4913
      %4915 = vrot.lane.b32.xlu0 %v3532, 104
      %v4916 = vpop.permute.xlu0 %4915
      %4917 = vrot.lane.b32.xlu0 %v3537, 104
      %v4918 = vpop.permute.xlu0 %4917
      %4919 = vrot.lane.b32.xlu0 %v3547, 104
      %v4920 = vpop.permute.xlu0 %4919
      %4921 = vrot.lane.b32.xlu0 %v3552, 104
      %v4922 = vpop.permute.xlu0 %4921
      %4923 = vrot.lane.b32.xlu0 %v3557, 104
      %v4924 = vpop.permute.xlu0 %4923
      %4925 = vrot.lane.b32.xlu0 %v3567, 104
      %v4926 = vpop.permute.xlu0 %4925
      %4927 = vrot.lane.b32.xlu0 %v3572, 104
      %v4928 = vpop.permute.xlu0 %4927
      %4929 = vrot.lane.b32.xlu0 %v3577, 104
      %v4930 = vpop.permute.xlu0 %4929
      %4931 = vrot.lane.b32.xlu0 %v3587, 104
      %v4932 = vpop.permute.xlu0 %4931
      %4933 = vrot.lane.b32.xlu0 %v3592, 104
      %v4934 = vpop.permute.xlu0 %4933
      %4935 = vrot.lane.b32.xlu0 %v3597, 104
      %v4936 = vpop.permute.xlu0 %4935
      %4937 = vrot.lane.b32.xlu0 %v3607, 104
      %v4938 = vpop.permute.xlu0 %4937
      %4939 = vrot.lane.b32.xlu0 %v3612, 104
      %v4940 = vpop.permute.xlu0 %4939
      %4941 = vrot.lane.b32.xlu0 %v3617, 104
      %v4942 = vpop.permute.xlu0 %4941
      %4943 = vrot.lane.b32.xlu0 %v3627, 104
      %v4944 = vpop.permute.xlu0 %4943
      %4945 = vrot.lane.b32.xlu0 %v3632, 104
      %v4946 = vpop.permute.xlu0 %4945
      %4947 = vrot.lane.b32.xlu0 %v3637, 104
      %v4948 = vpop.permute.xlu0 %4947
      %4949 = vrot.lane.b32.xlu0 %v3647, 104
      %v4950 = vpop.permute.xlu0 %4949
      %4951 = vrot.lane.b32.xlu0 %v3652, 104
      %v4952 = vpop.permute.xlu0 %4951
      %4953 = vrot.lane.b32.xlu0 %v3657, 104
      %v4954 = vpop.permute.xlu0 %4953
      %4955 = vrot.lane.b32.xlu0 %v3667, 104
      %v4956 = vpop.permute.xlu0 %4955
      %4957 = vrot.lane.b32.xlu0 %v3672, 104
      %v4958 = vpop.permute.xlu0 %4957
      %4959 = vrot.lane.b32.xlu0 %v3677, 104
      %v4960 = vpop.permute.xlu0 %4959
      %4961 = vrot.lane.b32.xlu0 %v3687, 104
      %v4962 = vpop.permute.xlu0 %4961
      %4963 = vrot.lane.b32.xlu0 %v3692, 104
      %v4964 = vpop.permute.xlu0 %4963
      %4965 = vrot.lane.b32.xlu0 %v3697, 104
      %v4966 = vpop.permute.xlu0 %4965
      %v5015 = vadd.f32 %v4820, %v4872
      %v5016 = vadd.f32 %v4821, %v4874
      %v5017 = vadd.f32 %v4822, %v4876
      %v5018 = vadd.f32 %v4823, %v4878
      %v5019 = vadd.f32 %v4824, %v4880
      %v5020 = vadd.f32 %v4825, %v4882
      %v5021 = vadd.f32 %v4826, %v4884
      %v5022 = vadd.f32 %v4827, %v4886
      %v5023 = vadd.f32 %v4828, %v4888
      %v5024 = vadd.f32 %v4829, %v4890
      %v5025 = vadd.f32 %v4830, %v4892
      %v5026 = vadd.f32 %v4831, %v4894
      %v5027 = vadd.f32 %v4832, %v4896
      %v5028 = vadd.f32 %v4833, %v4898
      %v5029 = vadd.f32 %v4834, %v4900
      %v5030 = vadd.f32 %v4835, %v4902
      %v5031 = vadd.f32 %v4836, %v4904
      %v5032 = vadd.f32 %v4837, %v4906
      %v5033 = vadd.f32 %v4838, %v4908
      %v5034 = vadd.f32 %v4839, %v4910
      %v5035 = vadd.f32 %v4840, %v4912
      %v5036 = vadd.f32 %v4841, %v4914
      %v5037 = vadd.f32 %v4842, %v4916
      %v5038 = vadd.f32 %v4843, %v4918
      %v5039 = vadd.f32 %v4844, %v4920
      %v5040 = vadd.f32 %v4845, %v4922
      %v5041 = vadd.f32 %v4846, %v4924
      %v5042 = vadd.f32 %v4847, %v4926
      %v5043 = vadd.f32 %v4848, %v4928
      %v5044 = vadd.f32 %v4849, %v4930
      %v5045 = vadd.f32 %v4850, %v4932
      %v5046 = vadd.f32 %v4851, %v4934
      %v5047 = vadd.f32 %v4852, %v4936
      %v5048 = vadd.f32 %v4853, %v4938
      %v5049 = vadd.f32 %v4854, %v4940
      %v5050 = vadd.f32 %v4855, %v4942
      %v5051 = vadd.f32 %v4856, %v4944
      %v5052 = vadd.f32 %v4857, %v4946
      %v5053 = vadd.f32 %v4858, %v4948
      %v5054 = vadd.f32 %v4859, %v4950
      %v5055 = vadd.f32 %v4860, %v4952
      %v5056 = vadd.f32 %v4861, %v4954
      %v5057 = vadd.f32 %v4862, %v4956
      %v5058 = vadd.f32 %v4863, %v4958
      %v5059 = vadd.f32 %v4864, %v4960
      %v5060 = vadd.f32 %v4865, %v4962
      %v5061 = vadd.f32 %v4866, %v4964
      %v5062 = vadd.f32 %v4867, %v4966
      %v5063 = vrot.slane %v3692, 1
      %v5064 = vrot.slane %v3697, 1
      %v5065 = vsel %vm1114, %v5063, %v5064
      %5066 = vrot.lane.b32.xlu0 %v3743, 100
      %v5067 = vpop.permute.xlu0 %5066
      %5068 = vrot.lane.b32.xlu0 %v3745, 100
      %v5069 = vpop.permute.xlu0 %5068
      %5070 = vrot.lane.b32.xlu0 %v3744, 100
      %v5071 = vpop.permute.xlu0 %5070
      %5072 = vrot.lane.b32.xlu0 %v3746, 100
      %v5073 = vpop.permute.xlu0 %5072
      %5074 = vrot.lane.b32.xlu0 %v3748, 100
      %v5075 = vpop.permute.xlu0 %5074
      %5076 = vrot.lane.b32.xlu0 %v3747, 100
      %v5077 = vpop.permute.xlu0 %5076
      %5078 = vrot.lane.b32.xlu0 %v3749, 100
      %v5079 = vpop.permute.xlu0 %5078
      %5080 = vrot.lane.b32.xlu0 %v3751, 100
      %v5081 = vpop.permute.xlu0 %5080
      %5082 = vrot.lane.b32.xlu0 %v3750, 100
      %v5083 = vpop.permute.xlu0 %5082
      %5084 = vrot.lane.b32.xlu0 %v3752, 100
      %v5085 = vpop.permute.xlu0 %5084
      %5086 = vrot.lane.b32.xlu0 %v3754, 100
      %v5087 = vpop.permute.xlu0 %5086
      %5088 = vrot.lane.b32.xlu0 %v3753, 100
      %v5089 = vpop.permute.xlu0 %5088
      %5090 = vrot.lane.b32.xlu0 %v3755, 100
      %v5091 = vpop.permute.xlu0 %5090
      %5092 = vrot.lane.b32.xlu0 %v3757, 100
      %v5093 = vpop.permute.xlu0 %5092
      %5094 = vrot.lane.b32.xlu0 %v3756, 100
      %v5095 = vpop.permute.xlu0 %5094
      %5096 = vrot.lane.b32.xlu0 %v3758, 100
      %v5097 = vpop.permute.xlu0 %5096
      %5098 = vrot.lane.b32.xlu0 %v3760, 100
      %v5099 = vpop.permute.xlu0 %5098
      %5100 = vrot.lane.b32.xlu0 %v3759, 100
      %v5101 = vpop.permute.xlu0 %5100
      %5102 = vrot.lane.b32.xlu0 %v3761, 100
      %v5103 = vpop.permute.xlu0 %5102
      %5104 = vrot.lane.b32.xlu0 %v3763, 100
      %v5105 = vpop.permute.xlu0 %5104
      %5106 = vrot.lane.b32.xlu0 %v3762, 100
      %v5107 = vpop.permute.xlu0 %5106
      %5108 = vrot.lane.b32.xlu0 %v3764, 100
      %v5109 = vpop.permute.xlu0 %5108
      %5110 = vrot.lane.b32.xlu0 %v3766, 100
      %v5111 = vpop.permute.xlu0 %5110
      %5112 = vrot.lane.b32.xlu0 %v3765, 100
      %v5113 = vpop.permute.xlu0 %5112
      %5114 = vrot.lane.b32.xlu0 %v3767, 100
      %v5115 = vpop.permute.xlu0 %5114
      %5116 = vrot.lane.b32.xlu0 %v3769, 100
      %v5117 = vpop.permute.xlu0 %5116
      %5118 = vrot.lane.b32.xlu0 %v3768, 100
      %v5119 = vpop.permute.xlu0 %5118
      %5120 = vrot.lane.b32.xlu0 %v3770, 100
      %v5121 = vpop.permute.xlu0 %5120
      %5122 = vrot.lane.b32.xlu0 %v3772, 100
      %v5123 = vpop.permute.xlu0 %5122
      %5124 = vrot.lane.b32.xlu0 %v3771, 100
      %v5125 = vpop.permute.xlu0 %5124
      %5126 = vrot.lane.b32.xlu0 %v3773, 100
      %v5127 = vpop.permute.xlu0 %5126
      %5128 = vrot.lane.b32.xlu0 %v3775, 100
      %v5129 = vpop.permute.xlu0 %5128
      %5130 = vrot.lane.b32.xlu0 %v3774, 100
      %v5131 = vpop.permute.xlu0 %5130
      %5132 = vrot.lane.b32.xlu0 %v3776, 100
      %v5133 = vpop.permute.xlu0 %5132
      %5134 = vrot.lane.b32.xlu0 %v3778, 100
      %v5135 = vpop.permute.xlu0 %5134
      %5136 = vrot.lane.b32.xlu0 %v3777, 100
      %v5137 = vpop.permute.xlu0 %5136
      %5138 = vrot.lane.b32.xlu0 %v3779, 100
      %v5139 = vpop.permute.xlu0 %5138
      %5140 = vrot.lane.b32.xlu0 %v3781, 100
      %v5141 = vpop.permute.xlu0 %5140
      %5142 = vrot.lane.b32.xlu0 %v3780, 100
      %v5143 = vpop.permute.xlu0 %5142
      %5144 = vrot.lane.b32.xlu0 %v3782, 100
      %v5145 = vpop.permute.xlu0 %5144
      %5146 = vrot.lane.b32.xlu0 %v3784, 100
      %v5147 = vpop.permute.xlu0 %5146
      %5148 = vrot.lane.b32.xlu0 %v3783, 100
      %v5149 = vpop.permute.xlu0 %5148
      %5150 = vrot.lane.b32.xlu0 %v4475, 100
      %v5151 = vpop.permute.xlu0 %5150
      %5152 = vrot.lane.b32.xlu0 %v4477, 100
      %v5153 = vpop.permute.xlu0 %5152
      %5154 = vrot.lane.b32.xlu0 %v4476, 100
      %v5155 = vpop.permute.xlu0 %5154
      %5156 = vrot.lane.b32.xlu0 %v5063, 100
      %v5157 = vpop.permute.xlu0 %5156
      %5158 = vrot.lane.b32.xlu0 %v5065, 100
      %v5159 = vpop.permute.xlu0 %5158
      %5160 = vrot.lane.b32.xlu0 %v5064, 100
      %v5161 = vpop.permute.xlu0 %5160
      %v5210 = vadd.f32 %v5015, %v5067
      %v5211 = vadd.f32 %v5016, %v5069
      %v5212 = vadd.f32 %v5017, %v5071
      %v5213 = vadd.f32 %v5018, %v5073
      %v5214 = vadd.f32 %v5019, %v5075
      %v5215 = vadd.f32 %v5020, %v5077
      %v5216 = vadd.f32 %v5021, %v5079
      %v5217 = vadd.f32 %v5022, %v5081
      %v5218 = vadd.f32 %v5023, %v5083
      %v5219 = vadd.f32 %v5024, %v5085
      %v5220 = vadd.f32 %v5025, %v5087
      %v5221 = vadd.f32 %v5026, %v5089
      %v5222 = vadd.f32 %v5027, %v5091
      %v5223 = vadd.f32 %v5028, %v5093
      %v5224 = vadd.f32 %v5029, %v5095
      %v5225 = vadd.f32 %v5030, %v5097
      %v5226 = vadd.f32 %v5031, %v5099
      %v5227 = vadd.f32 %v5032, %v5101
      %v5228 = vadd.f32 %v5033, %v5103
      %v5229 = vadd.f32 %v5034, %v5105
      %v5230 = vadd.f32 %v5035, %v5107
      %v5231 = vadd.f32 %v5036, %v5109
      %v5232 = vadd.f32 %v5037, %v5111
      %v5233 = vadd.f32 %v5038, %v5113
      %v5234 = vadd.f32 %v5039, %v5115
      %v5235 = vadd.f32 %v5040, %v5117
      %v5236 = vadd.f32 %v5041, %v5119
      %v5237 = vadd.f32 %v5042, %v5121
      %v5238 = vadd.f32 %v5043, %v5123
      %v5239 = vadd.f32 %v5044, %v5125
      %v5240 = vadd.f32 %v5045, %v5127
      %v5241 = vadd.f32 %v5046, %v5129
      %v5242 = vadd.f32 %v5047, %v5131
      %v5243 = vadd.f32 %v5048, %v5133
      %v5244 = vadd.f32 %v5049, %v5135
      %v5245 = vadd.f32 %v5050, %v5137
      %v5246 = vadd.f32 %v5051, %v5139
      %v5247 = vadd.f32 %v5052, %v5141
      %v5248 = vadd.f32 %v5053, %v5143
      %v5249 = vadd.f32 %v5054, %v5145
      %v5250 = vadd.f32 %v5055, %v5147
      %v5251 = vadd.f32 %v5056, %v5149
      %v5252 = vadd.f32 %v5057, %v5151
      %v5253 = vadd.f32 %v5058, %v5153
      %v5254 = vadd.f32 %v5059, %v5155
      %v5255 = vadd.f32 %v5060, %v5157
      %v5256 = vadd.f32 %v5061, %v5159
      %v5257 = vadd.f32 %v5062, %v5161
      %v5259 = vrot.slane %v3692, 2
      %v5260 = vrot.slane %v3697, 2
      %v5261 = vsel %vm1371, %v5259, %v5260
      %v5262 = vrot.slane %v3702, 2
      %v5263 = vsel %vm1371, %v5260, %v5262
      %5264 = vrot.lane.b32.xlu0 %v4003, 96
      %v5265 = vpop.permute.xlu0 %5264
      %5266 = vrot.lane.b32.xlu0 %v4005, 96
      %v5267 = vpop.permute.xlu0 %5266
      %5268 = vrot.lane.b32.xlu0 %v4007, 96
      %v5269 = vpop.permute.xlu0 %5268
      %5270 = vrot.lane.b32.xlu0 %v4008, 96
      %v5271 = vpop.permute.xlu0 %5270
      %5272 = vrot.lane.b32.xlu0 %v4010, 96
      %v5273 = vpop.permute.xlu0 %5272
      %5274 = vrot.lane.b32.xlu0 %v4012, 96
      %v5275 = vpop.permute.xlu0 %5274
      %5276 = vrot.lane.b32.xlu0 %v4013, 96
      %v5277 = vpop.permute.xlu0 %5276
      %5278 = vrot.lane.b32.xlu0 %v4015, 96
      %v5279 = vpop.permute.xlu0 %5278
      %5280 = vrot.lane.b32.xlu0 %v4017, 96
      %v5281 = vpop.permute.xlu0 %5280
      %5282 = vrot.lane.b32.xlu0 %v4018, 96
      %v5283 = vpop.permute.xlu0 %5282
      %5284 = vrot.lane.b32.xlu0 %v4020, 96
      %v5285 = vpop.permute.xlu0 %5284
      %5286 = vrot.lane.b32.xlu0 %v4022, 96
      %v5287 = vpop.permute.xlu0 %5286
      %5288 = vrot.lane.b32.xlu0 %v4023, 96
      %v5289 = vpop.permute.xlu0 %5288
      %5290 = vrot.lane.b32.xlu0 %v4025, 96
      %v5291 = vpop.permute.xlu0 %5290
      %5292 = vrot.lane.b32.xlu0 %v4027, 96
      %v5293 = vpop.permute.xlu0 %5292
      %5294 = vrot.lane.b32.xlu0 %v4028, 96
      %v5295 = vpop.permute.xlu0 %5294
      %5296 = vrot.lane.b32.xlu0 %v4030, 96
      %v5297 = vpop.permute.xlu0 %5296
      %5298 = vrot.lane.b32.xlu0 %v4032, 96
      %v5299 = vpop.permute.xlu0 %5298
      %5300 = vrot.lane.b32.xlu0 %v4033, 96
      %v5301 = vpop.permute.xlu0 %5300
      %5302 = vrot.lane.b32.xlu0 %v4035, 96
      %v5303 = vpop.permute.xlu0 %5302
      %5304 = vrot.lane.b32.xlu0 %v4037, 96
      %v5305 = vpop.permute.xlu0 %5304
      %5306 = vrot.lane.b32.xlu0 %v4038, 96
      %v5307 = vpop.permute.xlu0 %5306
      %5308 = vrot.lane.b32.xlu0 %v4040, 96
      %v5309 = vpop.permute.xlu0 %5308
      %5310 = vrot.lane.b32.xlu0 %v4042, 96
      %v5311 = vpop.permute.xlu0 %5310
      %5312 = vrot.lane.b32.xlu0 %v4043, 96
      %v5313 = vpop.permute.xlu0 %5312
      %5314 = vrot.lane.b32.xlu0 %v4045, 96
      %v5315 = vpop.permute.xlu0 %5314
      %5316 = vrot.lane.b32.xlu0 %v4047, 96
      %v5317 = vpop.permute.xlu0 %5316
      %5318 = vrot.lane.b32.xlu0 %v4048, 96
      %v5319 = vpop.permute.xlu0 %5318
      %5320 = vrot.lane.b32.xlu0 %v4050, 96
      %v5321 = vpop.permute.xlu0 %5320
      %5322 = vrot.lane.b32.xlu0 %v4052, 96
      %v5323 = vpop.permute.xlu0 %5322
      %5324 = vrot.lane.b32.xlu0 %v4053, 96
      %v5325 = vpop.permute.xlu0 %5324
      %5326 = vrot.lane.b32.xlu0 %v4055, 96
      %v5327 = vpop.permute.xlu0 %5326
      %5328 = vrot.lane.b32.xlu0 %v4057, 96
      %v5329 = vpop.permute.xlu0 %5328
      %5330 = vrot.lane.b32.xlu0 %v4058, 96
      %v5331 = vpop.permute.xlu0 %5330
      %5332 = vrot.lane.b32.xlu0 %v4060, 96
      %v5333 = vpop.permute.xlu0 %5332
      %5334 = vrot.lane.b32.xlu0 %v4062, 96
      %v5335 = vpop.permute.xlu0 %5334
      %5336 = vrot.lane.b32.xlu0 %v4063, 96
      %v5337 = vpop.permute.xlu0 %5336
      %5338 = vrot.lane.b32.xlu0 %v4065, 96
      %v5339 = vpop.permute.xlu0 %5338
      %5340 = vrot.lane.b32.xlu0 %v4067, 96
      %v5341 = vpop.permute.xlu0 %5340
      %5342 = vrot.lane.b32.xlu0 %v4068, 96
      %v5343 = vpop.permute.xlu0 %5342
      %5344 = vrot.lane.b32.xlu0 %v4070, 96
      %v5345 = vpop.permute.xlu0 %5344
      %5346 = vrot.lane.b32.xlu0 %v4072, 96
      %v5347 = vpop.permute.xlu0 %5346
      %5348 = vrot.lane.b32.xlu0 %v4671, 96
      %v5349 = vpop.permute.xlu0 %5348
      %5350 = vrot.lane.b32.xlu0 %v4673, 96
      %v5351 = vpop.permute.xlu0 %5350
      %5352 = vrot.lane.b32.xlu0 %v4675, 96
      %v5353 = vpop.permute.xlu0 %5352
      %5354 = vrot.lane.b32.xlu0 %v5259, 96
      %v5355 = vpop.permute.xlu0 %5354
      %5356 = vrot.lane.b32.xlu0 %v5261, 96
      %v5357 = vpop.permute.xlu0 %5356
      %5358 = vrot.lane.b32.xlu0 %v5263, 96
      %v5359 = vpop.permute.xlu0 %5358
      %v5408 = vadd.f32 %v5210, %v5265
      %v5409 = vadd.f32 %v5211, %v5267
      %v5410 = vadd.f32 %v5212, %v5269
      %v5411 = vadd.f32 %v5213, %v5271
      %v5412 = vadd.f32 %v5214, %v5273
      %v5413 = vadd.f32 %v5215, %v5275
      %v5414 = vadd.f32 %v5216, %v5277
      %v5415 = vadd.f32 %v5217, %v5279
      %v5416 = vadd.f32 %v5218, %v5281
      %v5417 = vadd.f32 %v5219, %v5283
      %v5418 = vadd.f32 %v5220, %v5285
      %v5419 = vadd.f32 %v5221, %v5287
      %v5420 = vadd.f32 %v5222, %v5289
      %v5421 = vadd.f32 %v5223, %v5291
      %v5422 = vadd.f32 %v5224, %v5293
      %v5423 = vadd.f32 %v5225, %v5295
      %v5424 = vadd.f32 %v5226, %v5297
      %v5425 = vadd.f32 %v5227, %v5299
      %v5426 = vadd.f32 %v5228, %v5301
      %v5427 = vadd.f32 %v5229, %v5303
      %v5428 = vadd.f32 %v5230, %v5305
      %v5429 = vadd.f32 %v5231, %v5307
      %v5430 = vadd.f32 %v5232, %v5309
      %v5431 = vadd.f32 %v5233, %v5311
      %v5432 = vadd.f32 %v5234, %v5313
      %v5433 = vadd.f32 %v5235, %v5315
      %v5434 = vadd.f32 %v5236, %v5317
      %v5435 = vadd.f32 %v5237, %v5319
      %v5436 = vadd.f32 %v5238, %v5321
      %v5437 = vadd.f32 %v5239, %v5323
      %v5438 = vadd.f32 %v5240, %v5325
      %v5439 = vadd.f32 %v5241, %v5327
      %v5440 = vadd.f32 %v5242, %v5329
      %v5441 = vadd.f32 %v5243, %v5331
      %v5442 = vadd.f32 %v5244, %v5333
      %v5443 = vadd.f32 %v5245, %v5335
      %v5444 = vadd.f32 %v5246, %v5337
      %v5445 = vadd.f32 %v5247, %v5339
      %v5446 = vadd.f32 %v5248, %v5341
      %v5447 = vadd.f32 %v5249, %v5343
      %v5448 = vadd.f32 %v5250, %v5345
      %v5449 = vadd.f32 %v5251, %v5347
      %v5450 = vadd.f32 %v5252, %v5349
      %v5451 = vadd.f32 %v5253, %v5351
      %v5452 = vadd.f32 %v5254, %v5353
      %v5453 = vadd.f32 %v5255, %v5355
      %v5454 = vadd.f32 %v5256, %v5357
      %v5455 = vadd.f32 %v5257, %v5359
      %v5457 = vlaneseq
      %v5458 = vshrl.u32 %v5457, 7
      %v5459 = vsub.s32 0, %v5458
      %v5460 = vrot.slane %v2988, %v5459
      %v5462 = vadd.f32 %v5408, %v5460
      %v5463 = vadd.f32 %v5409, %v5460
      %v5464 = vadd.f32 %v5410, %v5460
      %v5465 = vadd.f32 %v5411, %v5460
      %v5466 = vadd.f32 %v5412, %v5460
      %v5467 = vadd.f32 %v5413, %v5460
      %v5468 = vadd.f32 %v5414, %v5460
      %v5469 = vadd.f32 %v5415, %v5460
      %v5470 = vadd.f32 %v5416, %v5460
      %v5471 = vadd.f32 %v5417, %v5460
      %v5472 = vadd.f32 %v5418, %v5460
      %v5473 = vadd.f32 %v5419, %v5460
      %v5474 = vadd.f32 %v5420, %v5460
      %v5475 = vadd.f32 %v5421, %v5460
      %v5476 = vadd.f32 %v5422, %v5460
      %v5477 = vadd.f32 %v5423, %v5460
      %v5478 = vadd.f32 %v5424, %v5460
      %v5479 = vadd.f32 %v5425, %v5460
      %v5480 = vadd.f32 %v5426, %v5460
      %v5481 = vadd.f32 %v5427, %v5460
      %v5482 = vadd.f32 %v5428, %v5460
      %v5483 = vadd.f32 %v5429, %v5460
      %v5484 = vadd.f32 %v5430, %v5460
      %v5485 = vadd.f32 %v5431, %v5460
      %v5486 = vadd.f32 %v5432, %v5460
      %v5487 = vadd.f32 %v5433, %v5460
      %v5488 = vadd.f32 %v5434, %v5460
      %v5489 = vadd.f32 %v5435, %v5460
      %v5490 = vadd.f32 %v5436, %v5460
      %v5491 = vadd.f32 %v5437, %v5460
      %v5492 = vadd.f32 %v5438, %v5460
      %v5493 = vadd.f32 %v5439, %v5460
      %v5494 = vadd.f32 %v5440, %v5460
      %v5495 = vadd.f32 %v5441, %v5460
      %v5496 = vadd.f32 %v5442, %v5460
      %v5497 = vadd.f32 %v5443, %v5460
      %v5498 = vadd.f32 %v5444, %v5460
      %v5499 = vadd.f32 %v5445, %v5460
      %v5500 = vadd.f32 %v5446, %v5460
      %v5501 = vadd.f32 %v5447, %v5460
      %v5502 = vadd.f32 %v5448, %v5460
      %v5503 = vadd.f32 %v5449, %v5460
      %v5504 = vadd.f32 %v5450, %v5460
      %v5505 = vadd.f32 %v5451, %v5460
      %v5506 = vadd.f32 %v5452, %v5460
      %v5507 = vadd.f32 %v5453, %v5460
      %v5508 = vadd.f32 %v5454, %v5460
      %v5509 = vadd.f32 %v5455, %v5460
      %v5542 = vrot.slane %v298, 1
      %v5543 = vrot.slane %v299, 1
      %v5544 = vsel %vm1114, %v5542, %v5543
      %v5545 = vrot.slane %v300, 1
      %v5546 = vrot.slane %v301, 1
      %v5547 = vsel %vm1114, %v5545, %v5546
      %v5548 = vrot.slane %v302, 1
      %v5549 = vrot.slane %v303, 1
      %v5550 = vsel %vm1114, %v5548, %v5549
      %v5551 = vrot.slane %v304, 1
      %v5552 = vrot.slane %v305, 1
      %v5553 = vsel %vm1114, %v5551, %v5552
      %v5554 = vrot.slane %v306, 1
      %v5555 = vrot.slane %v307, 1
      %v5556 = vsel %vm1114, %v5554, %v5555
      %v5557 = vrot.slane %v308, 1
      %v5558 = vrot.slane %v309, 1
      %v5559 = vsel %vm1114, %v5557, %v5558
      %v5560 = vrot.slane %v310, 1
      %v5561 = vrot.slane %v311, 1
      %v5562 = vsel %vm1114, %v5560, %v5561
      %v5563 = vrot.slane %v312, 1
      %v5564 = vrot.slane %v313, 1
      %v5565 = vsel %vm1114, %v5563, %v5564
      %v5566 = vrot.slane %v314, 1
      %v5567 = vrot.slane %v315, 1
      %v5568 = vsel %vm1114, %v5566, %v5567
      %v5569 = vrot.slane %v316, 1
      %v5570 = vrot.slane %v317, 1
      %v5571 = vsel %vm1114, %v5569, %v5570
      %v5572 = vrot.slane %v318, 1
      %v5573 = vrot.slane %v319, 1
      %v5574 = vsel %vm1114, %v5572, %v5573
      %v5575 = vrot.slane %v320, 1
      %v5576 = vrot.slane %v321, 1
      %v5577 = vsel %vm1114, %v5575, %v5576
      %v5578 = vrot.slane %v322, 1
      %v5579 = vrot.slane %v323, 1
      %v5580 = vsel %vm1114, %v5578, %v5579
      %v5581 = vrot.slane %v324, 1
      %v5582 = vrot.slane %v325, 1
      %v5583 = vsel %vm1114, %v5581, %v5582
      %v5584 = vrot.slane %v326, 1
      %v5585 = vrot.slane %v327, 1
      %v5586 = vsel %vm1114, %v5584, %v5585
      %v5587 = vrot.slane %v328, 1
      %v5588 = vrot.slane %v329, 1
      %v5589 = vsel %vm1114, %v5587, %v5588
      %v5638 = vadd.f32 %v5462, %v5542
      %v5639 = vadd.f32 %v5463, %v5544
      %v5640 = vadd.f32 %v5464, %v5543
      %v5641 = vadd.f32 %v5465, %v5545
      %v5642 = vadd.f32 %v5466, %v5547
      %v5643 = vadd.f32 %v5467, %v5546
      %v5644 = vadd.f32 %v5468, %v5548
      %v5645 = vadd.f32 %v5469, %v5550
      %v5646 = vadd.f32 %v5470, %v5549
      %v5647 = vadd.f32 %v5471, %v5551
      %v5648 = vadd.f32 %v5472, %v5553
      %v5649 = vadd.f32 %v5473, %v5552
      %v5650 = vadd.f32 %v5474, %v5554
      %v5651 = vadd.f32 %v5475, %v5556
      %v5652 = vadd.f32 %v5476, %v5555
      %v5653 = vadd.f32 %v5477, %v5557
      %v5654 = vadd.f32 %v5478, %v5559
      %v5655 = vadd.f32 %v5479, %v5558
      %v5656 = vadd.f32 %v5480, %v5560
      %v5657 = vadd.f32 %v5481, %v5562
      %v5658 = vadd.f32 %v5482, %v5561
      %v5659 = vadd.f32 %v5483, %v5563
      %v5660 = vadd.f32 %v5484, %v5565
      %v5661 = vadd.f32 %v5485, %v5564
      %v5662 = vadd.f32 %v5486, %v5566
      %v5663 = vadd.f32 %v5487, %v5568
      %v5664 = vadd.f32 %v5488, %v5567
      %v5665 = vadd.f32 %v5489, %v5569
      %v5666 = vadd.f32 %v5490, %v5571
      %v5667 = vadd.f32 %v5491, %v5570
      %v5668 = vadd.f32 %v5492, %v5572
      %v5669 = vadd.f32 %v5493, %v5574
      %v5670 = vadd.f32 %v5494, %v5573
      %v5671 = vadd.f32 %v5495, %v5575
      %v5672 = vadd.f32 %v5496, %v5577
      %v5673 = vadd.f32 %v5497, %v5576
      %v5674 = vadd.f32 %v5498, %v5578
      %v5675 = vadd.f32 %v5499, %v5580
      %v5676 = vadd.f32 %v5500, %v5579
      %v5677 = vadd.f32 %v5501, %v5581
      %v5678 = vadd.f32 %v5502, %v5583
      %v5679 = vadd.f32 %v5503, %v5582
      %v5680 = vadd.f32 %v5504, %v5584
      %v5681 = vadd.f32 %v5505, %v5586
      %v5682 = vadd.f32 %v5506, %v5585
      %v5683 = vadd.f32 %v5507, %v5587
      %v5684 = vadd.f32 %v5508, %v5589
      %v5685 = vadd.f32 %v5509, %v5588
      %v5686 = vmax.f32 %v5638, 0.0
      %v5687 = vmax.f32 %v5639, 0.0
      %v5688 = vmax.f32 %v5640, 0.0
      %v5689 = vmax.f32 %v5641, 0.0
      %v5690 = vmax.f32 %v5642, 0.0
      %v5691 = vmax.f32 %v5643, 0.0
      %v5692 = vmax.f32 %v5644, 0.0
      %v5693 = vmax.f32 %v5645, 0.0
      %v5694 = vmax.f32 %v5646, 0.0
      %v5695 = vmax.f32 %v5647, 0.0
      %v5696 = vmax.f32 %v5648, 0.0
      %v5697 = vmax.f32 %v5649, 0.0
      %v5698 = vmax.f32 %v5650, 0.0
      %v5699 = vmax.f32 %v5651, 0.0
      %v5700 = vmax.f32 %v5652, 0.0
      %v5701 = vmax.f32 %v5653, 0.0
      %v5702 = vmax.f32 %v5654, 0.0
      %v5703 = vmax.f32 %v5655, 0.0
      %v5704 = vmax.f32 %v5656, 0.0
      %v5705 = vmax.f32 %v5657, 0.0
      %v5706 = vmax.f32 %v5658, 0.0
      %v5707 = vmax.f32 %v5659, 0.0
      %v5708 = vmax.f32 %v5660, 0.0
      %v5709 = vmax.f32 %v5661, 0.0
      %v5710 = vmax.f32 %v5662, 0.0
      %v5711 = vmax.f32 %v5663, 0.0
      %v5712 = vmax.f32 %v5664, 0.0
      %v5713 = vmax.f32 %v5665, 0.0
      %v5714 = vmax.f32 %v5666, 0.0
      %v5715 = vmax.f32 %v5667, 0.0
      %v5716 = vmax.f32 %v5668, 0.0
      %v5717 = vmax.f32 %v5669, 0.0
      %v5718 = vmax.f32 %v5670, 0.0
      %v5719 = vmax.f32 %v5671, 0.0
      %v5720 = vmax.f32 %v5672, 0.0
      %v5721 = vmax.f32 %v5673, 0.0
      %v5722 = vmax.f32 %v5674, 0.0
      %v5723 = vmax.f32 %v5675, 0.0
      %v5724 = vmax.f32 %v5676, 0.0
      %v5725 = vmax.f32 %v5677, 0.0
      %v5726 = vmax.f32 %v5678, 0.0
      %v5727 = vmax.f32 %v5679, 0.0
      %v5728 = vmax.f32 %v5680, 0.0
      %v5729 = vmax.f32 %v5681, 0.0
      %v5730 = vmax.f32 %v5682, 0.0
      %v5731 = vmax.f32 %v5683, 0.0
      %v5732 = vmax.f32 %v5684, 0.0
      %v5733 = vmax.f32 %v5685, 0.0
      %5734 = vst.msk [vmem:[%s224 - $0x7] sm:$0x80] %vm2937, %v5686
      %5735 = vst.msk [vmem:[%s224 + $0x1] sm:$0xff] %vm225, %v5687
      %5736 = vst.msk [vmem:[%s224 + $0x9] sm:$0x7f] %vm2940, %v5688
      %5737 = vst.msk [vmem:[%s224 + $0x9] sm:$0x80] %vm2937, %v5689
      %5738 = vst.msk [vmem:[%s224 + $0x11] sm:$0xff] %vm225, %v5690
      %5739 = vst.msk [vmem:[%s224 + $0x19] sm:$0x7f] %vm2940, %v5691
      %5740 = vst.msk [vmem:[%s224 + $0x19] sm:$0x80] %vm2937, %v5692
      %5741 = vst.msk [vmem:[%s224 + $0x21] sm:$0xff] %vm225, %v5693
      %5742 = vst.msk [vmem:[%s224 + $0x29] sm:$0x7f] %vm2940, %v5694
      %5743 = vst.msk [vmem:[%s224 + $0x29] sm:$0x80] %vm2937, %v5695
      %5744 = vst.msk [vmem:[%s224 + $0x31] sm:$0xff] %vm225, %v5696
      %5745 = vst.msk [vmem:[%s224 + $0x39] sm:$0x7f] %vm2940, %v5697
      %5746 = vst.msk [vmem:[%s224 + $0x39] sm:$0x80] %vm2937, %v5698
      %5747 = vst.msk [vmem:[%s224 + $0x41] sm:$0xff] %vm225, %v5699
      %5748 = vst.msk [vmem:[%s224 + $0x49] sm:$0x7f] %vm2940, %v5700
      %5749 = vst.msk [vmem:[%s224 + $0x49] sm:$0x80] %vm2937, %v5701
      %5750 = vst.msk [vmem:[%s224 + $0x51] sm:$0xff] %vm225, %v5702
      %5751 = vst.msk [vmem:[%s224 + $0x59] sm:$0x7f] %vm2940, %v5703
      %5752 = vst.msk [vmem:[%s224 + $0x59] sm:$0x80] %vm2937, %v5704
      %5753 = vst.msk [vmem:[%s224 + $0x61] sm:$0xff] %vm225, %v5705
      %5754 = vst.msk [vmem:[%s224 + $0x69] sm:$0x7f] %vm2940, %v5706
      %5755 = vst.msk [vmem:[%s224 + $0x69] sm:$0x80] %vm2937, %v5707
      %5756 = vst.msk [vmem:[%s224 + $0x71] sm:$0xff] %vm225, %v5708
      %5757 = vst.msk [vmem:[%s224 + $0x79] sm:$0x7f] %vm2940, %v5709
      %5758 = vst.msk [vmem:[%s224 + $0x79] sm:$0x80] %vm2937, %v5710
      %5759 = vst.msk [vmem:[%s224 + $0x81] sm:$0xff] %vm225, %v5711
      %5760 = vst.msk [vmem:[%s224 + $0x89] sm:$0x7f] %vm2940, %v5712
      %5761 = vst.msk [vmem:[%s224 + $0x89] sm:$0x80] %vm2937, %v5713
      %5762 = vst.msk [vmem:[%s224 + $0x91] sm:$0xff] %vm225, %v5714
      %5763 = vst.msk [vmem:[%s224 + $0x99] sm:$0x7f] %vm2940, %v5715
      %5764 = vst.msk [vmem:[%s224 + $0x99] sm:$0x80] %vm2937, %v5716
      %5765 = vst.msk [vmem:[%s224 + $0xa1] sm:$0xff] %vm225, %v5717
      %5766 = vst.msk [vmem:[%s224 + $0xa9] sm:$0x7f] %vm2940, %v5718
      %5767 = vst.msk [vmem:[%s224 + $0xa9] sm:$0x80] %vm2937, %v5719
      %5768 = vst.msk [vmem:[%s224 + $0xb1] sm:$0xff] %vm225, %v5720
      %5769 = vst.msk [vmem:[%s224 + $0xb9] sm:$0x7f] %vm2940, %v5721
      %5770 = vst.msk [vmem:[%s224 + $0xb9] sm:$0x80] %vm2937, %v5722
      %5771 = vst.msk [vmem:[%s224 + $0xc1] sm:$0xff] %vm225, %v5723
      %5772 = vst.msk [vmem:[%s224 + $0xc9] sm:$0x7f] %vm2940, %v5724
      %5773 = vst.msk [vmem:[%s224 + $0xc9] sm:$0x80] %vm2937, %v5725
      %5774 = vst.msk [vmem:[%s224 + $0xd1] sm:$0xff] %vm225, %v5726
      %5775 = vst.msk [vmem:[%s224 + $0xd9] sm:$0x7f] %vm2940, %v5727
      %5776 = vst.msk [vmem:[%s224 + $0xd9] sm:$0x80] %vm2937, %v5728
      %5777 = vst.msk [vmem:[%s224 + $0xe1] sm:$0xff] %vm225, %v5729
      %5778 = vst.msk [vmem:[%s224 + $0xe9] sm:$0x7f] %vm2940, %v5730
      %5779 = vst.msk [vmem:[%s224 + $0xe9] sm:$0x80] %vm2937, %v5731
      %5780 = vst.msk [vmem:[%s224 + $0xf1] sm:$0xff] %vm225, %v5732
      %5781 = vst.msk [vmem:[%s224 + $0xf9] sm:$0x7f] %vm2940, %v5733
      %p5782 = scmp.lt.s32.totalorder %s16, 1
      %s5783 = scalar_select %p5782, %s16, 1
      %s5784 = smul.addr %s5783, 32
      %s5785 = smul.addr %s5784, 8
      %s5786 = scalar_lea.vmem %s5, %s5785
      // Predicated region
      $region41: #{tpu_custom_call.1} parent=39 // pred_check
        %p5787 = pneg %p144
      $region42: #{tpu_custom_call.1} parent=39 // pred_check_branch
        %5789 = sbr.rel (%p5787) target = $region44
      $region43: #{tpu_custom_call.1} parent=39 // pred_region
        _
      $region44: #{tpu_custom_call.1} parent=39 // pred_fallthru
        _
    $region40: #{tpu_custom_call.1} parent=5 // pred_fallthru
      _
    %p5790 = scmp.le.s32.totalorder 2, %s11
    // Predicated region
    $region45: #{tpu_custom_call.1} parent=5 // pred_check
      %p5791 = pneg %p5790
    $region46: #{tpu_custom_call.1} parent=5 // pred_check_branch
      %5793 = sbr.rel (%p5791) target = $region48
    $region47: #{tpu_custom_call.1} parent=5 // pred_region
      %s5794 = ssub.s32 %s11, 2
      // Predicated region
      $region49: #{tpu_custom_call.1} parent=47 // pred_check
        %p5795 = pneg %p150
      $region50: #{tpu_custom_call.1} parent=47 // pred_check_branch
        %5797 = sbr.rel (%p5795) target = $region52
      $region51: #{tpu_custom_call.1} parent=47 // pred_region
        %p5798 = scmp.lt.s32.totalorder %s17, 1
        %s5799 = scalar_select %p5798, %s17, 1
        %s5800 = smul.addr %s5799, 32
        %s5801 = smul.addr %s5800, 8
        %s5802 = scalar_lea.vmem %s5, %s5801
      $region52: #{tpu_custom_call.1} parent=47 // pred_fallthru
        _
    $region48: #{tpu_custom_call.1} parent=5 // pred_fallthru
      _
  $region6: #{tpu_custom_call.1} parent=0 // loop_footer
    %s15 = sadd.s32 1, %s11
  $region7: #{tpu_custom_call.1} parent=0 // loop_footer_branch
    %10 = sbr.rel target = $region3
  $region8: #{tpu_custom_call.1} parent=0 // loop_exit
    _

</llo_original>
